<compile_context>
chip_gen: v7x
topology: tpu7x:2x2x1
jax: 0.10.0
libtpu: 0.0.40
codegen_flags: <defaults>
</compile_context>

<pallas_src>
import jax
import jax.numpy as jnp
from jax import lax
from jax.experimental import pallas as pl
from jax.experimental.pallas import tpu as pltpu

KSIZE = 7
PAD = 3


def _round_up(v, m):
    return ((v + m - 1) // m) * m


def _cbam_kernel(x_ref, wi_ref, wo_ref, w7_ref, o_ref, pad_avg, pad_max, comb_ref):
    # x_ref:    (1, H, W, C)  VMEM
    # wi_ref:   (C, Cr)       VMEM   (fc_in 1x1 weight, transposed)
    # wo_ref:   (Cr, C)       VMEM   (fc_out 1x1 weight, transposed)
    # w7_ref:   (2, 49)       SMEM   (7x7 conv taps: row 0 -> avg map, row 1 -> max map)
    # pad_avg/pad_max: (Hp, Wp) VMEM zero-padded conv inputs (Hp/Wp rounded up to 8/128)
    # comb_ref: (H, Wp)       VMEM   staging buffer for the per-kw shifted accumulators
    x = x_ref[0]                                      # (H, W, C)
    H, W, C = x.shape

    # ---- channel attention --------------------------------------------------
    col_sum = jnp.sum(x, axis=0)                      # (W, C)  VPU adds over H
    col_max = jnp.max(x, axis=0)                      # (W, C)
    ones_w = jnp.ones((1, W), jnp.float32)
    avg_vec = jnp.dot(ones_w, col_sum,                # (1, C)  sublane reduce on the MXU
                      preferred_element_type=jnp.float32) * (1.0 / (H * W))
    max_vec = jnp.max(col_max, axis=0, keepdims=True)               # (1, C)

    # stack avg/max and run the bottleneck MLP once (2 matmuls instead of 4)
    row_ids = lax.broadcasted_iota(jnp.int32, (2, C), 0)
    pooled = jnp.where(row_ids == 0, avg_vec, max_vec)              # (2, C)
    hmid = jnp.maximum(
        jnp.dot(pooled, wi_ref[...], preferred_element_type=jnp.float32), 0.0)
    ca2 = jax.nn.sigmoid(
        jnp.dot(hmid, wo_ref[...], preferred_element_type=jnp.float32))  # (2, C)
    # sigmoid(mlp(avg)) + sigmoid(mlp(max))  (matches the PyTorch ChannelAttention)
    ca = jnp.dot(jnp.ones((1, 2), jnp.float32), ca2,
                 preferred_element_type=jnp.float32)                # (1, C)

    out1 = x * ca.reshape(1, 1, C)                                  # (H, W, C)

    # ---- spatial attention ---------------------------------------------------
    avg_map = jnp.sum(out1, axis=-1) * (1.0 / C)      # (H, W)
    max_map = jnp.max(out1, axis=-1)                  # (H, W)

    # zero-padded conv inputs (buffers are re-initialised every step so the batch
    # grid axis can stay "parallel" across cores)
    pad_avg[...] = jnp.zeros_like(pad_avg)
    pad_max[...] = jnp.zeros_like(pad_max)
    pad_avg[PAD:PAD + H, PAD:PAD + W] = avg_map
    pad_max[PAD:PAD + H, PAD:PAD + W] = max_map

    Wp = pad_avg.shape[1]
    # Accumulate one full-lane-width combination per kw; the row (kh) shift is folded
    # into the slab load offset, so only 2 unaligned loads per kh are needed.
    combs = [jnp.zeros((H, Wp), jnp.float32) for _ in range(KSIZE)]
    for kh in range(KSIZE):
        a = pad_avg[kh:kh + H, :]                     # (H, Wp)
        m = pad_max[kh:kh + H, :]
        for kw in range(KSIZE):
            tap = kh * KSIZE + kw
            combs[kw] = combs[kw] + w7_ref[0, tap] * a + w7_ref[1, tap] * m

    # Apply the 7 column shifts once each (staged through VMEM so each shift is a
    # single unaligned window load; identical semantics to the direct 98-tap conv).
    acc = jnp.zeros((H, W), jnp.float32)
    for kw in range(KSIZE):
        comb_ref[...] = combs[kw]
        acc = acc + comb_ref[:, kw:kw + W]

    sa = jax.nn.sigmoid(acc)                          # (H, W)

    # ---- apply + residual ----------------------------------------------------
    o_ref[0] = out1 * sa[:, :, None] + x


@jax.jit
def cmba_block(x_nchw, w_fc_in, w_fc_out, w_conv7):
    """CMBABlock forward.

    x_nchw:   (N, C, H, W)          float32
    w_fc_in:  (C // ratio, C, 1, 1) float32   (nn.Conv2d 1x1, no bias)
    w_fc_out: (C, C // ratio, 1, 1) float32
    w_conv7:  (1, 2, 7, 7)          float32   (spatial-attention conv, no bias)
    returns   (N, C, H, W)          float32
    """
    N, C, H, W = x_nchw.shape
    Cr = w_fc_in.shape[0]

    x_nhwc = jnp.transpose(x_nchw, (0, 2, 3, 1))      # NCHW -> NHWC
    wi_t = w_fc_in.reshape(Cr, C).T                   # (C, Cr)
    wo_t = w_fc_out.reshape(C, Cr).T                  # (Cr, C)
    w7 = w_conv7.reshape(2, KSIZE * KSIZE)            # (2, 49)

    Hp = _round_up(H + 2 * PAD, 8)
    Wp = _round_up(W + 2 * PAD, 128)

    # VMEM budget: double-buffered input + output blocks + scratch + slack.
    vmem_limit = 4 * (H * W * C * 4) + (2 * Hp * Wp + H * Wp) * 4 + (4 << 20)
    vmem_limit = min(max(vmem_limit, 32 * 1024 * 1024), 128 * 1024 * 1024)

    out_nhwc = pl.pallas_call(
        _cbam_kernel,
        out_shape=jax.ShapeDtypeStruct((N, H, W, C), jnp.float32),
        grid=(N,),
        in_specs=[
            pl.BlockSpec((1, H, W, C), lambda n: (n, 0, 0, 0)),
            pl.BlockSpec((C, Cr), lambda n: (0, 0)),
            pl.BlockSpec((Cr, C), lambda n: (0, 0)),
            pl.BlockSpec(memory_space=pltpu.MemorySpace.SMEM),
        ],
        out_specs=pl.BlockSpec((1, H, W, C), lambda n: (n, 0, 0, 0)),
        scratch_shapes=[
            pltpu.VMEM((Hp, Wp), jnp.float32),
            pltpu.VMEM((Hp, Wp), jnp.float32),
            pltpu.VMEM((H, Wp), jnp.float32),
        ],
        compiler_params=pltpu.CompilerParams(
            dimension_semantics=("parallel",),
            vmem_limit_bytes=vmem_limit),
    )(x_nhwc, wi_t, wo_t, w7)

    return jnp.transpose(out_nhwc, (0, 3, 1, 2))      # NHWC -> NCHW


def cmba_block_ref(x, w_fc_in, w_fc_out, w_conv7):
    """Pure-JAX reference mirroring the PyTorch module (NCHW)."""
    C = x.shape[1]
    Cr = w_fc_in.shape[0]
    w_in = w_fc_in.reshape(Cr, C)
    w_out = w_fc_out.reshape(C, Cr)

    avg = jnp.mean(x, axis=(2, 3), keepdims=True)                 # (N, C, 1, 1)
    mx = jnp.max(x, axis=(2, 3), keepdims=True)

    def mlp(v):
        h = jax.nn.relu(jnp.einsum('nchw,oc->nohw', v, w_in))
        return jax.nn.sigmoid(jnp.einsum('nchw,oc->nohw', h, w_out))

    ca = mlp(avg) + mlp(mx)
    out1 = x * ca

    avg_map = jnp.mean(out1, axis=1, keepdims=True)
    max_map = jnp.max(out1, axis=1, keepdims=True)
    smap = jnp.concatenate([avg_map, max_map], axis=1)            # (N, 2, H, W)
    conv = jax.lax.conv_general_dilated(
        smap, w_conv7, window_strides=(1, 1),
        padding=((PAD, PAD), (PAD, PAD)),
        dimension_numbers=('NCHW', 'OIHW', 'NCHW'))
    sa = jax.nn.sigmoid(conv)
    return out1 * sa + x


if __name__ == "__main__":
    N, C, H, W = 2, 32, 16, 16
    ratio = 16
    Cr = C // ratio

    key = jax.random.PRNGKey(0)
    kx, k1, k2, k3 = jax.random.split(key, 4)

    x = jax.random.normal(kx, (N, C, H, W), jnp.float32)
    # deterministic kaiming-like init (fan_out scaling), no checkpoint loading
    w_fc_in = jax.random.normal(k1, (Cr, C, 1, 1), jnp.float32) * (2.0 / Cr) ** 0.5
    w_fc_out = jax.random.normal(k2, (C, Cr, 1, 1), jnp.float32) * (2.0 / C) ** 0.5
    w_conv7 = jax.random.normal(k3, (1, 2, KSIZE, KSIZE), jnp.float32) * (
        2.0 / (1 * KSIZE * KSIZE)) ** 0.5

    out = cmba_block(x, w_fc_in, w_fc_out, w_conv7)
    out = jax.block_until_ready(out)

    ref = cmba_block_ref(x, w_fc_in, w_fc_out, w_conv7)
    assert out.shape == (N, C, H, W)
    assert jnp.allclose(out, ref, rtol=1e-4, atol=1e-4), (
        float(jnp.max(jnp.abs(out - ref))))

    print("KERNEL_OK")
</pallas_src>

<mosaic_0001>
module attributes {stable_mosaic.version = 11 : i64} {
  func.func @_cbam_kernel(%arg0: i32, %arg1: memref<1x16x16x32xf32, #tpu.memory_space<vmem>>, %arg2: memref<32x2xf32, #tpu.memory_space<vmem>>, %arg3: memref<2x32xf32, #tpu.memory_space<vmem>>, %arg4: memref<2x49xf32, #tpu.memory_space<smem>>, %arg5: memref<1x16x16x32xf32, #tpu.memory_space<vmem>>, %arg6: memref<24x128xf32, #tpu.memory_space<vmem>>, %arg7: memref<24x128xf32, #tpu.memory_space<vmem>>, %arg8: memref<16x128xf32, #tpu.memory_space<vmem>>) attributes {dimension_semantics = [#tpu.dimension_semantics<parallel>], iteration_bounds = array<i64: 2>, scalar_prefetch = 0 : i64, scratch_operands = 3 : i64, tpu.core_type = #tpu.core_type<tc>, window_params = [{transform_indices = @transform_0, window_bounds = array<i64: 1, 16, 16, 32>}, {pipeline_mode = #tpu.pipeline_mode<synchronous>, transform_indices = @transform_1, window_bounds = array<i64: 32, 2>}, {pipeline_mode = #tpu.pipeline_mode<synchronous>, transform_indices = @transform_2, window_bounds = array<i64: 2, 32>}, {transform_indices = @transform_3, window_bounds = array<i64: 2, 49>}, {transform_indices = @transform_4, window_bounds = array<i64: 1, 16, 16, 32>}]} {
    %c0 = arith.constant 0 : index
    %c0_0 = arith.constant 0 : index
    %c0_1 = arith.constant 0 : index
    %c0_2 = arith.constant 0 : index
    %0 = vector.load %arg1[%c0, %c0_0, %c0_1, %c0_2] : memref<1x16x16x32xf32, #tpu.memory_space<vmem>>, vector<1x16x16x32xf32>
    %1 = vector.shape_cast %0 : vector<1x16x16x32xf32> to vector<16x16x32xf32>
    %cst = arith.constant dense<0.000000e+00> : vector<16x32xf32>
    %2 = vector.multi_reduction <add>, %1, %cst [0] : vector<16x16x32xf32> to vector<16x32xf32>
    %cst_3 = arith.constant dense<0xFF800000> : vector<16x32xf32>
    %3 = vector.multi_reduction <maximumf>, %1, %cst_3 [0] : vector<16x16x32xf32> to vector<16x32xf32>
    %cst_4 = arith.constant 1.000000e+00 : f32
    %4 = vector.broadcast %cst_4 : f32 to vector<1x16xf32>
    %cst_5 = arith.constant dense<0.000000e+00> : vector<1x32xf32>
    %5 = tpu.matmul %4, %2, %cst_5 {dimension_numbers = #tpu.dot_dimension_numbers<[1], [0], [0], [1], [0, 0, 1, 1], [], []>} : vector<1x16xf32>, vector<16x32xf32>, vector<1x32xf32> -> vector<1x32xf32>
    %cst_6 = arith.constant 3.906250e-03 : f32
    %6 = vector.broadcast %cst_6 : f32 to vector<1x32xf32>
    %7 = arith.mulf %5, %6 : vector<1x32xf32>
    %cst_7 = arith.constant dense<0xFF800000> : vector<32xf32>
    %8 = vector.multi_reduction <maximumf>, %3, %cst_7 [0] : vector<16x32xf32> to vector<32xf32>
    %9 = vector.shape_cast %8 : vector<32xf32> to vector<1x32xf32>
    %10 = tpu.iota {dimensions = array<i32: 0>} : vector<2x32xi32>
    %c0_i32 = arith.constant 0 : i32
    %11 = vector.broadcast %c0_i32 : i32 to vector<2x32xi32>
    %12 = arith.cmpi eq, %10, %11 : vector<2x32xi32>
    %13 = vector.shape_cast %7 : vector<1x32xf32> to vector<1x32xf32>
    %14 = vector.broadcast %13 : vector<1x32xf32> to vector<2x32xf32>
    %15 = vector.shape_cast %9 : vector<1x32xf32> to vector<1x32xf32>
    %16 = vector.broadcast %15 : vector<1x32xf32> to vector<2x32xf32>
    %17 = arith.select %12, %14, %16 : vector<2x32xi1>, vector<2x32xf32>
    %c0_8 = arith.constant 0 : index
    %c0_9 = arith.constant 0 : index
    %18 = vector.load %arg2[%c0_8, %c0_9] : memref<32x2xf32, #tpu.memory_space<vmem>>, vector<32x2xf32>
    %cst_10 = arith.constant dense<0.000000e+00> : vector<2x2xf32>
    %19 = tpu.matmul %17, %18, %cst_10 {dimension_numbers = #tpu.dot_dimension_numbers<[1], [0], [0], [1], [0, 0, 1, 1], [], []>} : vector<2x32xf32>, vector<32x2xf32>, vector<2x2xf32> -> vector<2x2xf32>
    %cst_11 = arith.constant 0.000000e+00 : f32
    %20 = vector.broadcast %cst_11 : f32 to vector<2x2xf32>
    %21 = arith.maximumf %19, %20 : vector<2x2xf32>
    %c0_12 = arith.constant 0 : index
    %c0_13 = arith.constant 0 : index
    %22 = vector.load %arg3[%c0_12, %c0_13] : memref<2x32xf32, #tpu.memory_space<vmem>>, vector<2x32xf32>
    %cst_14 = arith.constant dense<0.000000e+00> : vector<2x32xf32>
    %23 = tpu.matmul %21, %22, %cst_14 {dimension_numbers = #tpu.dot_dimension_numbers<[1], [0], [0], [1], [0, 0, 1, 1], [], []>} : vector<2x2xf32>, vector<2x32xf32>, vector<2x32xf32> -> vector<2x32xf32>
    %24 = arith.negf %23 : vector<2x32xf32>
    %25 = math.exp %24 : vector<2x32xf32>
    %cst_15 = arith.constant 1.000000e+00 : f32
    %26 = vector.broadcast %cst_15 : f32 to vector<2x32xf32>
    %27 = arith.addf %26, %25 : vector<2x32xf32>
    %28 = arith.divf %26, %27 : vector<2x32xf32>
    %cst_16 = arith.constant 1.000000e+00 : f32
    %29 = vector.broadcast %cst_16 : f32 to vector<1x2xf32>
    %cst_17 = arith.constant dense<0.000000e+00> : vector<1x32xf32>
    %30 = tpu.matmul %29, %28, %cst_17 {dimension_numbers = #tpu.dot_dimension_numbers<[1], [0], [0], [1], [0, 0, 1, 1], [], []>} : vector<1x2xf32>, vector<2x32xf32>, vector<1x32xf32> -> vector<1x32xf32>
    %31 = vector.shape_cast %30 : vector<1x32xf32> to vector<1x1x32xf32>
    %32 = vector.broadcast %31 : vector<1x1x32xf32> to vector<16x16x32xf32>
    %33 = arith.mulf %1, %32 : vector<16x16x32xf32>
    %cst_18 = arith.constant dense<0.000000e+00> : vector<16x16xf32>
    %34 = vector.multi_reduction <add>, %33, %cst_18 [2] : vector<16x16x32xf32> to vector<16x16xf32>
    %cst_19 = arith.constant 3.125000e-02 : f32
    %35 = vector.broadcast %cst_19 : f32 to vector<16x16xf32>
    %36 = arith.mulf %34, %35 : vector<16x16xf32>
    %cst_20 = arith.constant dense<0xFF800000> : vector<16x16xf32>
    %37 = vector.multi_reduction <maximumf>, %33, %cst_20 [2] : vector<16x16x32xf32> to vector<16x16xf32>
    %cst_21 = arith.constant 0.000000e+00 : f32
    %38 = vector.broadcast %cst_21 : f32 to vector<24x128xf32>
    %c0_22 = arith.constant 0 : index
    %c0_23 = arith.constant 0 : index
    %39 = vector.load %arg6[%c0_22, %c0_23] : memref<24x128xf32, #tpu.memory_space<vmem>>, vector<24x128xf32>
    tpu.vector_store %arg6[%c0_22, %c0_23], %38 {strides = array<i32>} : memref<24x128xf32, #tpu.memory_space<vmem>>, vector<24x128xf32>,
    %cst_24 = arith.constant 0.000000e+00 : f32
    %40 = vector.broadcast %cst_24 : f32 to vector<24x128xf32>
    %c0_25 = arith.constant 0 : index
    %c0_26 = arith.constant 0 : index
    %41 = vector.load %arg7[%c0_25, %c0_26] : memref<24x128xf32, #tpu.memory_space<vmem>>, vector<24x128xf32>
    tpu.vector_store %arg7[%c0_25, %c0_26], %40 {strides = array<i32>} : memref<24x128xf32, #tpu.memory_space<vmem>>, vector<24x128xf32>,
    %c3 = arith.constant 3 : index
    %c3_27 = arith.constant 3 : index
    %42 = vector.load %arg6[%c3, %c3_27] : memref<24x128xf32, #tpu.memory_space<vmem>>, vector<16x16xf32>
    tpu.vector_store %arg6[%c3, %c3_27], %36 {strides = array<i32>} : memref<24x128xf32, #tpu.memory_space<vmem>>, vector<16x16xf32>,
    %c3_28 = arith.constant 3 : index
    %c3_29 = arith.constant 3 : index
    %43 = vector.load %arg7[%c3_28, %c3_29] : memref<24x128xf32, #tpu.memory_space<vmem>>, vector<16x16xf32>
    tpu.vector_store %arg7[%c3_28, %c3_29], %37 {strides = array<i32>} : memref<24x128xf32, #tpu.memory_space<vmem>>, vector<16x16xf32>,
    %cst_30 = arith.constant 0.000000e+00 : f32
    %44 = vector.broadcast %cst_30 : f32 to vector<16x128xf32>
    %cst_31 = arith.constant 0.000000e+00 : f32
    %45 = vector.broadcast %cst_31 : f32 to vector<16x128xf32>
    %cst_32 = arith.constant 0.000000e+00 : f32
    %46 = vector.broadcast %cst_32 : f32 to vector<16x128xf32>
    %cst_33 = arith.constant 0.000000e+00 : f32
    %47 = vector.broadcast %cst_33 : f32 to vector<16x128xf32>
    %cst_34 = arith.constant 0.000000e+00 : f32
    %48 = vector.broadcast %cst_34 : f32 to vector<16x128xf32>
    %cst_35 = arith.constant 0.000000e+00 : f32
    %49 = vector.broadcast %cst_35 : f32 to vector<16x128xf32>
    %cst_36 = arith.constant 0.000000e+00 : f32
    %50 = vector.broadcast %cst_36 : f32 to vector<16x128xf32>
    %c0_37 = arith.constant 0 : index
    %c0_38 = arith.constant 0 : index
    %51 = vector.load %arg6[%c0_37, %c0_38] : memref<24x128xf32, #tpu.memory_space<vmem>>, vector<16x128xf32>
    %c0_39 = arith.constant 0 : index
    %c0_40 = arith.constant 0 : index
    %52 = vector.load %arg7[%c0_39, %c0_40] : memref<24x128xf32, #tpu.memory_space<vmem>>, vector<16x128xf32>
    %c0_41 = arith.constant 0 : index
    %c0_42 = arith.constant 0 : index
    %53 = memref.load %arg4[%c0_41, %c0_42] : memref<2x49xf32, #tpu.memory_space<smem>>
    %54 = vector.broadcast %53 : f32 to vector<16x128xf32>
    %55 = arith.mulf %54, %51 : vector<16x128xf32>
    %56 = arith.addf %44, %55 : vector<16x128xf32>
    %c1 = arith.constant 1 : index
    %c0_43 = arith.constant 0 : index
    %57 = memref.load %arg4[%c1, %c0_43] : memref<2x49xf32, #tpu.memory_space<smem>>
    %58 = vector.broadcast %57 : f32 to vector<16x128xf32>
    %59 = arith.mulf %58, %52 : vector<16x128xf32>
    %60 = arith.addf %56, %59 : vector<16x128xf32>
    %c0_44 = arith.constant 0 : index
    %c1_45 = arith.constant 1 : index
    %61 = memref.load %arg4[%c0_44, %c1_45] : memref<2x49xf32, #tpu.memory_space<smem>>
    %62 = vector.broadcast %61 : f32 to vector<16x128xf32>
    %63 = arith.mulf %62, %51 : vector<16x128xf32>
    %64 = arith.addf %45, %63 : vector<16x128xf32>
    %c1_46 = arith.constant 1 : index
    %c1_47 = arith.constant 1 : index
    %65 = memref.load %arg4[%c1_46, %c1_47] : memref<2x49xf32, #tpu.memory_space<smem>>
    %66 = vector.broadcast %65 : f32 to vector<16x128xf32>
    %67 = arith.mulf %66, %52 : vector<16x128xf32>
    %68 = arith.addf %64, %67 : vector<16x128xf32>
    %c0_48 = arith.constant 0 : index
    %c2 = arith.constant 2 : index
    %69 = memref.load %arg4[%c0_48, %c2] : memref<2x49xf32, #tpu.memory_space<smem>>
    %70 = vector.broadcast %69 : f32 to vector<16x128xf32>
    %71 = arith.mulf %70, %51 : vector<16x128xf32>
    %72 = arith.addf %46, %71 : vector<16x128xf32>
    %c1_49 = arith.constant 1 : index
    %c2_50 = arith.constant 2 : index
    %73 = memref.load %arg4[%c1_49, %c2_50] : memref<2x49xf32, #tpu.memory_space<smem>>
    %74 = vector.broadcast %73 : f32 to vector<16x128xf32>
    %75 = arith.mulf %74, %52 : vector<16x128xf32>
    %76 = arith.addf %72, %75 : vector<16x128xf32>
    %c0_51 = arith.constant 0 : index
    %c3_52 = arith.constant 3 : index
    %77 = memref.load %arg4[%c0_51, %c3_52] : memref<2x49xf32, #tpu.memory_space<smem>>
    %78 = vector.broadcast %77 : f32 to vector<16x128xf32>
    %79 = arith.mulf %78, %51 : vector<16x128xf32>
    %80 = arith.addf %47, %79 : vector<16x128xf32>
    %c1_53 = arith.constant 1 : index
    %c3_54 = arith.constant 3 : index
    %81 = memref.load %arg4[%c1_53, %c3_54] : memref<2x49xf32, #tpu.memory_space<smem>>
    %82 = vector.broadcast %81 : f32 to vector<16x128xf32>
    %83 = arith.mulf %82, %52 : vector<16x128xf32>
    %84 = arith.addf %80, %83 : vector<16x128xf32>
    %c0_55 = arith.constant 0 : index
    %c4 = arith.constant 4 : index
    %85 = memref.load %arg4[%c0_55, %c4] : memref<2x49xf32, #tpu.memory_space<smem>>
    %86 = vector.broadcast %85 : f32 to vector<16x128xf32>
    %87 = arith.mulf %86, %51 : vector<16x128xf32>
    %88 = arith.addf %48, %87 : vector<16x128xf32>
    %c1_56 = arith.constant 1 : index
    %c4_57 = arith.constant 4 : index
    %89 = memref.load %arg4[%c1_56, %c4_57] : memref<2x49xf32, #tpu.memory_space<smem>>
    %90 = vector.broadcast %89 : f32 to vector<16x128xf32>
    %91 = arith.mulf %90, %52 : vector<16x128xf32>
    %92 = arith.addf %88, %91 : vector<16x128xf32>
    %c0_58 = arith.constant 0 : index
    %c5 = arith.constant 5 : index
    %93 = memref.load %arg4[%c0_58, %c5] : memref<2x49xf32, #tpu.memory_space<smem>>
    %94 = vector.broadcast %93 : f32 to vector<16x128xf32>
    %95 = arith.mulf %94, %51 : vector<16x128xf32>
    %96 = arith.addf %49, %95 : vector<16x128xf32>
    %c1_59 = arith.constant 1 : index
    %c5_60 = arith.constant 5 : index
    %97 = memref.load %arg4[%c1_59, %c5_60] : memref<2x49xf32, #tpu.memory_space<smem>>
    %98 = vector.broadcast %97 : f32 to vector<16x128xf32>
    %99 = arith.mulf %98, %52 : vector<16x128xf32>
    %100 = arith.addf %96, %99 : vector<16x128xf32>
    %c0_61 = arith.constant 0 : index
    %c6 = arith.constant 6 : index
    %101 = memref.load %arg4[%c0_61, %c6] : memref<2x49xf32, #tpu.memory_space<smem>>
    %102 = vector.broadcast %101 : f32 to vector<16x128xf32>
    %103 = arith.mulf %102, %51 : vector<16x128xf32>
    %104 = arith.addf %50, %103 : vector<16x128xf32>
    %c1_62 = arith.constant 1 : index
    %c6_63 = arith.constant 6 : index
    %105 = memref.load %arg4[%c1_62, %c6_63] : memref<2x49xf32, #tpu.memory_space<smem>>
    %106 = vector.broadcast %105 : f32 to vector<16x128xf32>
    %107 = arith.mulf %106, %52 : vector<16x128xf32>
    %108 = arith.addf %104, %107 : vector<16x128xf32>
    %c1_64 = arith.constant 1 : index
    %c0_65 = arith.constant 0 : index
    %109 = vector.load %arg6[%c1_64, %c0_65] : memref<24x128xf32, #tpu.memory_space<vmem>>, vector<16x128xf32>
    %c1_66 = arith.constant 1 : index
    %c0_67 = arith.constant 0 : index
    %110 = vector.load %arg7[%c1_66, %c0_67] : memref<24x128xf32, #tpu.memory_space<vmem>>, vector<16x128xf32>
    %c0_68 = arith.constant 0 : index
    %c7 = arith.constant 7 : index
    %111 = memref.load %arg4[%c0_68, %c7] : memref<2x49xf32, #tpu.memory_space<smem>>
    %112 = vector.broadcast %111 : f32 to vector<16x128xf32>
    %113 = arith.mulf %112, %109 : vector<16x128xf32>
    %114 = arith.addf %60, %113 : vector<16x128xf32>
    %c1_69 = arith.constant 1 : index
    %c7_70 = arith.constant 7 : index
    %115 = memref.load %arg4[%c1_69, %c7_70] : memref<2x49xf32, #tpu.memory_space<smem>>
    %116 = vector.broadcast %115 : f32 to vector<16x128xf32>
    %117 = arith.mulf %116, %110 : vector<16x128xf32>
    %118 = arith.addf %114, %117 : vector<16x128xf32>
    %c0_71 = arith.constant 0 : index
    %c8 = arith.constant 8 : index
    %119 = memref.load %arg4[%c0_71, %c8] : memref<2x49xf32, #tpu.memory_space<smem>>
    %120 = vector.broadcast %119 : f32 to vector<16x128xf32>
    %121 = arith.mulf %120, %109 : vector<16x128xf32>
    %122 = arith.addf %68, %121 : vector<16x128xf32>
    %c1_72 = arith.constant 1 : index
    %c8_73 = arith.constant 8 : index
    %123 = memref.load %arg4[%c1_72, %c8_73] : memref<2x49xf32, #tpu.memory_space<smem>>
    %124 = vector.broadcast %123 : f32 to vector<16x128xf32>
    %125 = arith.mulf %124, %110 : vector<16x128xf32>
    %126 = arith.addf %122, %125 : vector<16x128xf32>
    %c0_74 = arith.constant 0 : index
    %c9 = arith.constant 9 : index
    %127 = memref.load %arg4[%c0_74, %c9] : memref<2x49xf32, #tpu.memory_space<smem>>
    %128 = vector.broadcast %127 : f32 to vector<16x128xf32>
    %129 = arith.mulf %128, %109 : vector<16x128xf32>
    %130 = arith.addf %76, %129 : vector<16x128xf32>
    %c1_75 = arith.constant 1 : index
    %c9_76 = arith.constant 9 : index
    %131 = memref.load %arg4[%c1_75, %c9_76] : memref<2x49xf32, #tpu.memory_space<smem>>
    %132 = vector.broadcast %131 : f32 to vector<16x128xf32>
    %133 = arith.mulf %132, %110 : vector<16x128xf32>
    %134 = arith.addf %130, %133 : vector<16x128xf32>
    %c0_77 = arith.constant 0 : index
    %c10 = arith.constant 10 : index
    %135 = memref.load %arg4[%c0_77, %c10] : memref<2x49xf32, #tpu.memory_space<smem>>
    %136 = vector.broadcast %135 : f32 to vector<16x128xf32>
    %137 = arith.mulf %136, %109 : vector<16x128xf32>
    %138 = arith.addf %84, %137 : vector<16x128xf32>
    %c1_78 = arith.constant 1 : index
    %c10_79 = arith.constant 10 : index
    %139 = memref.load %arg4[%c1_78, %c10_79] : memref<2x49xf32, #tpu.memory_space<smem>>
    %140 = vector.broadcast %139 : f32 to vector<16x128xf32>
    %141 = arith.mulf %140, %110 : vector<16x128xf32>
    %142 = arith.addf %138, %141 : vector<16x128xf32>
    %c0_80 = arith.constant 0 : index
    %c11 = arith.constant 11 : index
    %143 = memref.load %arg4[%c0_80, %c11] : memref<2x49xf32, #tpu.memory_space<smem>>
    %144 = vector.broadcast %143 : f32 to vector<16x128xf32>
    %145 = arith.mulf %144, %109 : vector<16x128xf32>
    %146 = arith.addf %92, %145 : vector<16x128xf32>
    %c1_81 = arith.constant 1 : index
    %c11_82 = arith.constant 11 : index
    %147 = memref.load %arg4[%c1_81, %c11_82] : memref<2x49xf32, #tpu.memory_space<smem>>
    %148 = vector.broadcast %147 : f32 to vector<16x128xf32>
    %149 = arith.mulf %148, %110 : vector<16x128xf32>
    %150 = arith.addf %146, %149 : vector<16x128xf32>
    %c0_83 = arith.constant 0 : index
    %c12 = arith.constant 12 : index
    %151 = memref.load %arg4[%c0_83, %c12] : memref<2x49xf32, #tpu.memory_space<smem>>
    %152 = vector.broadcast %151 : f32 to vector<16x128xf32>
    %153 = arith.mulf %152, %109 : vector<16x128xf32>
    %154 = arith.addf %100, %153 : vector<16x128xf32>
    %c1_84 = arith.constant 1 : index
    %c12_85 = arith.constant 12 : index
    %155 = memref.load %arg4[%c1_84, %c12_85] : memref<2x49xf32, #tpu.memory_space<smem>>
    %156 = vector.broadcast %155 : f32 to vector<16x128xf32>
    %157 = arith.mulf %156, %110 : vector<16x128xf32>
    %158 = arith.addf %154, %157 : vector<16x128xf32>
    %c0_86 = arith.constant 0 : index
    %c13 = arith.constant 13 : index
    %159 = memref.load %arg4[%c0_86, %c13] : memref<2x49xf32, #tpu.memory_space<smem>>
    %160 = vector.broadcast %159 : f32 to vector<16x128xf32>
    %161 = arith.mulf %160, %109 : vector<16x128xf32>
    %162 = arith.addf %108, %161 : vector<16x128xf32>
    %c1_87 = arith.constant 1 : index
    %c13_88 = arith.constant 13 : index
    %163 = memref.load %arg4[%c1_87, %c13_88] : memref<2x49xf32, #tpu.memory_space<smem>>
    %164 = vector.broadcast %163 : f32 to vector<16x128xf32>
    %165 = arith.mulf %164, %110 : vector<16x128xf32>
    %166 = arith.addf %162, %165 : vector<16x128xf32>
    %c2_89 = arith.constant 2 : index
    %c0_90 = arith.constant 0 : index
    %167 = vector.load %arg6[%c2_89, %c0_90] : memref<24x128xf32, #tpu.memory_space<vmem>>, vector<16x128xf32>
    %c2_91 = arith.constant 2 : index
    %c0_92 = arith.constant 0 : index
    %168 = vector.load %arg7[%c2_91, %c0_92] : memref<24x128xf32, #tpu.memory_space<vmem>>, vector<16x128xf32>
    %c0_93 = arith.constant 0 : index
    %c14 = arith.constant 14 : index
    %169 = memref.load %arg4[%c0_93, %c14] : memref<2x49xf32, #tpu.memory_space<smem>>
    %170 = vector.broadcast %169 : f32 to vector<16x128xf32>
    %171 = arith.mulf %170, %167 : vector<16x128xf32>
    %172 = arith.addf %118, %171 : vector<16x128xf32>
    %c1_94 = arith.constant 1 : index
    %c14_95 = arith.constant 14 : index
    %173 = memref.load %arg4[%c1_94, %c14_95] : memref<2x49xf32, #tpu.memory_space<smem>>
    %174 = vector.broadcast %173 : f32 to vector<16x128xf32>
    %175 = arith.mulf %174, %168 : vector<16x128xf32>
    %176 = arith.addf %172, %175 : vector<16x128xf32>
    %c0_96 = arith.constant 0 : index
    %c15 = arith.constant 15 : index
    %177 = memref.load %arg4[%c0_96, %c15] : memref<2x49xf32, #tpu.memory_space<smem>>
    %178 = vector.broadcast %177 : f32 to vector<16x128xf32>
    %179 = arith.mulf %178, %167 : vector<16x128xf32>
    %180 = arith.addf %126, %179 : vector<16x128xf32>
    %c1_97 = arith.constant 1 : index
    %c15_98 = arith.constant 15 : index
    %181 = memref.load %arg4[%c1_97, %c15_98] : memref<2x49xf32, #tpu.memory_space<smem>>
    %182 = vector.broadcast %181 : f32 to vector<16x128xf32>
    %183 = arith.mulf %182, %168 : vector<16x128xf32>
    %184 = arith.addf %180, %183 : vector<16x128xf32>
    %c0_99 = arith.constant 0 : index
    %c16 = arith.constant 16 : index
    %185 = memref.load %arg4[%c0_99, %c16] : memref<2x49xf32, #tpu.memory_space<smem>>
    %186 = vector.broadcast %185 : f32 to vector<16x128xf32>
    %187 = arith.mulf %186, %167 : vector<16x128xf32>
    %188 = arith.addf %134, %187 : vector<16x128xf32>
    %c1_100 = arith.constant 1 : index
    %c16_101 = arith.constant 16 : index
    %189 = memref.load %arg4[%c1_100, %c16_101] : memref<2x49xf32, #tpu.memory_space<smem>>
    %190 = vector.broadcast %189 : f32 to vector<16x128xf32>
    %191 = arith.mulf %190, %168 : vector<16x128xf32>
    %192 = arith.addf %188, %191 : vector<16x128xf32>
    %c0_102 = arith.constant 0 : index
    %c17 = arith.constant 17 : index
    %193 = memref.load %arg4[%c0_102, %c17] : memref<2x49xf32, #tpu.memory_space<smem>>
    %194 = vector.broadcast %193 : f32 to vector<16x128xf32>
    %195 = arith.mulf %194, %167 : vector<16x128xf32>
    %196 = arith.addf %142, %195 : vector<16x128xf32>
    %c1_103 = arith.constant 1 : index
    %c17_104 = arith.constant 17 : index
    %197 = memref.load %arg4[%c1_103, %c17_104] : memref<2x49xf32, #tpu.memory_space<smem>>
    %198 = vector.broadcast %197 : f32 to vector<16x128xf32>
    %199 = arith.mulf %198, %168 : vector<16x128xf32>
    %200 = arith.addf %196, %199 : vector<16x128xf32>
    %c0_105 = arith.constant 0 : index
    %c18 = arith.constant 18 : index
    %201 = memref.load %arg4[%c0_105, %c18] : memref<2x49xf32, #tpu.memory_space<smem>>
    %202 = vector.broadcast %201 : f32 to vector<16x128xf32>
    %203 = arith.mulf %202, %167 : vector<16x128xf32>
    %204 = arith.addf %150, %203 : vector<16x128xf32>
    %c1_106 = arith.constant 1 : index
    %c18_107 = arith.constant 18 : index
    %205 = memref.load %arg4[%c1_106, %c18_107] : memref<2x49xf32, #tpu.memory_space<smem>>
    %206 = vector.broadcast %205 : f32 to vector<16x128xf32>
    %207 = arith.mulf %206, %168 : vector<16x128xf32>
    %208 = arith.addf %204, %207 : vector<16x128xf32>
    %c0_108 = arith.constant 0 : index
    %c19 = arith.constant 19 : index
    %209 = memref.load %arg4[%c0_108, %c19] : memref<2x49xf32, #tpu.memory_space<smem>>
    %210 = vector.broadcast %209 : f32 to vector<16x128xf32>
    %211 = arith.mulf %210, %167 : vector<16x128xf32>
    %212 = arith.addf %158, %211 : vector<16x128xf32>
    %c1_109 = arith.constant 1 : index
    %c19_110 = arith.constant 19 : index
    %213 = memref.load %arg4[%c1_109, %c19_110] : memref<2x49xf32, #tpu.memory_space<smem>>
    %214 = vector.broadcast %213 : f32 to vector<16x128xf32>
    %215 = arith.mulf %214, %168 : vector<16x128xf32>
    %216 = arith.addf %212, %215 : vector<16x128xf32>
    %c0_111 = arith.constant 0 : index
    %c20 = arith.constant 20 : index
    %217 = memref.load %arg4[%c0_111, %c20] : memref<2x49xf32, #tpu.memory_space<smem>>
    %218 = vector.broadcast %217 : f32 to vector<16x128xf32>
    %219 = arith.mulf %218, %167 : vector<16x128xf32>
    %220 = arith.addf %166, %219 : vector<16x128xf32>
    %c1_112 = arith.constant 1 : index
    %c20_113 = arith.constant 20 : index
    %221 = memref.load %arg4[%c1_112, %c20_113] : memref<2x49xf32, #tpu.memory_space<smem>>
    %222 = vector.broadcast %221 : f32 to vector<16x128xf32>
    %223 = arith.mulf %222, %168 : vector<16x128xf32>
    %224 = arith.addf %220, %223 : vector<16x128xf32>
    %c3_114 = arith.constant 3 : index
    %c0_115 = arith.constant 0 : index
    %225 = vector.load %arg6[%c3_114, %c0_115] : memref<24x128xf32, #tpu.memory_space<vmem>>, vector<16x128xf32>
    %c3_116 = arith.constant 3 : index
    %c0_117 = arith.constant 0 : index
    %226 = vector.load %arg7[%c3_116, %c0_117] : memref<24x128xf32, #tpu.memory_space<vmem>>, vector<16x128xf32>
    %c0_118 = arith.constant 0 : index
    %c21 = arith.constant 21 : index
    %227 = memref.load %arg4[%c0_118, %c21] : memref<2x49xf32, #tpu.memory_space<smem>>
    %228 = vector.broadcast %227 : f32 to vector<16x128xf32>
    %229 = arith.mulf %228, %225 : vector<16x128xf32>
    %230 = arith.addf %176, %229 : vector<16x128xf32>
    %c1_119 = arith.constant 1 : index
    %c21_120 = arith.constant 21 : index
    %231 = memref.load %arg4[%c1_119, %c21_120] : memref<2x49xf32, #tpu.memory_space<smem>>
    %232 = vector.broadcast %231 : f32 to vector<16x128xf32>
    %233 = arith.mulf %232, %226 : vector<16x128xf32>
    %234 = arith.addf %230, %233 : vector<16x128xf32>
    %c0_121 = arith.constant 0 : index
    %c22 = arith.constant 22 : index
    %235 = memref.load %arg4[%c0_121, %c22] : memref<2x49xf32, #tpu.memory_space<smem>>
    %236 = vector.broadcast %235 : f32 to vector<16x128xf32>
    %237 = arith.mulf %236, %225 : vector<16x128xf32>
    %238 = arith.addf %184, %237 : vector<16x128xf32>
    %c1_122 = arith.constant 1 : index
    %c22_123 = arith.constant 22 : index
    %239 = memref.load %arg4[%c1_122, %c22_123] : memref<2x49xf32, #tpu.memory_space<smem>>
    %240 = vector.broadcast %239 : f32 to vector<16x128xf32>
    %241 = arith.mulf %240, %226 : vector<16x128xf32>
    %242 = arith.addf %238, %241 : vector<16x128xf32>
    %c0_124 = arith.constant 0 : index
    %c23 = arith.constant 23 : index
    %243 = memref.load %arg4[%c0_124, %c23] : memref<2x49xf32, #tpu.memory_space<smem>>
    %244 = vector.broadcast %243 : f32 to vector<16x128xf32>
    %245 = arith.mulf %244, %225 : vector<16x128xf32>
    %246 = arith.addf %192, %245 : vector<16x128xf32>
    %c1_125 = arith.constant 1 : index
    %c23_126 = arith.constant 23 : index
    %247 = memref.load %arg4[%c1_125, %c23_126] : memref<2x49xf32, #tpu.memory_space<smem>>
    %248 = vector.broadcast %247 : f32 to vector<16x128xf32>
    %249 = arith.mulf %248, %226 : vector<16x128xf32>
    %250 = arith.addf %246, %249 : vector<16x128xf32>
    %c0_127 = arith.constant 0 : index
    %c24 = arith.constant 24 : index
    %251 = memref.load %arg4[%c0_127, %c24] : memref<2x49xf32, #tpu.memory_space<smem>>
    %252 = vector.broadcast %251 : f32 to vector<16x128xf32>
    %253 = arith.mulf %252, %225 : vector<16x128xf32>
    %254 = arith.addf %200, %253 : vector<16x128xf32>
    %c1_128 = arith.constant 1 : index
    %c24_129 = arith.constant 24 : index
    %255 = memref.load %arg4[%c1_128, %c24_129] : memref<2x49xf32, #tpu.memory_space<smem>>
    %256 = vector.broadcast %255 : f32 to vector<16x128xf32>
    %257 = arith.mulf %256, %226 : vector<16x128xf32>
    %258 = arith.addf %254, %257 : vector<16x128xf32>
    %c0_130 = arith.constant 0 : index
    %c25 = arith.constant 25 : index
    %259 = memref.load %arg4[%c0_130, %c25] : memref<2x49xf32, #tpu.memory_space<smem>>
    %260 = vector.broadcast %259 : f32 to vector<16x128xf32>
    %261 = arith.mulf %260, %225 : vector<16x128xf32>
    %262 = arith.addf %208, %261 : vector<16x128xf32>
    %c1_131 = arith.constant 1 : index
    %c25_132 = arith.constant 25 : index
    %263 = memref.load %arg4[%c1_131, %c25_132] : memref<2x49xf32, #tpu.memory_space<smem>>
    %264 = vector.broadcast %263 : f32 to vector<16x128xf32>
    %265 = arith.mulf %264, %226 : vector<16x128xf32>
    %266 = arith.addf %262, %265 : vector<16x128xf32>
    %c0_133 = arith.constant 0 : index
    %c26 = arith.constant 26 : index
    %267 = memref.load %arg4[%c0_133, %c26] : memref<2x49xf32, #tpu.memory_space<smem>>
    %268 = vector.broadcast %267 : f32 to vector<16x128xf32>
    %269 = arith.mulf %268, %225 : vector<16x128xf32>
    %270 = arith.addf %216, %269 : vector<16x128xf32>
    %c1_134 = arith.constant 1 : index
    %c26_135 = arith.constant 26 : index
    %271 = memref.load %arg4[%c1_134, %c26_135] : memref<2x49xf32, #tpu.memory_space<smem>>
    %272 = vector.broadcast %271 : f32 to vector<16x128xf32>
    %273 = arith.mulf %272, %226 : vector<16x128xf32>
    %274 = arith.addf %270, %273 : vector<16x128xf32>
    %c0_136 = arith.constant 0 : index
    %c27 = arith.constant 27 : index
    %275 = memref.load %arg4[%c0_136, %c27] : memref<2x49xf32, #tpu.memory_space<smem>>
    %276 = vector.broadcast %275 : f32 to vector<16x128xf32>
    %277 = arith.mulf %276, %225 : vector<16x128xf32>
    %278 = arith.addf %224, %277 : vector<16x128xf32>
    %c1_137 = arith.constant 1 : index
    %c27_138 = arith.constant 27 : index
    %279 = memref.load %arg4[%c1_137, %c27_138] : memref<2x49xf32, #tpu.memory_space<smem>>
    %280 = vector.broadcast %279 : f32 to vector<16x128xf32>
    %281 = arith.mulf %280, %226 : vector<16x128xf32>
    %282 = arith.addf %278, %281 : vector<16x128xf32>
    %c4_139 = arith.constant 4 : index
    %c0_140 = arith.constant 0 : index
    %283 = vector.load %arg6[%c4_139, %c0_140] : memref<24x128xf32, #tpu.memory_space<vmem>>, vector<16x128xf32>
    %c4_141 = arith.constant 4 : index
    %c0_142 = arith.constant 0 : index
    %284 = vector.load %arg7[%c4_141, %c0_142] : memref<24x128xf32, #tpu.memory_space<vmem>>, vector<16x128xf32>
    %c0_143 = arith.constant 0 : index
    %c28 = arith.constant 28 : index
    %285 = memref.load %arg4[%c0_143, %c28] : memref<2x49xf32, #tpu.memory_space<smem>>
    %286 = vector.broadcast %285 : f32 to vector<16x128xf32>
    %287 = arith.mulf %286, %283 : vector<16x128xf32>
    %288 = arith.addf %234, %287 : vector<16x128xf32>
    %c1_144 = arith.constant 1 : index
    %c28_145 = arith.constant 28 : index
    %289 = memref.load %arg4[%c1_144, %c28_145] : memref<2x49xf32, #tpu.memory_space<smem>>
    %290 = vector.broadcast %289 : f32 to vector<16x128xf32>
    %291 = arith.mulf %290, %284 : vector<16x128xf32>
    %292 = arith.addf %288, %291 : vector<16x128xf32>
    %c0_146 = arith.constant 0 : index
    %c29 = arith.constant 29 : index
    %293 = memref.load %arg4[%c0_146, %c29] : memref<2x49xf32, #tpu.memory_space<smem>>
    %294 = vector.broadcast %293 : f32 to vector<16x128xf32>
    %295 = arith.mulf %294, %283 : vector<16x128xf32>
    %296 = arith.addf %242, %295 : vector<16x128xf32>
    %c1_147 = arith.constant 1 : index
    %c29_148 = arith.constant 29 : index
    %297 = memref.load %arg4[%c1_147, %c29_148] : memref<2x49xf32, #tpu.memory_space<smem>>
    %298 = vector.broadcast %297 : f32 to vector<16x128xf32>
    %299 = arith.mulf %298, %284 : vector<16x128xf32>
    %300 = arith.addf %296, %299 : vector<16x128xf32>
    %c0_149 = arith.constant 0 : index
    %c30 = arith.constant 30 : index
    %301 = memref.load %arg4[%c0_149, %c30] : memref<2x49xf32, #tpu.memory_space<smem>>
    %302 = vector.broadcast %301 : f32 to vector<16x128xf32>
    %303 = arith.mulf %302, %283 : vector<16x128xf32>
    %304 = arith.addf %250, %303 : vector<16x128xf32>
    %c1_150 = arith.constant 1 : index
    %c30_151 = arith.constant 30 : index
    %305 = memref.load %arg4[%c1_150, %c30_151] : memref<2x49xf32, #tpu.memory_space<smem>>
    %306 = vector.broadcast %305 : f32 to vector<16x128xf32>
    %307 = arith.mulf %306, %284 : vector<16x128xf32>
    %308 = arith.addf %304, %307 : vector<16x128xf32>
    %c0_152 = arith.constant 0 : index
    %c31 = arith.constant 31 : index
    %309 = memref.load %arg4[%c0_152, %c31] : memref<2x49xf32, #tpu.memory_space<smem>>
    %310 = vector.broadcast %309 : f32 to vector<16x128xf32>
    %311 = arith.mulf %310, %283 : vector<16x128xf32>
    %312 = arith.addf %258, %311 : vector<16x128xf32>
    %c1_153 = arith.constant 1 : index
    %c31_154 = arith.constant 31 : index
    %313 = memref.load %arg4[%c1_153, %c31_154] : memref<2x49xf32, #tpu.memory_space<smem>>
    %314 = vector.broadcast %313 : f32 to vector<16x128xf32>
    %315 = arith.mulf %314, %284 : vector<16x128xf32>
    %316 = arith.addf %312, %315 : vector<16x128xf32>
    %c0_155 = arith.constant 0 : index
    %c32 = arith.constant 32 : index
    %317 = memref.load %arg4[%c0_155, %c32] : memref<2x49xf32, #tpu.memory_space<smem>>
    %318 = vector.broadcast %317 : f32 to vector<16x128xf32>
    %319 = arith.mulf %318, %283 : vector<16x128xf32>
    %320 = arith.addf %266, %319 : vector<16x128xf32>
    %c1_156 = arith.constant 1 : index
    %c32_157 = arith.constant 32 : index
    %321 = memref.load %arg4[%c1_156, %c32_157] : memref<2x49xf32, #tpu.memory_space<smem>>
    %322 = vector.broadcast %321 : f32 to vector<16x128xf32>
    %323 = arith.mulf %322, %284 : vector<16x128xf32>
    %324 = arith.addf %320, %323 : vector<16x128xf32>
    %c0_158 = arith.constant 0 : index
    %c33 = arith.constant 33 : index
    %325 = memref.load %arg4[%c0_158, %c33] : memref<2x49xf32, #tpu.memory_space<smem>>
    %326 = vector.broadcast %325 : f32 to vector<16x128xf32>
    %327 = arith.mulf %326, %283 : vector<16x128xf32>
    %328 = arith.addf %274, %327 : vector<16x128xf32>
    %c1_159 = arith.constant 1 : index
    %c33_160 = arith.constant 33 : index
    %329 = memref.load %arg4[%c1_159, %c33_160] : memref<2x49xf32, #tpu.memory_space<smem>>
    %330 = vector.broadcast %329 : f32 to vector<16x128xf32>
    %331 = arith.mulf %330, %284 : vector<16x128xf32>
    %332 = arith.addf %328, %331 : vector<16x128xf32>
    %c0_161 = arith.constant 0 : index
    %c34 = arith.constant 34 : index
    %333 = memref.load %arg4[%c0_161, %c34] : memref<2x49xf32, #tpu.memory_space<smem>>
    %334 = vector.broadcast %333 : f32 to vector<16x128xf32>
    %335 = arith.mulf %334, %283 : vector<16x128xf32>
    %336 = arith.addf %282, %335 : vector<16x128xf32>
    %c1_162 = arith.constant 1 : index
    %c34_163 = arith.constant 34 : index
    %337 = memref.load %arg4[%c1_162, %c34_163] : memref<2x49xf32, #tpu.memory_space<smem>>
    %338 = vector.broadcast %337 : f32 to vector<16x128xf32>
    %339 = arith.mulf %338, %284 : vector<16x128xf32>
    %340 = arith.addf %336, %339 : vector<16x128xf32>
    %c5_164 = arith.constant 5 : index
    %c0_165 = arith.constant 0 : index
    %341 = vector.load %arg6[%c5_164, %c0_165] : memref<24x128xf32, #tpu.memory_space<vmem>>, vector<16x128xf32>
    %c5_166 = arith.constant 5 : index
    %c0_167 = arith.constant 0 : index
    %342 = vector.load %arg7[%c5_166, %c0_167] : memref<24x128xf32, #tpu.memory_space<vmem>>, vector<16x128xf32>
    %c0_168 = arith.constant 0 : index
    %c35 = arith.constant 35 : index
    %343 = memref.load %arg4[%c0_168, %c35] : memref<2x49xf32, #tpu.memory_space<smem>>
    %344 = vector.broadcast %343 : f32 to vector<16x128xf32>
    %345 = arith.mulf %344, %341 : vector<16x128xf32>
    %346 = arith.addf %292, %345 : vector<16x128xf32>
    %c1_169 = arith.constant 1 : index
    %c35_170 = arith.constant 35 : index
    %347 = memref.load %arg4[%c1_169, %c35_170] : memref<2x49xf32, #tpu.memory_space<smem>>
    %348 = vector.broadcast %347 : f32 to vector<16x128xf32>
    %349 = arith.mulf %348, %342 : vector<16x128xf32>
    %350 = arith.addf %346, %349 : vector<16x128xf32>
    %c0_171 = arith.constant 0 : index
    %c36 = arith.constant 36 : index
    %351 = memref.load %arg4[%c0_171, %c36] : memref<2x49xf32, #tpu.memory_space<smem>>
    %352 = vector.broadcast %351 : f32 to vector<16x128xf32>
    %353 = arith.mulf %352, %341 : vector<16x128xf32>
    %354 = arith.addf %300, %353 : vector<16x128xf32>
    %c1_172 = arith.constant 1 : index
    %c36_173 = arith.constant 36 : index
    %355 = memref.load %arg4[%c1_172, %c36_173] : memref<2x49xf32, #tpu.memory_space<smem>>
    %356 = vector.broadcast %355 : f32 to vector<16x128xf32>
    %357 = arith.mulf %356, %342 : vector<16x128xf32>
    %358 = arith.addf %354, %357 : vector<16x128xf32>
    %c0_174 = arith.constant 0 : index
    %c37 = arith.constant 37 : index
    %359 = memref.load %arg4[%c0_174, %c37] : memref<2x49xf32, #tpu.memory_space<smem>>
    %360 = vector.broadcast %359 : f32 to vector<16x128xf32>
    %361 = arith.mulf %360, %341 : vector<16x128xf32>
    %362 = arith.addf %308, %361 : vector<16x128xf32>
    %c1_175 = arith.constant 1 : index
    %c37_176 = arith.constant 37 : index
    %363 = memref.load %arg4[%c1_175, %c37_176] : memref<2x49xf32, #tpu.memory_space<smem>>
    %364 = vector.broadcast %363 : f32 to vector<16x128xf32>
    %365 = arith.mulf %364, %342 : vector<16x128xf32>
    %366 = arith.addf %362, %365 : vector<16x128xf32>
    %c0_177 = arith.constant 0 : index
    %c38 = arith.constant 38 : index
    %367 = memref.load %arg4[%c0_177, %c38] : memref<2x49xf32, #tpu.memory_space<smem>>
    %368 = vector.broadcast %367 : f32 to vector<16x128xf32>
    %369 = arith.mulf %368, %341 : vector<16x128xf32>
    %370 = arith.addf %316, %369 : vector<16x128xf32>
    %c1_178 = arith.constant 1 : index
    %c38_179 = arith.constant 38 : index
    %371 = memref.load %arg4[%c1_178, %c38_179] : memref<2x49xf32, #tpu.memory_space<smem>>
    %372 = vector.broadcast %371 : f32 to vector<16x128xf32>
    %373 = arith.mulf %372, %342 : vector<16x128xf32>
    %374 = arith.addf %370, %373 : vector<16x128xf32>
    %c0_180 = arith.constant 0 : index
    %c39 = arith.constant 39 : index
    %375 = memref.load %arg4[%c0_180, %c39] : memref<2x49xf32, #tpu.memory_space<smem>>
    %376 = vector.broadcast %375 : f32 to vector<16x128xf32>
    %377 = arith.mulf %376, %341 : vector<16x128xf32>
    %378 = arith.addf %324, %377 : vector<16x128xf32>
    %c1_181 = arith.constant 1 : index
    %c39_182 = arith.constant 39 : index
    %379 = memref.load %arg4[%c1_181, %c39_182] : memref<2x49xf32, #tpu.memory_space<smem>>
    %380 = vector.broadcast %379 : f32 to vector<16x128xf32>
    %381 = arith.mulf %380, %342 : vector<16x128xf32>
    %382 = arith.addf %378, %381 : vector<16x128xf32>
    %c0_183 = arith.constant 0 : index
    %c40 = arith.constant 40 : index
    %383 = memref.load %arg4[%c0_183, %c40] : memref<2x49xf32, #tpu.memory_space<smem>>
    %384 = vector.broadcast %383 : f32 to vector<16x128xf32>
    %385 = arith.mulf %384, %341 : vector<16x128xf32>
    %386 = arith.addf %332, %385 : vector<16x128xf32>
    %c1_184 = arith.constant 1 : index
    %c40_185 = arith.constant 40 : index
    %387 = memref.load %arg4[%c1_184, %c40_185] : memref<2x49xf32, #tpu.memory_space<smem>>
    %388 = vector.broadcast %387 : f32 to vector<16x128xf32>
    %389 = arith.mulf %388, %342 : vector<16x128xf32>
    %390 = arith.addf %386, %389 : vector<16x128xf32>
    %c0_186 = arith.constant 0 : index
    %c41 = arith.constant 41 : index
    %391 = memref.load %arg4[%c0_186, %c41] : memref<2x49xf32, #tpu.memory_space<smem>>
    %392 = vector.broadcast %391 : f32 to vector<16x128xf32>
    %393 = arith.mulf %392, %341 : vector<16x128xf32>
    %394 = arith.addf %340, %393 : vector<16x128xf32>
    %c1_187 = arith.constant 1 : index
    %c41_188 = arith.constant 41 : index
    %395 = memref.load %arg4[%c1_187, %c41_188] : memref<2x49xf32, #tpu.memory_space<smem>>
    %396 = vector.broadcast %395 : f32 to vector<16x128xf32>
    %397 = arith.mulf %396, %342 : vector<16x128xf32>
    %398 = arith.addf %394, %397 : vector<16x128xf32>
    %c6_189 = arith.constant 6 : index
    %c0_190 = arith.constant 0 : index
    %399 = vector.load %arg6[%c6_189, %c0_190] : memref<24x128xf32, #tpu.memory_space<vmem>>, vector<16x128xf32>
    %c6_191 = arith.constant 6 : index
    %c0_192 = arith.constant 0 : index
    %400 = vector.load %arg7[%c6_191, %c0_192] : memref<24x128xf32, #tpu.memory_space<vmem>>, vector<16x128xf32>
    %c0_193 = arith.constant 0 : index
    %c42 = arith.constant 42 : index
    %401 = memref.load %arg4[%c0_193, %c42] : memref<2x49xf32, #tpu.memory_space<smem>>
    %402 = vector.broadcast %401 : f32 to vector<16x128xf32>
    %403 = arith.mulf %402, %399 : vector<16x128xf32>
    %404 = arith.addf %350, %403 : vector<16x128xf32>
    %c1_194 = arith.constant 1 : index
    %c42_195 = arith.constant 42 : index
    %405 = memref.load %arg4[%c1_194, %c42_195] : memref<2x49xf32, #tpu.memory_space<smem>>
    %406 = vector.broadcast %405 : f32 to vector<16x128xf32>
    %407 = arith.mulf %406, %400 : vector<16x128xf32>
    %408 = arith.addf %404, %407 : vector<16x128xf32>
    %c0_196 = arith.constant 0 : index
    %c43 = arith.constant 43 : index
    %409 = memref.load %arg4[%c0_196, %c43] : memref<2x49xf32, #tpu.memory_space<smem>>
    %410 = vector.broadcast %409 : f32 to vector<16x128xf32>
    %411 = arith.mulf %410, %399 : vector<16x128xf32>
    %412 = arith.addf %358, %411 : vector<16x128xf32>
    %c1_197 = arith.constant 1 : index
    %c43_198 = arith.constant 43 : index
    %413 = memref.load %arg4[%c1_197, %c43_198] : memref<2x49xf32, #tpu.memory_space<smem>>
    %414 = vector.broadcast %413 : f32 to vector<16x128xf32>
    %415 = arith.mulf %414, %400 : vector<16x128xf32>
    %416 = arith.addf %412, %415 : vector<16x128xf32>
    %c0_199 = arith.constant 0 : index
    %c44 = arith.constant 44 : index
    %417 = memref.load %arg4[%c0_199, %c44] : memref<2x49xf32, #tpu.memory_space<smem>>
    %418 = vector.broadcast %417 : f32 to vector<16x128xf32>
    %419 = arith.mulf %418, %399 : vector<16x128xf32>
    %420 = arith.addf %366, %419 : vector<16x128xf32>
    %c1_200 = arith.constant 1 : index
    %c44_201 = arith.constant 44 : index
    %421 = memref.load %arg4[%c1_200, %c44_201] : memref<2x49xf32, #tpu.memory_space<smem>>
    %422 = vector.broadcast %421 : f32 to vector<16x128xf32>
    %423 = arith.mulf %422, %400 : vector<16x128xf32>
    %424 = arith.addf %420, %423 : vector<16x128xf32>
    %c0_202 = arith.constant 0 : index
    %c45 = arith.constant 45 : index
    %425 = memref.load %arg4[%c0_202, %c45] : memref<2x49xf32, #tpu.memory_space<smem>>
    %426 = vector.broadcast %425 : f32 to vector<16x128xf32>
    %427 = arith.mulf %426, %399 : vector<16x128xf32>
    %428 = arith.addf %374, %427 : vector<16x128xf32>
    %c1_203 = arith.constant 1 : index
    %c45_204 = arith.constant 45 : index
    %429 = memref.load %arg4[%c1_203, %c45_204] : memref<2x49xf32, #tpu.memory_space<smem>>
    %430 = vector.broadcast %429 : f32 to vector<16x128xf32>
    %431 = arith.mulf %430, %400 : vector<16x128xf32>
    %432 = arith.addf %428, %431 : vector<16x128xf32>
    %c0_205 = arith.constant 0 : index
    %c46 = arith.constant 46 : index
    %433 = memref.load %arg4[%c0_205, %c46] : memref<2x49xf32, #tpu.memory_space<smem>>
    %434 = vector.broadcast %433 : f32 to vector<16x128xf32>
    %435 = arith.mulf %434, %399 : vector<16x128xf32>
    %436 = arith.addf %382, %435 : vector<16x128xf32>
    %c1_206 = arith.constant 1 : index
    %c46_207 = arith.constant 46 : index
    %437 = memref.load %arg4[%c1_206, %c46_207] : memref<2x49xf32, #tpu.memory_space<smem>>
    %438 = vector.broadcast %437 : f32 to vector<16x128xf32>
    %439 = arith.mulf %438, %400 : vector<16x128xf32>
    %440 = arith.addf %436, %439 : vector<16x128xf32>
    %c0_208 = arith.constant 0 : index
    %c47 = arith.constant 47 : index
    %441 = memref.load %arg4[%c0_208, %c47] : memref<2x49xf32, #tpu.memory_space<smem>>
    %442 = vector.broadcast %441 : f32 to vector<16x128xf32>
    %443 = arith.mulf %442, %399 : vector<16x128xf32>
    %444 = arith.addf %390, %443 : vector<16x128xf32>
    %c1_209 = arith.constant 1 : index
    %c47_210 = arith.constant 47 : index
    %445 = memref.load %arg4[%c1_209, %c47_210] : memref<2x49xf32, #tpu.memory_space<smem>>
    %446 = vector.broadcast %445 : f32 to vector<16x128xf32>
    %447 = arith.mulf %446, %400 : vector<16x128xf32>
    %448 = arith.addf %444, %447 : vector<16x128xf32>
    %c0_211 = arith.constant 0 : index
    %c48 = arith.constant 48 : index
    %449 = memref.load %arg4[%c0_211, %c48] : memref<2x49xf32, #tpu.memory_space<smem>>
    %450 = vector.broadcast %449 : f32 to vector<16x128xf32>
    %451 = arith.mulf %450, %399 : vector<16x128xf32>
    %452 = arith.addf %398, %451 : vector<16x128xf32>
    %c1_212 = arith.constant 1 : index
    %c48_213 = arith.constant 48 : index
    %453 = memref.load %arg4[%c1_212, %c48_213] : memref<2x49xf32, #tpu.memory_space<smem>>
    %454 = vector.broadcast %453 : f32 to vector<16x128xf32>
    %455 = arith.mulf %454, %400 : vector<16x128xf32>
    %456 = arith.addf %452, %455 : vector<16x128xf32>
    %cst_214 = arith.constant 0.000000e+00 : f32
    %457 = vector.broadcast %cst_214 : f32 to vector<16x16xf32>
    %c0_215 = arith.constant 0 : index
    %c0_216 = arith.constant 0 : index
    %458 = vector.load %arg8[%c0_215, %c0_216] : memref<16x128xf32, #tpu.memory_space<vmem>>, vector<16x128xf32>
    tpu.vector_store %arg8[%c0_215, %c0_216], %408 {strides = array<i32>} : memref<16x128xf32, #tpu.memory_space<vmem>>, vector<16x128xf32>,
    %c0_217 = arith.constant 0 : index
    %c0_218 = arith.constant 0 : index
    %459 = vector.load %arg8[%c0_217, %c0_218] : memref<16x128xf32, #tpu.memory_space<vmem>>, vector<16x16xf32>
    %460 = arith.addf %457, %459 : vector<16x16xf32>
    %c0_219 = arith.constant 0 : index
    %c0_220 = arith.constant 0 : index
    %461 = vector.load %arg8[%c0_219, %c0_220] : memref<16x128xf32, #tpu.memory_space<vmem>>, vector<16x128xf32>
    tpu.vector_store %arg8[%c0_219, %c0_220], %416 {strides = array<i32>} : memref<16x128xf32, #tpu.memory_space<vmem>>, vector<16x128xf32>,
    %c0_221 = arith.constant 0 : index
    %c1_222 = arith.constant 1 : index
    %462 = vector.load %arg8[%c0_221, %c1_222] : memref<16x128xf32, #tpu.memory_space<vmem>>, vector<16x16xf32>
    %463 = arith.addf %460, %462 : vector<16x16xf32>
    %c0_223 = arith.constant 0 : index
    %c0_224 = arith.constant 0 : index
    %464 = vector.load %arg8[%c0_223, %c0_224] : memref<16x128xf32, #tpu.memory_space<vmem>>, vector<16x128xf32>
    tpu.vector_store %arg8[%c0_223, %c0_224], %424 {strides = array<i32>} : memref<16x128xf32, #tpu.memory_space<vmem>>, vector<16x128xf32>,
    %c0_225 = arith.constant 0 : index
    %c2_226 = arith.constant 2 : index
    %465 = vector.load %arg8[%c0_225, %c2_226] : memref<16x128xf32, #tpu.memory_space<vmem>>, vector<16x16xf32>
    %466 = arith.addf %463, %465 : vector<16x16xf32>
    %c0_227 = arith.constant 0 : index
    %c0_228 = arith.constant 0 : index
    %467 = vector.load %arg8[%c0_227, %c0_228] : memref<16x128xf32, #tpu.memory_space<vmem>>, vector<16x128xf32>
    tpu.vector_store %arg8[%c0_227, %c0_228], %432 {strides = array<i32>} : memref<16x128xf32, #tpu.memory_space<vmem>>, vector<16x128xf32>,
    %c0_229 = arith.constant 0 : index
    %c3_230 = arith.constant 3 : index
    %468 = vector.load %arg8[%c0_229, %c3_230] : memref<16x128xf32, #tpu.memory_space<vmem>>, vector<16x16xf32>
    %469 = arith.addf %466, %468 : vector<16x16xf32>
    %c0_231 = arith.constant 0 : index
    %c0_232 = arith.constant 0 : index
    %470 = vector.load %arg8[%c0_231, %c0_232] : memref<16x128xf32, #tpu.memory_space<vmem>>, vector<16x128xf32>
    tpu.vector_store %arg8[%c0_231, %c0_232], %440 {strides = array<i32>} : memref<16x128xf32, #tpu.memory_space<vmem>>, vector<16x128xf32>,
    %c0_233 = arith.constant 0 : index
    %c4_234 = arith.constant 4 : index
    %471 = vector.load %arg8[%c0_233, %c4_234] : memref<16x128xf32, #tpu.memory_space<vmem>>, vector<16x16xf32>
    %472 = arith.addf %469, %471 : vector<16x16xf32>
    %c0_235 = arith.constant 0 : index
    %c0_236 = arith.constant 0 : index
    %473 = vector.load %arg8[%c0_235, %c0_236] : memref<16x128xf32, #tpu.memory_space<vmem>>, vector<16x128xf32>
    tpu.vector_store %arg8[%c0_235, %c0_236], %448 {strides = array<i32>} : memref<16x128xf32, #tpu.memory_space<vmem>>, vector<16x128xf32>,
    %c0_237 = arith.constant 0 : index
    %c5_238 = arith.constant 5 : index
    %474 = vector.load %arg8[%c0_237, %c5_238] : memref<16x128xf32, #tpu.memory_space<vmem>>, vector<16x16xf32>
    %475 = arith.addf %472, %474 : vector<16x16xf32>
    %c0_239 = arith.constant 0 : index
    %c0_240 = arith.constant 0 : index
    %476 = vector.load %arg8[%c0_239, %c0_240] : memref<16x128xf32, #tpu.memory_space<vmem>>, vector<16x128xf32>
    tpu.vector_store %arg8[%c0_239, %c0_240], %456 {strides = array<i32>} : memref<16x128xf32, #tpu.memory_space<vmem>>, vector<16x128xf32>,
    %c0_241 = arith.constant 0 : index
    %c6_242 = arith.constant 6 : index
    %477 = vector.load %arg8[%c0_241, %c6_242] : memref<16x128xf32, #tpu.memory_space<vmem>>, vector<16x16xf32>
    %478 = arith.addf %475, %477 : vector<16x16xf32>
    %479 = arith.negf %478 : vector<16x16xf32>
    %480 = math.exp %479 : vector<16x16xf32>
    %cst_243 = arith.constant 1.000000e+00 : f32
    %481 = vector.broadcast %cst_243 : f32 to vector<16x16xf32>
    %482 = arith.addf %481, %480 : vector<16x16xf32>
    %483 = arith.divf %481, %482 : vector<16x16xf32>
    %484 = vector.shape_cast %483 : vector<16x16xf32> to vector<16x16x1xf32>
    %485 = vector.broadcast %484 : vector<16x16x1xf32> to vector<16x16x32xf32>
    %486 = arith.mulf %33, %485 : vector<16x16x32xf32>
    %487 = arith.addf %486, %1 : vector<16x16x32xf32>
    %c0_244 = arith.constant 0 : index
    %c0_245 = arith.constant 0 : index
    %c0_246 = arith.constant 0 : index
    %c0_247 = arith.constant 0 : index
    %488 = vector.load %arg5[%c0_244, %c0_245, %c0_246, %c0_247] : memref<1x16x16x32xf32, #tpu.memory_space<vmem>>, vector<1x16x16x32xf32>
    %489 = vector.shape_cast %488 : vector<1x16x16x32xf32> to vector<16x16x32xf32>
    %490 = vector.shape_cast %487 : vector<16x16x32xf32> to vector<1x16x16x32xf32>
    tpu.vector_store %arg5[%c0_244, %c0_245, %c0_246, %c0_247], %490 {strides = array<i32>} : memref<1x16x16x32xf32, #tpu.memory_space<vmem>>, vector<1x16x16x32xf32>,
    return
  }
  func.func @transform_0(%arg0: i32) -> (i32, i32, i32, i32) {
    %c0_i32 = arith.constant 0 : i32
    %c0_i32_0 = arith.constant 0 : i32
    %c0_i32_1 = arith.constant 0 : i32
    %c0_i32_2 = arith.constant 0 : i32
    return %arg0, %c0_i32, %c0_i32_0, %c0_i32_1 : i32, i32, i32, i32
  }
  func.func @transform_1(%arg0: i32) -> (i32, i32) {
    %c0_i32 = arith.constant 0 : i32
    %c0_i32_0 = arith.constant 0 : i32
    %c0_i32_1 = arith.constant 0 : i32
    return %c0_i32, %c0_i32_0 : i32, i32
  }
  func.func @transform_2(%arg0: i32) -> (i32, i32) {
    %c0_i32 = arith.constant 0 : i32
    %c0_i32_0 = arith.constant 0 : i32
    %c0_i32_1 = arith.constant 0 : i32
    return %c0_i32, %c0_i32_0 : i32, i32
  }
  func.func @transform_3(%arg0: i32) -> (i32, i32) {
    %c0_i32 = arith.constant 0 : i32
    %c0_i32_0 = arith.constant 0 : i32
    %c0_i32_1 = arith.constant 0 : i32
    return %c0_i32, %c0_i32_0 : i32, i32
  }
  func.func @transform_4(%arg0: i32) -> (i32, i32, i32, i32) {
    %c0_i32 = arith.constant 0 : i32
    %c0_i32_0 = arith.constant 0 : i32
    %c0_i32_1 = arith.constant 0 : i32
    %c0_i32_2 = arith.constant 0 : i32
    return %arg0, %c0_i32, %c0_i32_0, %c0_i32_1 : i32, i32, i32, i32
  }
}

</mosaic_0001>

<llo_original>
// kernel: cmba_block.1
$region0: #{cmba_block.1}
  #allocation0 [shape = 'u32[]', space=smem, size = 0x4, offset = 0x4, fixed_abs, tag = 'smem constant byte address 0x4 - core index']
  #allocation1 [shape = 'u32[144,128]{1,0:T(1,128)}', space=vmem, size = 0x12000, scoped, tag = 'internal scratch']
  #allocation2 [shape = 'f32[24,128]{1,0:T(8,128)}', space=vmem, size = 0x3000, scoped, tag = 'scratch operand']
  #allocation3 [shape = 'f32[24,128]{1,0:T(8,128)}', space=vmem, size = 0x3000, scoped, tag = 'scratch operand']
  #allocation4 [shape = 'f32[16,128]{1,0:T(8,128)}', space=vmem, size = 0x2000, scoped, tag = 'scratch operand']
  %s0 = inlined_call_operand.hbm [shape: f32[2,16,16,32], index: 0, kind: input, shape index: {}]
  %s1 = inlined_call_operand.vmem [shape: f32[32,2], index: 1, kind: input, shape index: {}]
  %s2 = inlined_call_operand.vmem [shape: f32[2,32], index: 2, kind: input, shape index: {}]
  %s3 = inlined_call_operand.vmem [shape: f32[2,49], index: 3, kind: input, shape index: {}]
  %s4 = inlined_call_operand.hbm [shape: f32[2,16,16,32], index: 4, kind: output, shape index: {}]
  %s5 = sld [smem:[#allocation0]]
  $region57: #{cmba_block.1} parent=0
    _
  %s7 = ssub.s32 1, %s5
  %s8 = scalar_select 0, %s7, %s5
  $region1: #{cmba_block.1} parent=0
    #allocation5 [shape = 'u8[262144]{0}', space=vmem, size = 0x40000, scoped, tag = 'input window, operand 0']
    #allocation6 [shape = 's32[2]{0}', space=sflag, size = 0x8, scoped, tag = 'scoped memory for cmba_block.1']
    #allocation7 [shape = 's32[2]{0}', space=sflag, size = 0x8, scoped, tag = 'scoped memory for cmba_block.1']
    #allocation8 [shape = 's32[2]{0}', space=sflag, size = 0x8, scoped, tag = 'scoped memory for cmba_block.1']
    #allocation9 [shape = 'u8[1024]{0}', space=smem, size = 0x400, scoped, tag = 'input window, operand 3, single buffered']
    #allocation10 [shape = 'u8[262144]{0}', space=vmem, size = 0x40000, scoped, tag = 'output window, operand 0']
    %9 = vsyncpa [#allocation6], 0
    %s10 = scalar_lea.sflag [#allocation6], 1
    %11 = vsyncpa %s10, 0
    %12 = vsyncpa [#allocation8], 0
    %13 = vsyncpa [#allocation7], 0
    %s14 = scalar_lea.sflag [#allocation7], 1
    %15 = vsyncpa %s14, 0
    loop: start=0, step=1, limit=4
    $region2: #{cmba_block.1} parent=1 // loop_pre_header
      _
    $region3: #{cmba_block.1} parent=1 // loop_header
      %s17 = sphi 0, %s21
      %p18 = scmp.ge.s32.totalorder %s17, 4
      %s27 = sphi 0, %s29
      %s30 = sphi 0, %s27
      %s31 = sphi 0, %s30
      %s47 = sphi 0, %s31
      %s51 = sphi 0, %s51
      %s53 = sphi 0, %s51
      %s54 = sphi 0, %s53
      %s68 = sphi 0, %s54
      %s72 = sphi 0, %s72
      %s74 = sphi 0, %s72
      %s75 = sphi 0, %s74
      %s89 = sphi 0, %s75
      %s93 = sphi 0, %s93
      %s95 = sphi 0, %s93
      %s96 = sphi 0, %s95
      %s110 = sphi 0, %s96
      %s116 = sphi 0, %s118
      %s119 = sphi 0, %s116
      %s120 = sphi 0, %s119
      %s136 = sphi 0, %s120
    $region4: #{cmba_block.1} parent=1 // loop_header_branch
      %20 = sbr.rel (%p18) target = $region8
    $region5: #{cmba_block.1} parent=1 // loop_body
      %s22 = ssub.s32 %s17, 1
      %s23 = ssub.s32 %s17, 2
      %s24 = sadd.s32 %s17, 1
      %s25 = ssub.s32 %s17, %s24
      %p26 = scmp.eq.s32.totalorder %s25, 0
      %s28 = sadd.s32 %s27, 1
      %s29 = scalar_select %p26, %s27, %s28
      %p32 = pneg %p26
      %p33 = scmp.eq.s32.totalorder %s17, 1
      %p34 = por %p32, %p33
      %p35 = scmp.ne.s32.totalorder %s27, %s30
      %p36 = scmp.eq.s32.totalorder %s17, 0
      %p37 = por %p35, %p36
      %p38 = scmp.ne.s32.totalorder %s27, %s30
      %p39 = scmp.eq.s32.totalorder %s22, 1
      %p40 = por %p38, %p39
      %p41 = scmp.ne.s32.totalorder %s30, %s31
      %p42 = scmp.eq.s32.totalorder %s22, 0
      %p43 = por %p41, %p42
      %p44 = scmp.ne.s32.totalorder %s30, %s31
      %p45 = scmp.eq.s32.totalorder %s23, 1
      %p46 = por %p44, %p45
      %p48 = scmp.ne.s32.totalorder %s31, %s47
      %p49 = scmp.eq.s32.totalorder %s23, 0
      %p50 = por %p48, %p49
      %s52 = sadd.s32 %s51, 1
      %p55 = scmp.eq.s32.totalorder %s17, 1
      %p56 = scmp.ne.s32.totalorder %s51, %s53
      %p57 = scmp.eq.s32.totalorder %s17, 0
      %p58 = por %p56, %p57
      %p59 = scmp.ne.s32.totalorder %s51, %s53
      %p60 = scmp.eq.s32.totalorder %s22, 1
      %p61 = por %p59, %p60
      %p62 = scmp.ne.s32.totalorder %s53, %s54
      %p63 = scmp.eq.s32.totalorder %s22, 0
      %p64 = por %p62, %p63
      %p65 = scmp.ne.s32.totalorder %s53, %s54
      %p66 = scmp.eq.s32.totalorder %s23, 1
      %p67 = por %p65, %p66
      %p69 = scmp.ne.s32.totalorder %s54, %s68
      %p70 = scmp.eq.s32.totalorder %s23, 0
      %p71 = por %p69, %p70
      %s73 = sadd.s32 %s72, 1
      %p76 = scmp.eq.s32.totalorder %s17, 1
      %p77 = scmp.ne.s32.totalorder %s72, %s74
      %p78 = scmp.eq.s32.totalorder %s17, 0
      %p79 = por %p77, %p78
      %p80 = scmp.ne.s32.totalorder %s72, %s74
      %p81 = scmp.eq.s32.totalorder %s22, 1
      %p82 = por %p80, %p81
      %p83 = scmp.ne.s32.totalorder %s74, %s75
      %p84 = scmp.eq.s32.totalorder %s22, 0
      %p85 = por %p83, %p84
      %p86 = scmp.ne.s32.totalorder %s74, %s75
      %p87 = scmp.eq.s32.totalorder %s23, 1
      %p88 = por %p86, %p87
      %p90 = scmp.ne.s32.totalorder %s75, %s89
      %p91 = scmp.eq.s32.totalorder %s23, 0
      %p92 = por %p90, %p91
      %s94 = sadd.s32 %s93, 1
      %p97 = scmp.eq.s32.totalorder %s17, 1
      %p98 = scmp.ne.s32.totalorder %s93, %s95
      %p99 = scmp.eq.s32.totalorder %s17, 0
      %p100 = por %p98, %p99
      %p101 = scmp.ne.s32.totalorder %s93, %s95
      %p102 = scmp.eq.s32.totalorder %s22, 1
      %p103 = por %p101, %p102
      %p104 = scmp.ne.s32.totalorder %s95, %s96
      %p105 = scmp.eq.s32.totalorder %s22, 0
      %p106 = por %p104, %p105
      %p107 = scmp.ne.s32.totalorder %s95, %s96
      %p108 = scmp.eq.s32.totalorder %s23, 1
      %p109 = por %p107, %p108
      %p111 = scmp.ne.s32.totalorder %s96, %s110
      %p112 = scmp.eq.s32.totalorder %s23, 0
      %p113 = por %p111, %p112
      %s114 = ssub.s32 %s17, %s24
      %p115 = scmp.eq.s32.totalorder %s114, 0
      %s117 = sadd.s32 %s116, 1
      %s118 = scalar_select %p115, %s116, %s117
      %p121 = pneg %p115
      %p122 = scmp.eq.s32.totalorder %s17, 1
      %p123 = por %p121, %p122
      %p124 = scmp.ne.s32.totalorder %s116, %s119
      %p125 = scmp.eq.s32.totalorder %s17, 0
      %p126 = por %p124, %p125
      %p127 = scmp.ne.s32.totalorder %s116, %s119
      %p128 = scmp.eq.s32.totalorder %s22, 1
      %p129 = por %p127, %p128
      %p130 = scmp.ne.s32.totalorder %s119, %s120
      %p131 = scmp.eq.s32.totalorder %s22, 0
      %p132 = por %p130, %p131
      %p133 = scmp.ne.s32.totalorder %s119, %s120
      %p134 = scmp.eq.s32.totalorder %s23, 1
      %p135 = por %p133, %p134
      %p137 = scmp.ne.s32.totalorder %s120, %s136
      %p138 = scmp.eq.s32.totalorder %s23, 0
      %p139 = por %p137, %p138
      %p140 = scmp.le.s32.totalorder 1, %s17
      %p141 = scmp.lt.s32.totalorder %s17, 3
      %p142 = pnand %p140, %p141
      %p143 = pneg %p142
      // Predicated region
      $region9: #{cmba_block.1} parent=5 // pred_check
        _
      $region10: #{cmba_block.1} parent=5 // pred_check_branch
        %145 = sbr.rel (%p142) target = $region12
      $region11: #{cmba_block.1} parent=5 // pred_region
        %s146 = ssub.s32 %s17, 1
        // Predicated region
        $region13: #{cmba_block.1} parent=11 // pred_check
          %p147 = pneg %p64
        $region14: #{cmba_block.1} parent=11 // pred_check_branch
          %149 = sbr.rel (%p147) target = $region16
        $region15: #{cmba_block.1} parent=11 // pred_region
          _
        $region16: #{cmba_block.1} parent=11 // pred_fallthru
          _
        // Predicated region
        $region17: #{cmba_block.1} parent=11 // pred_check
          %p150 = pneg %p85
        $region18: #{cmba_block.1} parent=11 // pred_check_branch
          %152 = sbr.rel (%p150) target = $region20
        $region19: #{cmba_block.1} parent=11 // pred_region
          _
        $region20: #{cmba_block.1} parent=11 // pred_fallthru
          _
        // Predicated region
        $region21: #{cmba_block.1} parent=11 // pred_check
          %p153 = pneg %p106
        $region22: #{cmba_block.1} parent=11 // pred_check_branch
          %155 = sbr.rel (%p153) target = $region24
        $region23: #{cmba_block.1} parent=11 // pred_region
          %s157 = ssub.s32 32, 32
          %158 = vsyncadd [#allocation8], %s157
          %s160 = sshll.u32 %s3, 4
          %s161 = int_to_ptr.vmem [resolvable:$true] %s160
          %163 = dma.vmem_to_smem %s161, 32, [#allocation9], [#allocation8]
        $region24: #{cmba_block.1} parent=11 // pred_fallthru
          _
      $region12: #{cmba_block.1} parent=5 // pred_fallthru
        _
      %p164 = scmp.lt.s32.totalorder %s17, 2
      // Predicated region
      $region25: #{cmba_block.1} parent=5 // pred_check
        %p165 = pneg %p164
      $region26: #{cmba_block.1} parent=5 // pred_check_branch
        %167 = sbr.rel (%p165) target = $region28
      $region27: #{cmba_block.1} parent=5 // pred_region
        // Predicated region
        $region29: #{cmba_block.1} parent=27 // pred_check
          %p168 = pneg %p37
        $region30: #{cmba_block.1} parent=27 // pred_check_branch
          %170 = sbr.rel (%p168) target = $region32
        $region31: #{cmba_block.1} parent=27 // pred_region
          %s171 = sand.u32 %s27, 1
          %s172 = scalar_lea.sflag [#allocation6], %s171
          %s173 = sand.u32 %s27, 1
          %s174 = smul.addr %s173, 256
          %s175 = scalar_lea.vmem [#allocation5], %s174
          %s177 = ssub.s32 4096, 4096
          %178 = vsyncadd %s172, %s177
          %s179 = smul.addr %s17, 32
          %s180 = smul.addr %s179, 128
          %s181 = scalar_lea.hbm %s0, %s180
          %s182 = sshll.u32 %s175, 4
          %s183 = int_to_ptr.vmem [resolvable:$true] %s182
          %188 = dma.hbm_to_vmem [thread:$0]  %s181, 4096, %s183, %s172, 128, 128, 8
        $region32: #{cmba_block.1} parent=27 // pred_fallthru
          _
      $region28: #{cmba_block.1} parent=5 // pred_fallthru
        _
      %p189 = scmp.le.s32.totalorder 1, %s17
      %p190 = scmp.lt.s32.totalorder %s17, 3
      %p191 = pnand %p189, %p190
      %p192 = pneg %p191
      // Predicated region
      $region33: #{cmba_block.1} parent=5 // pred_check
        _
      $region34: #{cmba_block.1} parent=5 // pred_check_branch
        %194 = sbr.rel (%p191) target = $region36
      $region35: #{cmba_block.1} parent=5 // pred_region
        %s195 = ssub.s32 %s17, 1
        %s196 = sand.u32 %s30, 1
        %s197 = scalar_lea.sflag [#allocation6], %s196
        %s198 = sand.u32 %s30, 1
        %s199 = smul.addr %s198, 256
        %s200 = scalar_lea.vmem [#allocation5], %s199
        // Predicated region
        $region37: #{cmba_block.1} parent=35 // pred_check
          %p201 = pneg %p43
        $region38: #{cmba_block.1} parent=35 // pred_check_branch
          %203 = sbr.rel (%p201) target = $region40
        $region39: #{cmba_block.1} parent=35 // pred_region
          %204 = dma.done %s197, 4096
        $region40: #{cmba_block.1} parent=35 // pred_fallthru
          _
        // Predicated region
        $region41: #{cmba_block.1} parent=35 // pred_check
          %p205 = pneg %p106
        $region42: #{cmba_block.1} parent=35 // pred_check_branch
          %207 = sbr.rel (%p205) target = $region44
        $region43: #{cmba_block.1} parent=35 // pred_region
          %208 = dma.done [#allocation8], 32
        $region44: #{cmba_block.1} parent=35 // pred_fallthru
          _
        %209 = sfence
        %s210 = sand.u32 %s30, 1
        %s211 = scalar_lea.sflag [#allocation6], %s210
        %s212 = sand.u32 %s30, 1
        %s213 = smul.addr %s212, 256
        %s214 = scalar_lea.vmem [#allocation5], %s213
        %p215 = pneg %p43
        %p216 = pneg %p40
        %p217 = pneg %p64
        %p218 = pneg %p61
        %p219 = pneg %p85
        %p220 = pneg %p82
        %p221 = pneg %p106
        %p222 = pneg %p103
        %p223 = pneg %p132
        %p224 = pneg %p129
        %s225 = sand.u32 %s119, 1
        %s226 = scalar_lea.sflag [#allocation7], %s225
        %s227 = sand.u32 %s119, 1
        %s228 = smul.addr %s227, 256
        %s229 = scalar_lea.vmem [#allocation10], %s228
        %v230 = vld [vmem:[%s200] sm:$0xff]
        %v231 = vld [vmem:[%s200 + $0x8] sm:$0xff]
        %v232 = vld [vmem:[%s200 + $0x10] sm:$0xff]
        %v233 = vld [vmem:[%s200 + $0x18] sm:$0xff]
        %v234 = vld [vmem:[%s200 + $0x20] sm:$0xff]
        %v235 = vld [vmem:[%s200 + $0x28] sm:$0xff]
        %v236 = vld [vmem:[%s200 + $0x30] sm:$0xff]
        %v237 = vld [vmem:[%s200 + $0x38] sm:$0xff]
        %v238 = vld [vmem:[%s200 + $0x40] sm:$0xff]
        %v239 = vld [vmem:[%s200 + $0x48] sm:$0xff]
        %v240 = vld [vmem:[%s200 + $0x50] sm:$0xff]
        %v241 = vld [vmem:[%s200 + $0x58] sm:$0xff]
        %v242 = vld [vmem:[%s200 + $0x60] sm:$0xff]
        %v243 = vld [vmem:[%s200 + $0x68] sm:$0xff]
        %v244 = vld [vmem:[%s200 + $0x70] sm:$0xff]
        %v245 = vld [vmem:[%s200 + $0x78] sm:$0xff]
        %v246 = vld [vmem:[%s200 + $0x80] sm:$0xff]
        %v247 = vld [vmem:[%s200 + $0x88] sm:$0xff]
        %v248 = vld [vmem:[%s200 + $0x90] sm:$0xff]
        %v249 = vld [vmem:[%s200 + $0x98] sm:$0xff]
        %v250 = vld [vmem:[%s200 + $0xa0] sm:$0xff]
        %v251 = vld [vmem:[%s200 + $0xa8] sm:$0xff]
        %v252 = vld [vmem:[%s200 + $0xb0] sm:$0xff]
        %v253 = vld [vmem:[%s200 + $0xb8] sm:$0xff]
        %v254 = vld [vmem:[%s200 + $0xc0] sm:$0xff]
        %v255 = vld [vmem:[%s200 + $0xc8] sm:$0xff]
        %v256 = vld [vmem:[%s200 + $0xd0] sm:$0xff]
        %v257 = vld [vmem:[%s200 + $0xd8] sm:$0xff]
        %v258 = vld [vmem:[%s200 + $0xe0] sm:$0xff]
        %v259 = vld [vmem:[%s200 + $0xe8] sm:$0xff]
        %v260 = vld [vmem:[%s200 + $0xf0] sm:$0xff]
        %v261 = vld [vmem:[%s200 + $0xf8] sm:$0xff]
        %vm262 = vcmask 261120
        %v263 = vsel %vm262, %v230, 0.0
        %v264 = vsel %vm262, %v232, 0.0
        %v265 = vadd.f32 %v263, %v264
        %v266 = vsel %vm262, %v234, 0.0
        %v267 = vadd.f32 %v265, %v266
        %v268 = vsel %vm262, %v236, 0.0
        %v269 = vadd.f32 %v267, %v268
        %v270 = vsel %vm262, %v238, 0.0
        %v271 = vadd.f32 %v269, %v270
        %v272 = vsel %vm262, %v240, 0.0
        %v273 = vadd.f32 %v271, %v272
        %v274 = vsel %vm262, %v242, 0.0
        %v275 = vadd.f32 %v273, %v274
        %v276 = vsel %vm262, %v244, 0.0
        %v277 = vadd.f32 %v275, %v276
        %v278 = vsel %vm262, %v246, 0.0
        %v279 = vadd.f32 %v277, %v278
        %v280 = vsel %vm262, %v248, 0.0
        %v281 = vadd.f32 %v279, %v280
        %v282 = vsel %vm262, %v250, 0.0
        %v283 = vadd.f32 %v281, %v282
        %v284 = vsel %vm262, %v252, 0.0
        %v285 = vadd.f32 %v283, %v284
        %v286 = vsel %vm262, %v254, 0.0
        %v287 = vadd.f32 %v285, %v286
        %v288 = vsel %vm262, %v256, 0.0
        %v289 = vadd.f32 %v287, %v288
        %v290 = vsel %vm262, %v258, 0.0
        %v291 = vadd.f32 %v289, %v290
        %v292 = vsel %vm262, %v260, 0.0
        %v293 = vadd.f32 %v291, %v292
        %v294 = vsel %vm262, %v231, 0.0
        %v295 = vsel %vm262, %v233, 0.0
        %v296 = vadd.f32 %v294, %v295
        %v297 = vsel %vm262, %v235, 0.0
        %v298 = vadd.f32 %v296, %v297
        %v299 = vsel %vm262, %v237, 0.0
        %v300 = vadd.f32 %v298, %v299
        %v301 = vsel %vm262, %v239, 0.0
        %v302 = vadd.f32 %v300, %v301
        %v303 = vsel %vm262, %v241, 0.0
        %v304 = vadd.f32 %v302, %v303
        %v305 = vsel %vm262, %v243, 0.0
        %v306 = vadd.f32 %v304, %v305
        %v307 = vsel %vm262, %v245, 0.0
        %v308 = vadd.f32 %v306, %v307
        %v309 = vsel %vm262, %v247, 0.0
        %v310 = vadd.f32 %v308, %v309
        %v311 = vsel %vm262, %v249, 0.0
        %v312 = vadd.f32 %v310, %v311
        %v313 = vsel %vm262, %v251, 0.0
        %v314 = vadd.f32 %v312, %v313
        %v315 = vsel %vm262, %v253, 0.0
        %v316 = vadd.f32 %v314, %v315
        %v317 = vsel %vm262, %v255, 0.0
        %v318 = vadd.f32 %v316, %v317
        %v319 = vsel %vm262, %v257, 0.0
        %v320 = vadd.f32 %v318, %v319
        %v321 = vsel %vm262, %v259, 0.0
        %v322 = vadd.f32 %v320, %v321
        %v323 = vsel %vm262, %v261, 0.0
        %v324 = vadd.f32 %v322, %v323
        %v325 = vsel %vm262, %v230, -inf
        %v326 = vsel %vm262, %v232, -inf
        %v327 = vsel %vm262, %v234, -inf
        %v328 = vmax.f32 %v325, %v327
        %v329 = vsel %vm262, %v236, -inf
        %v330 = vmax.f32 %v326, %v329
        %v331 = vsel %vm262, %v238, -inf
        %v332 = vmax.f32 %v328, %v331
        %v333 = vsel %vm262, %v240, -inf
        %v334 = vmax.f32 %v330, %v333
        %v335 = vsel %vm262, %v242, -inf
        %v336 = vmax.f32 %v332, %v335
        %v337 = vsel %vm262, %v244, -inf
        %v338 = vmax.f32 %v334, %v337
        %v339 = vsel %vm262, %v246, -inf
        %v340 = vmax.f32 %v336, %v339
        %v341 = vsel %vm262, %v248, -inf
        %v342 = vmax.f32 %v338, %v341
        %v343 = vsel %vm262, %v250, -inf
        %v344 = vmax.f32 %v340, %v343
        %v345 = vsel %vm262, %v252, -inf
        %v346 = vmax.f32 %v342, %v345
        %v347 = vsel %vm262, %v254, -inf
        %v348 = vmax.f32 %v344, %v347
        %v349 = vsel %vm262, %v256, -inf
        %v350 = vmax.f32 %v346, %v349
        %v351 = vsel %vm262, %v258, -inf
        %v352 = vmax.f32 %v348, %v351
        %v353 = vsel %vm262, %v260, -inf
        %v354 = vmax.f32 %v350, %v353
        %v355 = vmax.f32 %v352, %v354
        %v356 = vsel %vm262, %v231, -inf
        %v357 = vsel %vm262, %v233, -inf
        %v358 = vsel %vm262, %v235, -inf
        %v359 = vmax.f32 %v356, %v358
        %v360 = vsel %vm262, %v237, -inf
        %v361 = vmax.f32 %v357, %v360
        %v362 = vsel %vm262, %v239, -inf
        %v363 = vmax.f32 %v359, %v362
        %v364 = vsel %vm262, %v241, -inf
        %v365 = vmax.f32 %v361, %v364
        %v366 = vsel %vm262, %v243, -inf
        %v367 = vmax.f32 %v363, %v366
        %v368 = vsel %vm262, %v245, -inf
        %v369 = vmax.f32 %v365, %v368
        %v370 = vsel %vm262, %v247, -inf
        %v371 = vmax.f32 %v367, %v370
        %v372 = vsel %vm262, %v249, -inf
        %v373 = vmax.f32 %v369, %v372
        %v374 = vsel %vm262, %v251, -inf
        %v375 = vmax.f32 %v371, %v374
        %v376 = vsel %vm262, %v253, -inf
        %v377 = vmax.f32 %v373, %v376
        %v378 = vsel %vm262, %v255, -inf
        %v379 = vmax.f32 %v375, %v378
        %v380 = vsel %vm262, %v257, -inf
        %v381 = vmax.f32 %v377, %v380
        %v382 = vsel %vm262, %v259, -inf
        %v383 = vmax.f32 %v379, %v382
        %v384 = vsel %vm262, %v261, -inf
        %v385 = vmax.f32 %v381, %v384
        %v386 = vmax.f32 %v383, %v385
        %vm387 = vcmask 130048
        %v389 = vsel %vm387, 1.0, 0
        %391 = vmatprep.subr.mxu0 0.0
        %392 = vmatpush1.msra.mxu0 %v293
        %393 = vmatprep.subr.mxu0 0.0
        %394 = vmatpush1.msra.mxu0 %v324
        %395 = vmatprep.subr.mxu0 0.0
        %396 = vmatpush1.msra.mxu0 0.0
        %397 = vmatprep.subr.mxu0 0.0
        %398 = vmatpush1.msra.mxu0 0.0
        %399 = vmatprep.subr.mxu0 0.0
        %400 = vmatpush1.msra.mxu0 0.0
        %401 = vmatprep.subr.mxu0 0.0
        %402 = vmatpush1.msra.mxu0 0.0
        %403 = vmatprep.subr.mxu0 0.0
        %404 = vmatpush1.msra.mxu0 0.0
        %405 = vmatprep.subr.mxu0 0.0
        %406 = vmatpush1.msra.mxu0 0.0
        %407 = vmatprep.subr.mxu0 0.0
        %408 = vmatpush1.msra.mxu0 0.0
        %409 = vmatprep.subr.mxu0 0.0
        %410 = vmatpush1.msra.mxu0 0.0
        %411 = vmatprep.subr.mxu0 0.0
        %412 = vmatpush1.msra.mxu0 0.0
        %413 = vmatprep.subr.mxu0 0.0
        %414 = vmatpush1.msra.mxu0 0.0
        %415 = vmatprep.subr.mxu0 0.0
        %416 = vmatpush1.msra.mxu0 0.0
        %417 = vmatprep.subr.mxu0 0.0
        %418 = vmatpush1.msra.mxu0 0.0
        %419 = vmatprep.subr.mxu0 0.0
        %420 = vmatpush1.msra.mxu0 0.0
        %421 = vmatprep.subr.mxu0 0.0
        %422 = vmatpush1.msra.mxu0 0.0
        %423 = vmatprep.subr.mxu0 0.0
        %424 = vmatpush1.msra.mxu0 0.0
        %425 = vmatprep.subr.mxu0 0.0
        %426 = vmatpush1.msra.mxu0 0.0
        %427 = vmatprep.subr.mxu0 0.0
        %428 = vmatpush1.msra.mxu0 0.0
        %429 = vmatprep.subr.mxu0 0.0
        %430 = vmatpush1.msra.mxu0 0.0
        %431 = vmatprep.subr.mxu0 0.0
        %432 = vmatpush1.msra.mxu0 0.0
        %433 = vmatprep.subr.mxu0 0.0
        %434 = vmatpush1.msra.mxu0 0.0
        %435 = vmatprep.subr.mxu0 0.0
        %436 = vmatpush1.msra.mxu0 0.0
        %437 = vmatprep.subr.mxu0 0.0
        %438 = vmatpush1.msra.mxu0 0.0
        %439 = vmatprep.subr.mxu0 0.0
        %440 = vmatpush1.msra.mxu0 0.0
        %441 = vmatprep.subr.mxu0 0.0
        %442 = vmatpush1.msra.mxu0 0.0
        %443 = vmatprep.subr.mxu0 0.0
        %444 = vmatpush1.msra.mxu0 0.0
        %445 = vmatprep.subr.mxu0 0.0
        %446 = vmatpush1.msra.mxu0 0.0
        %447 = vmatprep.subr.mxu0 0.0
        %448 = vmatpush1.msra.mxu0 0.0
        %449 = vmatprep.subr.mxu0 0.0
        %450 = vmatpush1.msra.mxu0 0.0
        %451 = vmatprep.subr.mxu0 0.0
        %452 = vmatpush1.msra.mxu0 0.0
        %453 = vmatprep.subr.mxu0 0.0
        %454 = vmatpush1.msra.mxu0 0.0
        %455 = vmatprep.mubr.f32.mxu0 0.0
        %456 = vmatmul.mubr.f32.gmra.mrb[0].mxu0 %v389
        %v457 = vpop.f32.mrb[0].mxu0
        %v458 = vadd.f32 0.0, %v457
        %v459 = vpop.f32.mrb[0].mxu0
        %460 = vdwg.mxu0
        %v461 = vmul.f32 %v458, 0.00390625
        %v462 = vsel %vm262, %v355, -inf
        %v463 = vsel %vm262, %v386, -inf
        %v464 = vmax.f32 %v462, %v463
        %v465 = vrot.slane %v464, 4
        %v466 = vmax.f32 %v464, %v465
        %v467 = vrot.slane %v466, 2
        %v468 = vmax.f32 %v466, %v467
        %v469 = vrot.slane %v468, 1
        %v470 = vmax.f32 %v468, %v469
        %v471 = vlaneseq
        %v472 = vshrl.u32 %v471, 7
        %vm473 = vcmp.eq.s32.totalorder %v472, 0
        %v474 = vlaneseq
        %v475 = vshrl.u32 %v474, 7
        %v476 = vsub.s32 0, %v475
        %v477 = vrot.slane %v461, %v476
        %v478 = vsel %vm473, %v477, %v470
        %v479 = vld [vmem:[%s1] sm:$0xff]
        %v480 = vld [vmem:[%s1 + $0x8] sm:$0xff]
        %v481 = vld [vmem:[%s1 + $0x10] sm:$0xff]
        %v482 = vld [vmem:[%s1 + $0x18] sm:$0xff]
        %v484 = vsel %vm262, %v478, 0
        %486 = vmatprep.subr.mxu0 0.0
        %487 = vmatpush1.msra.mxu0 %v479
        %488 = vmatprep.subr.mxu0 0.0
        %489 = vmatpush1.msra.mxu0 %v480
        %490 = vmatprep.subr.mxu0 0.0
        %491 = vmatpush1.msra.mxu0 %v481
        %492 = vmatprep.subr.mxu0 0.0
        %493 = vmatpush1.msra.mxu0 %v482
        %494 = vmatprep.subr.mxu0 0.0
        %495 = vmatpush1.msra.mxu0 0.0
        %496 = vmatprep.subr.mxu0 0.0
        %497 = vmatpush1.msra.mxu0 0.0
        %498 = vmatprep.subr.mxu0 0.0
        %499 = vmatpush1.msra.mxu0 0.0
        %500 = vmatprep.subr.mxu0 0.0
        %501 = vmatpush1.msra.mxu0 0.0
        %502 = vmatprep.subr.mxu0 0.0
        %503 = vmatpush1.msra.mxu0 0.0
        %504 = vmatprep.subr.mxu0 0.0
        %505 = vmatpush1.msra.mxu0 0.0
        %506 = vmatprep.subr.mxu0 0.0
        %507 = vmatpush1.msra.mxu0 0.0
        %508 = vmatprep.subr.mxu0 0.0
        %509 = vmatpush1.msra.mxu0 0.0
        %510 = vmatprep.subr.mxu0 0.0
        %511 = vmatpush1.msra.mxu0 0.0
        %512 = vmatprep.subr.mxu0 0.0
        %513 = vmatpush1.msra.mxu0 0.0
        %514 = vmatprep.subr.mxu0 0.0
        %515 = vmatpush1.msra.mxu0 0.0
        %516 = vmatprep.subr.mxu0 0.0
        %517 = vmatpush1.msra.mxu0 0.0
        %518 = vmatprep.subr.mxu0 0.0
        %519 = vmatpush1.msra.mxu0 0.0
        %520 = vmatprep.subr.mxu0 0.0
        %521 = vmatpush1.msra.mxu0 0.0
        %522 = vmatprep.subr.mxu0 0.0
        %523 = vmatpush1.msra.mxu0 0.0
        %524 = vmatprep.subr.mxu0 0.0
        %525 = vmatpush1.msra.mxu0 0.0
        %526 = vmatprep.subr.mxu0 0.0
        %527 = vmatpush1.msra.mxu0 0.0
        %528 = vmatprep.subr.mxu0 0.0
        %529 = vmatpush1.msra.mxu0 0.0
        %530 = vmatprep.subr.mxu0 0.0
        %531 = vmatpush1.msra.mxu0 0.0
        %532 = vmatprep.subr.mxu0 0.0
        %533 = vmatpush1.msra.mxu0 0.0
        %534 = vmatprep.subr.mxu0 0.0
        %535 = vmatpush1.msra.mxu0 0.0
        %536 = vmatprep.subr.mxu0 0.0
        %537 = vmatpush1.msra.mxu0 0.0
        %538 = vmatprep.subr.mxu0 0.0
        %539 = vmatpush1.msra.mxu0 0.0
        %540 = vmatprep.subr.mxu0 0.0
        %541 = vmatpush1.msra.mxu0 0.0
        %542 = vmatprep.subr.mxu0 0.0
        %543 = vmatpush1.msra.mxu0 0.0
        %544 = vmatprep.subr.mxu0 0.0
        %545 = vmatpush1.msra.mxu0 0.0
        %546 = vmatprep.subr.mxu0 0.0
        %547 = vmatpush1.msra.mxu0 0.0
        %548 = vmatprep.subr.mxu0 0.0
        %549 = vmatpush1.msra.mxu0 0.0
        %550 = vmatprep.mubr.f32.mxu0 0.0
        %551 = vmatmul.mubr.f32.gmra.mrb[0].mxu0 %v484
        %v552 = vpop.f32.mrb[0].mxu0
        %v553 = vadd.f32 0.0, %v552
        %v554 = vpop.f32.mrb[0].mxu0
        %555 = vdwg.mxu0
        %v556 = vmax.f32 %v553, 0.0
        %v557 = vld [vmem:[%s2] sm:$0x3]
        %vm558 = vcmask 15360
        %v560 = vsel %vm558, %v556, 0
        %vm562 = vcmask 1041408
        %v564 = vsel %vm562, %v557, 0
        %566 = vmatprep.subr.mxu0 0.0
        %567 = vmatpush1.msra.mxu0 %v564
        %568 = vmatprep.subr.mxu0 0.0
        %569 = vmatpush1.msra.mxu0 0.0
        %570 = vmatprep.subr.mxu0 0.0
        %571 = vmatpush1.msra.mxu0 0.0
        %572 = vmatprep.subr.mxu0 0.0
        %573 = vmatpush1.msra.mxu0 0.0
        %574 = vmatprep.subr.mxu0 0.0
        %575 = vmatpush1.msra.mxu0 0.0
        %576 = vmatprep.subr.mxu0 0.0
        %577 = vmatpush1.msra.mxu0 0.0
        %578 = vmatprep.subr.mxu0 0.0
        %579 = vmatpush1.msra.mxu0 0.0
        %580 = vmatprep.subr.mxu0 0.0
        %581 = vmatpush1.msra.mxu0 0.0
        %582 = vmatprep.subr.mxu0 0.0
        %583 = vmatpush1.msra.mxu0 0.0
        %584 = vmatprep.subr.mxu0 0.0
        %585 = vmatpush1.msra.mxu0 0.0
        %586 = vmatprep.subr.mxu0 0.0
        %587 = vmatpush1.msra.mxu0 0.0
        %588 = vmatprep.subr.mxu0 0.0
        %589 = vmatpush1.msra.mxu0 0.0
        %590 = vmatprep.subr.mxu0 0.0
        %591 = vmatpush1.msra.mxu0 0.0
        %592 = vmatprep.subr.mxu0 0.0
        %593 = vmatpush1.msra.mxu0 0.0
        %594 = vmatprep.subr.mxu0 0.0
        %595 = vmatpush1.msra.mxu0 0.0
        %596 = vmatprep.subr.mxu0 0.0
        %597 = vmatpush1.msra.mxu0 0.0
        %598 = vmatprep.subr.mxu0 0.0
        %599 = vmatpush1.msra.mxu0 0.0
        %600 = vmatprep.subr.mxu0 0.0
        %601 = vmatpush1.msra.mxu0 0.0
        %602 = vmatprep.subr.mxu0 0.0
        %603 = vmatpush1.msra.mxu0 0.0
        %604 = vmatprep.subr.mxu0 0.0
        %605 = vmatpush1.msra.mxu0 0.0
        %606 = vmatprep.subr.mxu0 0.0
        %607 = vmatpush1.msra.mxu0 0.0
        %608 = vmatprep.subr.mxu0 0.0
        %609 = vmatpush1.msra.mxu0 0.0
        %610 = vmatprep.subr.mxu0 0.0
        %611 = vmatpush1.msra.mxu0 0.0
        %612 = vmatprep.subr.mxu0 0.0
        %613 = vmatpush1.msra.mxu0 0.0
        %614 = vmatprep.subr.mxu0 0.0
        %615 = vmatpush1.msra.mxu0 0.0
        %616 = vmatprep.subr.mxu0 0.0
        %617 = vmatpush1.msra.mxu0 0.0
        %618 = vmatprep.subr.mxu0 0.0
        %619 = vmatpush1.msra.mxu0 0.0
        %620 = vmatprep.subr.mxu0 0.0
        %621 = vmatpush1.msra.mxu0 0.0
        %622 = vmatprep.subr.mxu0 0.0
        %623 = vmatpush1.msra.mxu0 0.0
        %624 = vmatprep.subr.mxu0 0.0
        %625 = vmatpush1.msra.mxu0 0.0
        %626 = vmatprep.subr.mxu0 0.0
        %627 = vmatpush1.msra.mxu0 0.0
        %628 = vmatprep.subr.mxu0 0.0
        %629 = vmatpush1.msra.mxu0 0.0
        %630 = vmatprep.mubr.f32.mxu0 0.0
        %631 = vmatmul.mubr.f32.gmra.mrb[0].mxu0 %v560
        %v632 = vpop.f32.mrb[0].mxu0
        %v633 = vadd.f32 0.0, %v632
        %v634 = vpop.f32.mrb[0].mxu0
        %635 = vdwg.mxu0
        %v636 = vxor.u32 %v633, 2147483648
        %v637 = vmul.f32 %v636, 1.442695
        %v638 = vpow.pop %v637
        %v639 = vadd.f32 %v638, 1.0
        %v640 = vrcp.pop %v639
        %v641 = vmul.f32 1.0, %v640
        %v642 = vsel %vm558, 1.0, 0
        %v645 = vsel %vm562, %v641, 0
        %647 = vmatprep.subr.mxu0 0.0
        %648 = vmatpush1.msra.mxu0 %v645
        %649 = vmatprep.subr.mxu0 0.0
        %650 = vmatpush1.msra.mxu0 0.0
        %651 = vmatprep.subr.mxu0 0.0
        %652 = vmatpush1.msra.mxu0 0.0
        %653 = vmatprep.subr.mxu0 0.0
        %654 = vmatpush1.msra.mxu0 0.0
        %655 = vmatprep.subr.mxu0 0.0
        %656 = vmatpush1.msra.mxu0 0.0
        %657 = vmatprep.subr.mxu0 0.0
        %658 = vmatpush1.msra.mxu0 0.0
        %659 = vmatprep.subr.mxu0 0.0
        %660 = vmatpush1.msra.mxu0 0.0
        %661 = vmatprep.subr.mxu0 0.0
        %662 = vmatpush1.msra.mxu0 0.0
        %663 = vmatprep.subr.mxu0 0.0
        %664 = vmatpush1.msra.mxu0 0.0
        %665 = vmatprep.subr.mxu0 0.0
        %666 = vmatpush1.msra.mxu0 0.0
        %667 = vmatprep.subr.mxu0 0.0
        %668 = vmatpush1.msra.mxu0 0.0
        %669 = vmatprep.subr.mxu0 0.0
        %670 = vmatpush1.msra.mxu0 0.0
        %671 = vmatprep.subr.mxu0 0.0
        %672 = vmatpush1.msra.mxu0 0.0
        %673 = vmatprep.subr.mxu0 0.0
        %674 = vmatpush1.msra.mxu0 0.0
        %675 = vmatprep.subr.mxu0 0.0
        %676 = vmatpush1.msra.mxu0 0.0
        %677 = vmatprep.subr.mxu0 0.0
        %678 = vmatpush1.msra.mxu0 0.0
        %679 = vmatprep.subr.mxu0 0.0
        %680 = vmatpush1.msra.mxu0 0.0
        %681 = vmatprep.subr.mxu0 0.0
        %682 = vmatpush1.msra.mxu0 0.0
        %683 = vmatprep.subr.mxu0 0.0
        %684 = vmatpush1.msra.mxu0 0.0
        %685 = vmatprep.subr.mxu0 0.0
        %686 = vmatpush1.msra.mxu0 0.0
        %687 = vmatprep.subr.mxu0 0.0
        %688 = vmatpush1.msra.mxu0 0.0
        %689 = vmatprep.subr.mxu0 0.0
        %690 = vmatpush1.msra.mxu0 0.0
        %691 = vmatprep.subr.mxu0 0.0
        %692 = vmatpush1.msra.mxu0 0.0
        %693 = vmatprep.subr.mxu0 0.0
        %694 = vmatpush1.msra.mxu0 0.0
        %695 = vmatprep.subr.mxu0 0.0
        %696 = vmatpush1.msra.mxu0 0.0
        %697 = vmatprep.subr.mxu0 0.0
        %698 = vmatpush1.msra.mxu0 0.0
        %699 = vmatprep.subr.mxu0 0.0
        %700 = vmatpush1.msra.mxu0 0.0
        %701 = vmatprep.subr.mxu0 0.0
        %702 = vmatpush1.msra.mxu0 0.0
        %703 = vmatprep.subr.mxu0 0.0
        %704 = vmatpush1.msra.mxu0 0.0
        %705 = vmatprep.subr.mxu0 0.0
        %706 = vmatpush1.msra.mxu0 0.0
        %707 = vmatprep.subr.mxu0 0.0
        %708 = vmatpush1.msra.mxu0 0.0
        %709 = vmatprep.subr.mxu0 0.0
        %710 = vmatpush1.msra.mxu0 0.0
        %711 = vmatprep.mubr.f32.mxu0 0.0
        %712 = vmatmul.mubr.f32.gmra.mrb[0].mxu0 %v642
        %v713 = vpop.f32.mrb[0].mxu0
        %v714 = vadd.f32 0.0, %v713
        %v715 = vpop.f32.mrb[0].mxu0
        %716 = vdwg.mxu0
        %v717 = vlaneseq
        %v718 = vshrl.u32 %v717, 7
        %v719 = vsub.s32 0, %v718
        %v720 = vrot.slane %v714, %v719
        %v721 = vmul.f32 %v230, %v720
        %v722 = vmul.f32 %v231, %v720
        %v723 = vmul.f32 %v232, %v720
        %v724 = vmul.f32 %v233, %v720
        %v725 = vmul.f32 %v234, %v720
        %v726 = vmul.f32 %v235, %v720
        %v727 = vmul.f32 %v236, %v720
        %v728 = vmul.f32 %v237, %v720
        %v729 = vmul.f32 %v238, %v720
        %v730 = vmul.f32 %v239, %v720
        %v731 = vmul.f32 %v240, %v720
        %v732 = vmul.f32 %v241, %v720
        %v733 = vmul.f32 %v242, %v720
        %v734 = vmul.f32 %v243, %v720
        %v735 = vmul.f32 %v244, %v720
        %v736 = vmul.f32 %v245, %v720
        %v737 = vmul.f32 %v246, %v720
        %v738 = vmul.f32 %v247, %v720
        %v739 = vmul.f32 %v248, %v720
        %v740 = vmul.f32 %v249, %v720
        %v741 = vmul.f32 %v250, %v720
        %v742 = vmul.f32 %v251, %v720
        %v743 = vmul.f32 %v252, %v720
        %v744 = vmul.f32 %v253, %v720
        %v745 = vmul.f32 %v254, %v720
        %v746 = vmul.f32 %v255, %v720
        %v747 = vmul.f32 %v256, %v720
        %v748 = vmul.f32 %v257, %v720
        %v749 = vmul.f32 %v258, %v720
        %v750 = vmul.f32 %v259, %v720
        %v751 = vmul.f32 %v260, %v720
        %v752 = vmul.f32 %v261, %v720
        %v753 = vsel %vm262, %v721, 0.0
        %754 = vadd.xlane.f32.xlu0 %v753
        %v755 = vpop.xlane.xlu0 %754
        %v756 = vsel %vm262, %v722, 0.0
        %757 = vadd.xlane.f32.xlu0 %v756
        %v758 = vpop.xlane.xlu0 %757
        %v759 = vsel %vm262, %v723, 0.0
        %760 = vadd.xlane.f32.xlu0 %v759
        %v761 = vpop.xlane.xlu0 %760
        %v762 = vsel %vm262, %v724, 0.0
        %763 = vadd.xlane.f32.xlu0 %v762
        %v764 = vpop.xlane.xlu0 %763
        %v765 = vsel %vm262, %v725, 0.0
        %766 = vadd.xlane.f32.xlu0 %v765
        %v767 = vpop.xlane.xlu0 %766
        %v768 = vsel %vm262, %v726, 0.0
        %769 = vadd.xlane.f32.xlu0 %v768
        %v770 = vpop.xlane.xlu0 %769
        %v771 = vsel %vm262, %v727, 0.0
        %772 = vadd.xlane.f32.xlu0 %v771
        %v773 = vpop.xlane.xlu0 %772
        %v774 = vsel %vm262, %v728, 0.0
        %775 = vadd.xlane.f32.xlu0 %v774
        %v776 = vpop.xlane.xlu0 %775
        %v777 = vsel %vm262, %v729, 0.0
        %778 = vadd.xlane.f32.xlu0 %v777
        %v779 = vpop.xlane.xlu0 %778
        %v780 = vsel %vm262, %v730, 0.0
        %781 = vadd.xlane.f32.xlu0 %v780
        %v782 = vpop.xlane.xlu0 %781
        %v783 = vsel %vm262, %v731, 0.0
        %784 = vadd.xlane.f32.xlu0 %v783
        %v785 = vpop.xlane.xlu0 %784
        %v786 = vsel %vm262, %v732, 0.0
        %787 = vadd.xlane.f32.xlu0 %v786
        %v788 = vpop.xlane.xlu0 %787
        %v789 = vsel %vm262, %v733, 0.0
        %790 = vadd.xlane.f32.xlu0 %v789
        %v791 = vpop.xlane.xlu0 %790
        %v792 = vsel %vm262, %v734, 0.0
        %793 = vadd.xlane.f32.xlu0 %v792
        %v794 = vpop.xlane.xlu0 %793
        %v795 = vsel %vm262, %v735, 0.0
        %796 = vadd.xlane.f32.xlu0 %v795
        %v797 = vpop.xlane.xlu0 %796
        %v798 = vsel %vm262, %v736, 0.0
        %799 = vadd.xlane.f32.xlu0 %v798
        %v800 = vpop.xlane.xlu0 %799
        %v801 = vsel %vm262, %v737, 0.0
        %802 = vadd.xlane.f32.xlu0 %v801
        %v803 = vpop.xlane.xlu0 %802
        %v804 = vsel %vm262, %v738, 0.0
        %805 = vadd.xlane.f32.xlu0 %v804
        %v806 = vpop.xlane.xlu0 %805
        %v807 = vsel %vm262, %v739, 0.0
        %808 = vadd.xlane.f32.xlu0 %v807
        %v809 = vpop.xlane.xlu0 %808
        %v810 = vsel %vm262, %v740, 0.0
        %811 = vadd.xlane.f32.xlu0 %v810
        %v812 = vpop.xlane.xlu0 %811
        %v813 = vsel %vm262, %v741, 0.0
        %814 = vadd.xlane.f32.xlu0 %v813
        %v815 = vpop.xlane.xlu0 %814
        %v816 = vsel %vm262, %v742, 0.0
        %817 = vadd.xlane.f32.xlu0 %v816
        %v818 = vpop.xlane.xlu0 %817
        %v819 = vsel %vm262, %v743, 0.0
        %820 = vadd.xlane.f32.xlu0 %v819
        %v821 = vpop.xlane.xlu0 %820
        %v822 = vsel %vm262, %v744, 0.0
        %823 = vadd.xlane.f32.xlu0 %v822
        %v824 = vpop.xlane.xlu0 %823
        %v825 = vsel %vm262, %v745, 0.0
        %826 = vadd.xlane.f32.xlu0 %v825
        %v827 = vpop.xlane.xlu0 %826
        %v828 = vsel %vm262, %v746, 0.0
        %829 = vadd.xlane.f32.xlu0 %v828
        %v830 = vpop.xlane.xlu0 %829
        %v831 = vsel %vm262, %v747, 0.0
        %832 = vadd.xlane.f32.xlu0 %v831
        %v833 = vpop.xlane.xlu0 %832
        %v834 = vsel %vm262, %v748, 0.0
        %835 = vadd.xlane.f32.xlu0 %v834
        %v836 = vpop.xlane.xlu0 %835
        %v837 = vsel %vm262, %v749, 0.0
        %838 = vadd.xlane.f32.xlu0 %v837
        %v839 = vpop.xlane.xlu0 %838
        %v840 = vsel %vm262, %v750, 0.0
        %841 = vadd.xlane.f32.xlu0 %v840
        %v842 = vpop.xlane.xlu0 %841
        %v843 = vsel %vm262, %v751, 0.0
        %844 = vadd.xlane.f32.xlu0 %v843
        %v845 = vpop.xlane.xlu0 %844
        %v846 = vsel %vm262, %v752, 0.0
        %847 = vadd.xlane.f32.xlu0 %v846
        %v848 = vpop.xlane.xlu0 %847
        %v849 = vmul.f32 %v755, 0.03125
        %v850 = vmul.f32 %v758, 0.03125
        %v851 = vmul.f32 %v761, 0.03125
        %v852 = vmul.f32 %v764, 0.03125
        %v853 = vmul.f32 %v767, 0.03125
        %v854 = vmul.f32 %v770, 0.03125
        %v855 = vmul.f32 %v773, 0.03125
        %v856 = vmul.f32 %v776, 0.03125
        %v857 = vmul.f32 %v779, 0.03125
        %v858 = vmul.f32 %v782, 0.03125
        %v859 = vmul.f32 %v785, 0.03125
        %v860 = vmul.f32 %v788, 0.03125
        %v861 = vmul.f32 %v791, 0.03125
        %v862 = vmul.f32 %v794, 0.03125
        %v863 = vmul.f32 %v797, 0.03125
        %v864 = vmul.f32 %v800, 0.03125
        %v865 = vmul.f32 %v803, 0.03125
        %v866 = vmul.f32 %v806, 0.03125
        %v867 = vmul.f32 %v809, 0.03125
        %v868 = vmul.f32 %v812, 0.03125
        %v869 = vmul.f32 %v815, 0.03125
        %v870 = vmul.f32 %v818, 0.03125
        %v871 = vmul.f32 %v821, 0.03125
        %v872 = vmul.f32 %v824, 0.03125
        %v873 = vmul.f32 %v827, 0.03125
        %v874 = vmul.f32 %v830, 0.03125
        %v875 = vmul.f32 %v833, 0.03125
        %v876 = vmul.f32 %v836, 0.03125
        %v877 = vmul.f32 %v839, 0.03125
        %v878 = vmul.f32 %v842, 0.03125
        %v879 = vmul.f32 %v845, 0.03125
        %v880 = vmul.f32 %v848, 0.03125
        %v881 = vsel %vm262, %v721, -inf
        %882 = vmax.xlane.f32.xlu0 %v881
        %v883 = vpop.xlane.xlu0 %882
        %v884 = vsel %vm262, %v722, -inf
        %885 = vmax.xlane.f32.xlu0 %v884
        %v886 = vpop.xlane.xlu0 %885
        %v887 = vsel %vm262, %v723, -inf
        %888 = vmax.xlane.f32.xlu0 %v887
        %v889 = vpop.xlane.xlu0 %888
        %v890 = vsel %vm262, %v724, -inf
        %891 = vmax.xlane.f32.xlu0 %v890
        %v892 = vpop.xlane.xlu0 %891
        %v893 = vsel %vm262, %v725, -inf
        %894 = vmax.xlane.f32.xlu0 %v893
        %v895 = vpop.xlane.xlu0 %894
        %v896 = vsel %vm262, %v726, -inf
        %897 = vmax.xlane.f32.xlu0 %v896
        %v898 = vpop.xlane.xlu0 %897
        %v899 = vsel %vm262, %v727, -inf
        %900 = vmax.xlane.f32.xlu0 %v899
        %v901 = vpop.xlane.xlu0 %900
        %v902 = vsel %vm262, %v728, -inf
        %903 = vmax.xlane.f32.xlu0 %v902
        %v904 = vpop.xlane.xlu0 %903
        %v905 = vsel %vm262, %v729, -inf
        %906 = vmax.xlane.f32.xlu0 %v905
        %v907 = vpop.xlane.xlu0 %906
        %v908 = vsel %vm262, %v730, -inf
        %909 = vmax.xlane.f32.xlu0 %v908
        %v910 = vpop.xlane.xlu0 %909
        %v911 = vsel %vm262, %v731, -inf
        %912 = vmax.xlane.f32.xlu0 %v911
        %v913 = vpop.xlane.xlu0 %912
        %v914 = vsel %vm262, %v732, -inf
        %915 = vmax.xlane.f32.xlu0 %v914
        %v916 = vpop.xlane.xlu0 %915
        %v917 = vsel %vm262, %v733, -inf
        %918 = vmax.xlane.f32.xlu0 %v917
        %v919 = vpop.xlane.xlu0 %918
        %v920 = vsel %vm262, %v734, -inf
        %921 = vmax.xlane.f32.xlu0 %v920
        %v922 = vpop.xlane.xlu0 %921
        %v923 = vsel %vm262, %v735, -inf
        %924 = vmax.xlane.f32.xlu0 %v923
        %v925 = vpop.xlane.xlu0 %924
        %v926 = vsel %vm262, %v736, -inf
        %927 = vmax.xlane.f32.xlu0 %v926
        %v928 = vpop.xlane.xlu0 %927
        %v929 = vsel %vm262, %v737, -inf
        %930 = vmax.xlane.f32.xlu0 %v929
        %v931 = vpop.xlane.xlu0 %930
        %v932 = vsel %vm262, %v738, -inf
        %933 = vmax.xlane.f32.xlu0 %v932
        %v934 = vpop.xlane.xlu0 %933
        %v935 = vsel %vm262, %v739, -inf
        %936 = vmax.xlane.f32.xlu0 %v935
        %v937 = vpop.xlane.xlu0 %936
        %v938 = vsel %vm262, %v740, -inf
        %939 = vmax.xlane.f32.xlu0 %v938
        %v940 = vpop.xlane.xlu0 %939
        %v941 = vsel %vm262, %v741, -inf
        %942 = vmax.xlane.f32.xlu0 %v941
        %v943 = vpop.xlane.xlu0 %942
        %v944 = vsel %vm262, %v742, -inf
        %945 = vmax.xlane.f32.xlu0 %v944
        %v946 = vpop.xlane.xlu0 %945
        %v947 = vsel %vm262, %v743, -inf
        %948 = vmax.xlane.f32.xlu0 %v947
        %v949 = vpop.xlane.xlu0 %948
        %v950 = vsel %vm262, %v744, -inf
        %951 = vmax.xlane.f32.xlu0 %v950
        %v952 = vpop.xlane.xlu0 %951
        %v953 = vsel %vm262, %v745, -inf
        %954 = vmax.xlane.f32.xlu0 %v953
        %v955 = vpop.xlane.xlu0 %954
        %v956 = vsel %vm262, %v746, -inf
        %957 = vmax.xlane.f32.xlu0 %v956
        %v958 = vpop.xlane.xlu0 %957
        %v959 = vsel %vm262, %v747, -inf
        %960 = vmax.xlane.f32.xlu0 %v959
        %v961 = vpop.xlane.xlu0 %960
        %v962 = vsel %vm262, %v748, -inf
        %963 = vmax.xlane.f32.xlu0 %v962
        %v964 = vpop.xlane.xlu0 %963
        %v965 = vsel %vm262, %v749, -inf
        %966 = vmax.xlane.f32.xlu0 %v965
        %v967 = vpop.xlane.xlu0 %966
        %v968 = vsel %vm262, %v750, -inf
        %969 = vmax.xlane.f32.xlu0 %v968
        %v970 = vpop.xlane.xlu0 %969
        %v971 = vsel %vm262, %v751, -inf
        %972 = vmax.xlane.f32.xlu0 %v971
        %v973 = vpop.xlane.xlu0 %972
        %v974 = vsel %vm262, %v752, -inf
        %975 = vmax.xlane.f32.xlu0 %v974
        %v976 = vpop.xlane.xlu0 %975
        %977 = vst [vmem:[#allocation2] sm:$0xff] 0.0
        %978 = vst [vmem:[#allocation2 + $0x8] sm:$0xff] 0.0
        %979 = vst [vmem:[#allocation2 + $0x10] sm:$0xff] 0.0
        %980 = vst [vmem:[#allocation3] sm:$0xff] 0.0
        %981 = vst [vmem:[#allocation3 + $0x8] sm:$0xff] 0.0
        %982 = vst [vmem:[#allocation3 + $0x10] sm:$0xff] 0.0
        %v1015 = vlaneseq
        %v1016 = vand.u32 %v1015, 127
        %v1017 = vadd.s32 %v1016, 4294967293
        %v1018 = vlaneseq
        %v1019 = vshrl.u32 %v1018, 7
        %v1020 = vsub.s32 %v1017, %v1019
        %v1021 = vrot.slane %v849, %v1020
        %v1022 = vadd.s32 %v1016, 4294967285
        %v1023 = vlaneseq
        %v1024 = vshrl.u32 %v1023, 7
        %v1025 = vsub.s32 %v1022, %v1024
        %v1026 = vrot.slane %v850, %v1025
        %vm1027 = vcmask 154712
        %v1028 = vsel %vm1027, %v1026, %v1021
        %v1029 = vlaneseq
        %v1030 = vshrl.u32 %v1029, 7
        %v1031 = vsub.s32 %v1017, %v1030
        %v1032 = vrot.slane %v851, %v1031
        %v1033 = vlaneseq
        %v1034 = vshrl.u32 %v1033, 7
        %v1035 = vsub.s32 %v1022, %v1034
        %v1036 = vrot.slane %v852, %v1035
        %v1037 = vsel %vm1027, %v1036, %v1032
        %v1038 = vlaneseq
        %v1039 = vshrl.u32 %v1038, 7
        %v1040 = vsub.s32 %v1017, %v1039
        %v1041 = vrot.slane %v853, %v1040
        %v1042 = vlaneseq
        %v1043 = vshrl.u32 %v1042, 7
        %v1044 = vsub.s32 %v1022, %v1043
        %v1045 = vrot.slane %v854, %v1044
        %v1046 = vsel %vm1027, %v1045, %v1041
        %v1047 = vlaneseq
        %v1048 = vshrl.u32 %v1047, 7
        %v1049 = vsub.s32 %v1017, %v1048
        %v1050 = vrot.slane %v855, %v1049
        %v1051 = vlaneseq
        %v1052 = vshrl.u32 %v1051, 7
        %v1053 = vsub.s32 %v1022, %v1052
        %v1054 = vrot.slane %v856, %v1053
        %v1055 = vsel %vm1027, %v1054, %v1050
        %v1056 = vlaneseq
        %v1057 = vshrl.u32 %v1056, 7
        %v1058 = vsub.s32 %v1017, %v1057
        %v1059 = vrot.slane %v857, %v1058
        %v1060 = vlaneseq
        %v1061 = vshrl.u32 %v1060, 7
        %v1062 = vsub.s32 %v1022, %v1061
        %v1063 = vrot.slane %v858, %v1062
        %v1064 = vsel %vm1027, %v1063, %v1059
        %v1065 = vlaneseq
        %v1066 = vshrl.u32 %v1065, 7
        %v1067 = vsub.s32 %v1017, %v1066
        %v1068 = vrot.slane %v859, %v1067
        %v1069 = vlaneseq
        %v1070 = vshrl.u32 %v1069, 7
        %v1071 = vsub.s32 %v1022, %v1070
        %v1072 = vrot.slane %v860, %v1071
        %v1073 = vsel %vm1027, %v1072, %v1068
        %v1074 = vlaneseq
        %v1075 = vshrl.u32 %v1074, 7
        %v1076 = vsub.s32 %v1017, %v1075
        %v1077 = vrot.slane %v861, %v1076
        %v1078 = vlaneseq
        %v1079 = vshrl.u32 %v1078, 7
        %v1080 = vsub.s32 %v1022, %v1079
        %v1081 = vrot.slane %v862, %v1080
        %v1082 = vsel %vm1027, %v1081, %v1077
        %v1083 = vlaneseq
        %v1084 = vshrl.u32 %v1083, 7
        %v1085 = vsub.s32 %v1017, %v1084
        %v1086 = vrot.slane %v863, %v1085
        %v1087 = vlaneseq
        %v1088 = vshrl.u32 %v1087, 7
        %v1089 = vsub.s32 %v1022, %v1088
        %v1090 = vrot.slane %v864, %v1089
        %v1091 = vsel %vm1027, %v1090, %v1086
        %v1092 = vlaneseq
        %v1093 = vshrl.u32 %v1092, 7
        %v1094 = vsub.s32 %v1017, %v1093
        %v1095 = vrot.slane %v865, %v1094
        %v1096 = vlaneseq
        %v1097 = vshrl.u32 %v1096, 7
        %v1098 = vsub.s32 %v1022, %v1097
        %v1099 = vrot.slane %v866, %v1098
        %v1100 = vsel %vm1027, %v1099, %v1095
        %v1101 = vlaneseq
        %v1102 = vshrl.u32 %v1101, 7
        %v1103 = vsub.s32 %v1017, %v1102
        %v1104 = vrot.slane %v867, %v1103
        %v1105 = vlaneseq
        %v1106 = vshrl.u32 %v1105, 7
        %v1107 = vsub.s32 %v1022, %v1106
        %v1108 = vrot.slane %v868, %v1107
        %v1109 = vsel %vm1027, %v1108, %v1104
        %v1110 = vlaneseq
        %v1111 = vshrl.u32 %v1110, 7
        %v1112 = vsub.s32 %v1017, %v1111
        %v1113 = vrot.slane %v869, %v1112
        %v1114 = vlaneseq
        %v1115 = vshrl.u32 %v1114, 7
        %v1116 = vsub.s32 %v1022, %v1115
        %v1117 = vrot.slane %v870, %v1116
        %v1118 = vsel %vm1027, %v1117, %v1113
        %v1119 = vlaneseq
        %v1120 = vshrl.u32 %v1119, 7
        %v1121 = vsub.s32 %v1017, %v1120
        %v1122 = vrot.slane %v871, %v1121
        %v1123 = vlaneseq
        %v1124 = vshrl.u32 %v1123, 7
        %v1125 = vsub.s32 %v1022, %v1124
        %v1126 = vrot.slane %v872, %v1125
        %v1127 = vsel %vm1027, %v1126, %v1122
        %v1128 = vlaneseq
        %v1129 = vshrl.u32 %v1128, 7
        %v1130 = vsub.s32 %v1017, %v1129
        %v1131 = vrot.slane %v873, %v1130
        %v1132 = vlaneseq
        %v1133 = vshrl.u32 %v1132, 7
        %v1134 = vsub.s32 %v1022, %v1133
        %v1135 = vrot.slane %v874, %v1134
        %v1136 = vsel %vm1027, %v1135, %v1131
        %v1137 = vlaneseq
        %v1138 = vshrl.u32 %v1137, 7
        %v1139 = vsub.s32 %v1017, %v1138
        %v1140 = vrot.slane %v875, %v1139
        %v1141 = vlaneseq
        %v1142 = vshrl.u32 %v1141, 7
        %v1143 = vsub.s32 %v1022, %v1142
        %v1144 = vrot.slane %v876, %v1143
        %v1145 = vsel %vm1027, %v1144, %v1140
        %v1146 = vlaneseq
        %v1147 = vshrl.u32 %v1146, 7
        %v1148 = vsub.s32 %v1017, %v1147
        %v1149 = vrot.slane %v877, %v1148
        %v1150 = vlaneseq
        %v1151 = vshrl.u32 %v1150, 7
        %v1152 = vsub.s32 %v1022, %v1151
        %v1153 = vrot.slane %v878, %v1152
        %v1154 = vsel %vm1027, %v1153, %v1149
        %v1155 = vlaneseq
        %v1156 = vshrl.u32 %v1155, 7
        %v1157 = vsub.s32 %v1017, %v1156
        %v1158 = vrot.slane %v879, %v1157
        %v1159 = vlaneseq
        %v1160 = vshrl.u32 %v1159, 7
        %v1161 = vsub.s32 %v1022, %v1160
        %v1162 = vrot.slane %v880, %v1161
        %v1163 = vsel %vm1027, %v1162, %v1158
        %vm1164 = vcmask 1041409
        %v1165 = vsel %vm1164, %v1037, %v1028
        %vm1166 = vcmask 1042434
        %v1167 = vsel %vm1166, %v1046, %v1165
        %vm1168 = vcmask 1043459
        %v1169 = vsel %vm1168, %v1055, %v1167
        %vm1170 = vcmask 1044484
        %v1171 = vsel %vm1170, %v1064, %v1169
        %vm1172 = vcmask 1045509
        %v1173 = vsel %vm1172, %v1073, %v1171
        %vm1174 = vcmask 1046534
        %v1175 = vsel %vm1174, %v1082, %v1173
        %vm1176 = vcmask 1047559
        %v1177 = vsel %vm1176, %v1091, %v1175
        %v1178 = vsel %vm1164, %v1109, %v1100
        %v1179 = vsel %vm1166, %v1118, %v1178
        %v1180 = vsel %vm1168, %v1127, %v1179
        %v1181 = vsel %vm1170, %v1136, %v1180
        %v1182 = vsel %vm1172, %v1145, %v1181
        %v1183 = vsel %vm1174, %v1154, %v1182
        %v1184 = vsel %vm1176, %v1163, %v1183
        %vm1187 = vcmask 154648
        %1188 = vst.msk [vmem:[#allocation2 + $0x3] sm:$0xff] %vm1187, %v1177
        %1189 = vst.msk [vmem:[#allocation2 + $0xb] sm:$0xff] %vm1187, %v1184
        %v1222 = vlaneseq
        %v1223 = vshrl.u32 %v1222, 7
        %v1224 = vsub.s32 %v1017, %v1223
        %v1225 = vrot.slane %v883, %v1224
        %v1226 = vlaneseq
        %v1227 = vshrl.u32 %v1226, 7
        %v1228 = vsub.s32 %v1022, %v1227
        %v1229 = vrot.slane %v886, %v1228
        %v1230 = vsel %vm1027, %v1229, %v1225
        %v1231 = vlaneseq
        %v1232 = vshrl.u32 %v1231, 7
        %v1233 = vsub.s32 %v1017, %v1232
        %v1234 = vrot.slane %v889, %v1233
        %v1235 = vlaneseq
        %v1236 = vshrl.u32 %v1235, 7
        %v1237 = vsub.s32 %v1022, %v1236
        %v1238 = vrot.slane %v892, %v1237
        %v1239 = vsel %vm1027, %v1238, %v1234
        %v1240 = vlaneseq
        %v1241 = vshrl.u32 %v1240, 7
        %v1242 = vsub.s32 %v1017, %v1241
        %v1243 = vrot.slane %v895, %v1242
        %v1244 = vlaneseq
        %v1245 = vshrl.u32 %v1244, 7
        %v1246 = vsub.s32 %v1022, %v1245
        %v1247 = vrot.slane %v898, %v1246
        %v1248 = vsel %vm1027, %v1247, %v1243
        %v1249 = vlaneseq
        %v1250 = vshrl.u32 %v1249, 7
        %v1251 = vsub.s32 %v1017, %v1250
        %v1252 = vrot.slane %v901, %v1251
        %v1253 = vlaneseq
        %v1254 = vshrl.u32 %v1253, 7
        %v1255 = vsub.s32 %v1022, %v1254
        %v1256 = vrot.slane %v904, %v1255
        %v1257 = vsel %vm1027, %v1256, %v1252
        %v1258 = vlaneseq
        %v1259 = vshrl.u32 %v1258, 7
        %v1260 = vsub.s32 %v1017, %v1259
        %v1261 = vrot.slane %v907, %v1260
        %v1262 = vlaneseq
        %v1263 = vshrl.u32 %v1262, 7
        %v1264 = vsub.s32 %v1022, %v1263
        %v1265 = vrot.slane %v910, %v1264
        %v1266 = vsel %vm1027, %v1265, %v1261
        %v1267 = vlaneseq
        %v1268 = vshrl.u32 %v1267, 7
        %v1269 = vsub.s32 %v1017, %v1268
        %v1270 = vrot.slane %v913, %v1269
        %v1271 = vlaneseq
        %v1272 = vshrl.u32 %v1271, 7
        %v1273 = vsub.s32 %v1022, %v1272
        %v1274 = vrot.slane %v916, %v1273
        %v1275 = vsel %vm1027, %v1274, %v1270
        %v1276 = vlaneseq
        %v1277 = vshrl.u32 %v1276, 7
        %v1278 = vsub.s32 %v1017, %v1277
        %v1279 = vrot.slane %v919, %v1278
        %v1280 = vlaneseq
        %v1281 = vshrl.u32 %v1280, 7
        %v1282 = vsub.s32 %v1022, %v1281
        %v1283 = vrot.slane %v922, %v1282
        %v1284 = vsel %vm1027, %v1283, %v1279
        %v1285 = vlaneseq
        %v1286 = vshrl.u32 %v1285, 7
        %v1287 = vsub.s32 %v1017, %v1286
        %v1288 = vrot.slane %v925, %v1287
        %v1289 = vlaneseq
        %v1290 = vshrl.u32 %v1289, 7
        %v1291 = vsub.s32 %v1022, %v1290
        %v1292 = vrot.slane %v928, %v1291
        %v1293 = vsel %vm1027, %v1292, %v1288
        %v1294 = vlaneseq
        %v1295 = vshrl.u32 %v1294, 7
        %v1296 = vsub.s32 %v1017, %v1295
        %v1297 = vrot.slane %v931, %v1296
        %v1298 = vlaneseq
        %v1299 = vshrl.u32 %v1298, 7
        %v1300 = vsub.s32 %v1022, %v1299
        %v1301 = vrot.slane %v934, %v1300
        %v1302 = vsel %vm1027, %v1301, %v1297
        %v1303 = vlaneseq
        %v1304 = vshrl.u32 %v1303, 7
        %v1305 = vsub.s32 %v1017, %v1304
        %v1306 = vrot.slane %v937, %v1305
        %v1307 = vlaneseq
        %v1308 = vshrl.u32 %v1307, 7
        %v1309 = vsub.s32 %v1022, %v1308
        %v1310 = vrot.slane %v940, %v1309
        %v1311 = vsel %vm1027, %v1310, %v1306
        %v1312 = vlaneseq
        %v1313 = vshrl.u32 %v1312, 7
        %v1314 = vsub.s32 %v1017, %v1313
        %v1315 = vrot.slane %v943, %v1314
        %v1316 = vlaneseq
        %v1317 = vshrl.u32 %v1316, 7
        %v1318 = vsub.s32 %v1022, %v1317
        %v1319 = vrot.slane %v946, %v1318
        %v1320 = vsel %vm1027, %v1319, %v1315
        %v1321 = vlaneseq
        %v1322 = vshrl.u32 %v1321, 7
        %v1323 = vsub.s32 %v1017, %v1322
        %v1324 = vrot.slane %v949, %v1323
        %v1325 = vlaneseq
        %v1326 = vshrl.u32 %v1325, 7
        %v1327 = vsub.s32 %v1022, %v1326
        %v1328 = vrot.slane %v952, %v1327
        %v1329 = vsel %vm1027, %v1328, %v1324
        %v1330 = vlaneseq
        %v1331 = vshrl.u32 %v1330, 7
        %v1332 = vsub.s32 %v1017, %v1331
        %v1333 = vrot.slane %v955, %v1332
        %v1334 = vlaneseq
        %v1335 = vshrl.u32 %v1334, 7
        %v1336 = vsub.s32 %v1022, %v1335
        %v1337 = vrot.slane %v958, %v1336
        %v1338 = vsel %vm1027, %v1337, %v1333
        %v1339 = vlaneseq
        %v1340 = vshrl.u32 %v1339, 7
        %v1341 = vsub.s32 %v1017, %v1340
        %v1342 = vrot.slane %v961, %v1341
        %v1343 = vlaneseq
        %v1344 = vshrl.u32 %v1343, 7
        %v1345 = vsub.s32 %v1022, %v1344
        %v1346 = vrot.slane %v964, %v1345
        %v1347 = vsel %vm1027, %v1346, %v1342
        %v1348 = vlaneseq
        %v1349 = vshrl.u32 %v1348, 7
        %v1350 = vsub.s32 %v1017, %v1349
        %v1351 = vrot.slane %v967, %v1350
        %v1352 = vlaneseq
        %v1353 = vshrl.u32 %v1352, 7
        %v1354 = vsub.s32 %v1022, %v1353
        %v1355 = vrot.slane %v970, %v1354
        %v1356 = vsel %vm1027, %v1355, %v1351
        %v1357 = vlaneseq
        %v1358 = vshrl.u32 %v1357, 7
        %v1359 = vsub.s32 %v1017, %v1358
        %v1360 = vrot.slane %v973, %v1359
        %v1361 = vlaneseq
        %v1362 = vshrl.u32 %v1361, 7
        %v1363 = vsub.s32 %v1022, %v1362
        %v1364 = vrot.slane %v976, %v1363
        %v1365 = vsel %vm1027, %v1364, %v1360
        %v1366 = vsel %vm1164, %v1239, %v1230
        %v1367 = vsel %vm1166, %v1248, %v1366
        %v1368 = vsel %vm1168, %v1257, %v1367
        %v1369 = vsel %vm1170, %v1266, %v1368
        %v1370 = vsel %vm1172, %v1275, %v1369
        %v1371 = vsel %vm1174, %v1284, %v1370
        %v1372 = vsel %vm1176, %v1293, %v1371
        %v1373 = vsel %vm1164, %v1311, %v1302
        %v1374 = vsel %vm1166, %v1320, %v1373
        %v1375 = vsel %vm1168, %v1329, %v1374
        %v1376 = vsel %vm1170, %v1338, %v1375
        %v1377 = vsel %vm1172, %v1347, %v1376
        %v1378 = vsel %vm1174, %v1356, %v1377
        %v1379 = vsel %vm1176, %v1365, %v1378
        %1382 = vst.msk [vmem:[#allocation3 + $0x3] sm:$0xff] %vm1187, %v1372
        %1383 = vst.msk [vmem:[#allocation3 + $0xb] sm:$0xff] %vm1187, %v1379
        %v1384 = vld [vmem:[#allocation2] sm:$0xff]
        %v1385 = vld [vmem:[#allocation2 + $0x8] sm:$0xff]
        %v1386 = vld [vmem:[#allocation3] sm:$0xff]
        %v1387 = vld [vmem:[#allocation3 + $0x8] sm:$0xff]
        %s1388 = sld [smem:[#allocation9]]
        %v1389 = vstv %s1388
        %v1390 = vmul.f32 %v1389, %v1384
        %v1391 = vmul.f32 %v1389, %v1385
        %v1392 = vadd.f32 %v1390, 0.0
        %v1393 = vadd.f32 %v1391, 0.0
        %s1394 = sld [smem:[#allocation9 + $0x80]]
        %v1395 = vstv %s1394
        %v1396 = vmul.f32 %v1395, %v1386
        %v1397 = vmul.f32 %v1395, %v1387
        %v1398 = vadd.f32 %v1392, %v1396
        %v1399 = vadd.f32 %v1393, %v1397
        %s1400 = sld [smem:[#allocation9 + $0x1]]
        %v1401 = vstv %s1400
        %v1402 = vmul.f32 %v1401, %v1384
        %v1403 = vmul.f32 %v1401, %v1385
        %v1404 = vadd.f32 %v1402, 0.0
        %v1405 = vadd.f32 %v1403, 0.0
        %s1406 = sld [smem:[#allocation9 + $0x81]]
        %v1407 = vstv %s1406
        %v1408 = vmul.f32 %v1407, %v1386
        %v1409 = vmul.f32 %v1407, %v1387
        %v1410 = vadd.f32 %v1404, %v1408
        %v1411 = vadd.f32 %v1405, %v1409
        %s1412 = sld [smem:[#allocation9 + $0x2]]
        %v1413 = vstv %s1412
        %v1414 = vmul.f32 %v1413, %v1384
        %v1415 = vmul.f32 %v1413, %v1385
        %v1416 = vadd.f32 %v1414, 0.0
        %v1417 = vadd.f32 %v1415, 0.0
        %s1418 = sld [smem:[#allocation9 + $0x82]]
        %v1419 = vstv %s1418
        %v1420 = vmul.f32 %v1419, %v1386
        %v1421 = vmul.f32 %v1419, %v1387
        %v1422 = vadd.f32 %v1416, %v1420
        %v1423 = vadd.f32 %v1417, %v1421
        %s1424 = sld [smem:[#allocation9 + $0x3]]
        %v1425 = vstv %s1424
        %v1426 = vmul.f32 %v1425, %v1384
        %v1427 = vmul.f32 %v1425, %v1385
        %v1428 = vadd.f32 %v1426, 0.0
        %v1429 = vadd.f32 %v1427, 0.0
        %s1430 = sld [smem:[#allocation9 + $0x83]]
        %v1431 = vstv %s1430
        %v1432 = vmul.f32 %v1431, %v1386
        %v1433 = vmul.f32 %v1431, %v1387
        %v1434 = vadd.f32 %v1428, %v1432
        %v1435 = vadd.f32 %v1429, %v1433
        %s1436 = sld [smem:[#allocation9 + $0x4]]
        %v1437 = vstv %s1436
        %v1438 = vmul.f32 %v1437, %v1384
        %v1439 = vmul.f32 %v1437, %v1385
        %v1440 = vadd.f32 %v1438, 0.0
        %v1441 = vadd.f32 %v1439, 0.0
        %s1442 = sld [smem:[#allocation9 + $0x84]]
        %v1443 = vstv %s1442
        %v1444 = vmul.f32 %v1443, %v1386
        %v1445 = vmul.f32 %v1443, %v1387
        %v1446 = vadd.f32 %v1440, %v1444
        %v1447 = vadd.f32 %v1441, %v1445
        %s1448 = sld [smem:[#allocation9 + $0x5]]
        %v1449 = vstv %s1448
        %v1450 = vmul.f32 %v1449, %v1384
        %v1451 = vmul.f32 %v1449, %v1385
        %v1452 = vadd.f32 %v1450, 0.0
        %v1453 = vadd.f32 %v1451, 0.0
        %s1454 = sld [smem:[#allocation9 + $0x85]]
        %v1455 = vstv %s1454
        %v1456 = vmul.f32 %v1455, %v1386
        %v1457 = vmul.f32 %v1455, %v1387
        %v1458 = vadd.f32 %v1452, %v1456
        %v1459 = vadd.f32 %v1453, %v1457
        %s1460 = sld [smem:[#allocation9 + $0x6]]
        %v1461 = vstv %s1460
        %v1462 = vmul.f32 %v1461, %v1384
        %v1463 = vmul.f32 %v1461, %v1385
        %v1464 = vadd.f32 %v1462, 0.0
        %v1465 = vadd.f32 %v1463, 0.0
        %s1466 = sld [smem:[#allocation9 + $0x86]]
        %v1467 = vstv %s1466
        %v1468 = vmul.f32 %v1467, %v1386
        %v1469 = vmul.f32 %v1467, %v1387
        %v1470 = vadd.f32 %v1464, %v1468
        %v1471 = vadd.f32 %v1465, %v1469
        %v1472 = vld [vmem:[#allocation2 + $0x1] sm:$0xff]
        %v1473 = vld [vmem:[#allocation2 + $0x9] sm:$0xff]
        %v1474 = vld [vmem:[#allocation3 + $0x1] sm:$0xff]
        %v1475 = vld [vmem:[#allocation3 + $0x9] sm:$0xff]
        %s1476 = sld [smem:[#allocation9 + $0x7]]
        %v1477 = vstv %s1476
        %v1478 = vmul.f32 %v1477, %v1472
        %v1479 = vmul.f32 %v1477, %v1473
        %v1480 = vadd.f32 %v1398, %v1478
        %v1481 = vadd.f32 %v1399, %v1479
        %s1482 = sld [smem:[#allocation9 + $0x87]]
        %v1483 = vstv %s1482
        %v1484 = vmul.f32 %v1483, %v1474
        %v1485 = vmul.f32 %v1483, %v1475
        %v1486 = vadd.f32 %v1480, %v1484
        %v1487 = vadd.f32 %v1481, %v1485
        %s1488 = sld [smem:[#allocation9 + $0x8]]
        %v1489 = vstv %s1488
        %v1490 = vmul.f32 %v1489, %v1472
        %v1491 = vmul.f32 %v1489, %v1473
        %v1492 = vadd.f32 %v1410, %v1490
        %v1493 = vadd.f32 %v1411, %v1491
        %s1494 = sld [smem:[#allocation9 + $0x88]]
        %v1495 = vstv %s1494
        %v1496 = vmul.f32 %v1495, %v1474
        %v1497 = vmul.f32 %v1495, %v1475
        %v1498 = vadd.f32 %v1492, %v1496
        %v1499 = vadd.f32 %v1493, %v1497
        %s1500 = sld [smem:[#allocation9 + $0x9]]
        %v1501 = vstv %s1500
        %v1502 = vmul.f32 %v1501, %v1472
        %v1503 = vmul.f32 %v1501, %v1473
        %v1504 = vadd.f32 %v1422, %v1502
        %v1505 = vadd.f32 %v1423, %v1503
        %s1506 = sld [smem:[#allocation9 + $0x89]]
        %v1507 = vstv %s1506
        %v1508 = vmul.f32 %v1507, %v1474
        %v1509 = vmul.f32 %v1507, %v1475
        %v1510 = vadd.f32 %v1504, %v1508
        %v1511 = vadd.f32 %v1505, %v1509
        %s1512 = sld [smem:[#allocation9 + $0xa]]
        %v1513 = vstv %s1512
        %v1514 = vmul.f32 %v1513, %v1472
        %v1515 = vmul.f32 %v1513, %v1473
        %v1516 = vadd.f32 %v1434, %v1514
        %v1517 = vadd.f32 %v1435, %v1515
        %s1518 = sld [smem:[#allocation9 + $0x8a]]
        %v1519 = vstv %s1518
        %v1520 = vmul.f32 %v1519, %v1474
        %v1521 = vmul.f32 %v1519, %v1475
        %v1522 = vadd.f32 %v1516, %v1520
        %v1523 = vadd.f32 %v1517, %v1521
        %s1524 = sld [smem:[#allocation9 + $0xb]]
        %v1525 = vstv %s1524
        %v1526 = vmul.f32 %v1525, %v1472
        %v1527 = vmul.f32 %v1525, %v1473
        %v1528 = vadd.f32 %v1446, %v1526
        %v1529 = vadd.f32 %v1447, %v1527
        %s1530 = sld [smem:[#allocation9 + $0x8b]]
        %v1531 = vstv %s1530
        %v1532 = vmul.f32 %v1531, %v1474
        %v1533 = vmul.f32 %v1531, %v1475
        %v1534 = vadd.f32 %v1528, %v1532
        %v1535 = vadd.f32 %v1529, %v1533
        %s1536 = sld [smem:[#allocation9 + $0xc]]
        %v1537 = vstv %s1536
        %v1538 = vmul.f32 %v1537, %v1472
        %v1539 = vmul.f32 %v1537, %v1473
        %v1540 = vadd.f32 %v1458, %v1538
        %v1541 = vadd.f32 %v1459, %v1539
        %s1542 = sld [smem:[#allocation9 + $0x8c]]
        %v1543 = vstv %s1542
        %v1544 = vmul.f32 %v1543, %v1474
        %v1545 = vmul.f32 %v1543, %v1475
        %v1546 = vadd.f32 %v1540, %v1544
        %v1547 = vadd.f32 %v1541, %v1545
        %s1548 = sld [smem:[#allocation9 + $0xd]]
        %v1549 = vstv %s1548
        %v1550 = vmul.f32 %v1549, %v1472
        %v1551 = vmul.f32 %v1549, %v1473
        %v1552 = vadd.f32 %v1470, %v1550
        %v1553 = vadd.f32 %v1471, %v1551
        %s1554 = sld [smem:[#allocation9 + $0x8d]]
        %v1555 = vstv %s1554
        %v1556 = vmul.f32 %v1555, %v1474
        %v1557 = vmul.f32 %v1555, %v1475
        %v1558 = vadd.f32 %v1552, %v1556
        %v1559 = vadd.f32 %v1553, %v1557
        %v1560 = vld [vmem:[#allocation2 + $0x2] sm:$0xff]
        %v1561 = vld [vmem:[#allocation2 + $0xa] sm:$0xff]
        %v1562 = vld [vmem:[#allocation3 + $0x2] sm:$0xff]
        %v1563 = vld [vmem:[#allocation3 + $0xa] sm:$0xff]
        %s1564 = sld [smem:[#allocation9 + $0xe]]
        %v1565 = vstv %s1564
        %v1566 = vmul.f32 %v1565, %v1560
        %v1567 = vmul.f32 %v1565, %v1561
        %v1568 = vadd.f32 %v1486, %v1566
        %v1569 = vadd.f32 %v1487, %v1567
        %s1570 = sld [smem:[#allocation9 + $0x8e]]
        %v1571 = vstv %s1570
        %v1572 = vmul.f32 %v1571, %v1562
        %v1573 = vmul.f32 %v1571, %v1563
        %v1574 = vadd.f32 %v1568, %v1572
        %v1575 = vadd.f32 %v1569, %v1573
        %s1576 = sld [smem:[#allocation9 + $0xf]]
        %v1577 = vstv %s1576
        %v1578 = vmul.f32 %v1577, %v1560
        %v1579 = vmul.f32 %v1577, %v1561
        %v1580 = vadd.f32 %v1498, %v1578
        %v1581 = vadd.f32 %v1499, %v1579
        %s1582 = sld [smem:[#allocation9 + $0x8f]]
        %v1583 = vstv %s1582
        %v1584 = vmul.f32 %v1583, %v1562
        %v1585 = vmul.f32 %v1583, %v1563
        %v1586 = vadd.f32 %v1580, %v1584
        %v1587 = vadd.f32 %v1581, %v1585
        %s1588 = sld [smem:[#allocation9 + $0x10]]
        %v1589 = vstv %s1588
        %v1590 = vmul.f32 %v1589, %v1560
        %v1591 = vmul.f32 %v1589, %v1561
        %v1592 = vadd.f32 %v1510, %v1590
        %v1593 = vadd.f32 %v1511, %v1591
        %s1594 = sld [smem:[#allocation9 + $0x90]]
        %v1595 = vstv %s1594
        %v1596 = vmul.f32 %v1595, %v1562
        %v1597 = vmul.f32 %v1595, %v1563
        %v1598 = vadd.f32 %v1592, %v1596
        %v1599 = vadd.f32 %v1593, %v1597
        %s1600 = sld [smem:[#allocation9 + $0x11]]
        %v1601 = vstv %s1600
        %v1602 = vmul.f32 %v1601, %v1560
        %v1603 = vmul.f32 %v1601, %v1561
        %v1604 = vadd.f32 %v1522, %v1602
        %v1605 = vadd.f32 %v1523, %v1603
        %s1606 = sld [smem:[#allocation9 + $0x91]]
        %v1607 = vstv %s1606
        %v1608 = vmul.f32 %v1607, %v1562
        %v1609 = vmul.f32 %v1607, %v1563
        %v1610 = vadd.f32 %v1604, %v1608
        %v1611 = vadd.f32 %v1605, %v1609
        %s1612 = sld [smem:[#allocation9 + $0x12]]
        %v1613 = vstv %s1612
        %v1614 = vmul.f32 %v1613, %v1560
        %v1615 = vmul.f32 %v1613, %v1561
        %v1616 = vadd.f32 %v1534, %v1614
        %v1617 = vadd.f32 %v1535, %v1615
        %s1618 = sld [smem:[#allocation9 + $0x92]]
        %v1619 = vstv %s1618
        %v1620 = vmul.f32 %v1619, %v1562
        %v1621 = vmul.f32 %v1619, %v1563
        %v1622 = vadd.f32 %v1616, %v1620
        %v1623 = vadd.f32 %v1617, %v1621
        %s1624 = sld [smem:[#allocation9 + $0x13]]
        %v1625 = vstv %s1624
        %v1626 = vmul.f32 %v1625, %v1560
        %v1627 = vmul.f32 %v1625, %v1561
        %v1628 = vadd.f32 %v1546, %v1626
        %v1629 = vadd.f32 %v1547, %v1627
        %s1630 = sld [smem:[#allocation9 + $0x93]]
        %v1631 = vstv %s1630
        %v1632 = vmul.f32 %v1631, %v1562
        %v1633 = vmul.f32 %v1631, %v1563
        %v1634 = vadd.f32 %v1628, %v1632
        %v1635 = vadd.f32 %v1629, %v1633
        %s1636 = sld [smem:[#allocation9 + $0x14]]
        %v1637 = vstv %s1636
        %v1638 = vmul.f32 %v1637, %v1560
        %v1639 = vmul.f32 %v1637, %v1561
        %v1640 = vadd.f32 %v1558, %v1638
        %v1641 = vadd.f32 %v1559, %v1639
        %s1642 = sld [smem:[#allocation9 + $0x94]]
        %v1643 = vstv %s1642
        %v1644 = vmul.f32 %v1643, %v1562
        %v1645 = vmul.f32 %v1643, %v1563
        %v1646 = vadd.f32 %v1640, %v1644
        %v1647 = vadd.f32 %v1641, %v1645
        %v1648 = vld [vmem:[#allocation2 + $0x3] sm:$0xff]
        %v1649 = vld [vmem:[#allocation2 + $0xb] sm:$0xff]
        %v1650 = vld [vmem:[#allocation3 + $0x3] sm:$0xff]
        %v1651 = vld [vmem:[#allocation3 + $0xb] sm:$0xff]
        %s1652 = sld [smem:[#allocation9 + $0x15]]
        %v1653 = vstv %s1652
        %v1654 = vmul.f32 %v1653, %v1648
        %v1655 = vmul.f32 %v1653, %v1649
        %v1656 = vadd.f32 %v1574, %v1654
        %v1657 = vadd.f32 %v1575, %v1655
        %s1658 = sld [smem:[#allocation9 + $0x95]]
        %v1659 = vstv %s1658
        %v1660 = vmul.f32 %v1659, %v1650
        %v1661 = vmul.f32 %v1659, %v1651
        %v1662 = vadd.f32 %v1656, %v1660
        %v1663 = vadd.f32 %v1657, %v1661
        %s1664 = sld [smem:[#allocation9 + $0x16]]
        %v1665 = vstv %s1664
        %v1666 = vmul.f32 %v1665, %v1648
        %v1667 = vmul.f32 %v1665, %v1649
        %v1668 = vadd.f32 %v1586, %v1666
        %v1669 = vadd.f32 %v1587, %v1667
        %s1670 = sld [smem:[#allocation9 + $0x96]]
        %v1671 = vstv %s1670
        %v1672 = vmul.f32 %v1671, %v1650
        %v1673 = vmul.f32 %v1671, %v1651
        %v1674 = vadd.f32 %v1668, %v1672
        %v1675 = vadd.f32 %v1669, %v1673
        %s1676 = sld [smem:[#allocation9 + $0x17]]
        %v1677 = vstv %s1676
        %v1678 = vmul.f32 %v1677, %v1648
        %v1679 = vmul.f32 %v1677, %v1649
        %v1680 = vadd.f32 %v1598, %v1678
        %v1681 = vadd.f32 %v1599, %v1679
        %s1682 = sld [smem:[#allocation9 + $0x97]]
        %v1683 = vstv %s1682
        %v1684 = vmul.f32 %v1683, %v1650
        %v1685 = vmul.f32 %v1683, %v1651
        %v1686 = vadd.f32 %v1680, %v1684
        %v1687 = vadd.f32 %v1681, %v1685
        %s1688 = sld [smem:[#allocation9 + $0x18]]
        %v1689 = vstv %s1688
        %v1690 = vmul.f32 %v1689, %v1648
        %v1691 = vmul.f32 %v1689, %v1649
        %v1692 = vadd.f32 %v1610, %v1690
        %v1693 = vadd.f32 %v1611, %v1691
        %s1694 = sld [smem:[#allocation9 + $0x98]]
        %v1695 = vstv %s1694
        %v1696 = vmul.f32 %v1695, %v1650
        %v1697 = vmul.f32 %v1695, %v1651
        %v1698 = vadd.f32 %v1692, %v1696
        %v1699 = vadd.f32 %v1693, %v1697
        %s1700 = sld [smem:[#allocation9 + $0x19]]
        %v1701 = vstv %s1700
        %v1702 = vmul.f32 %v1701, %v1648
        %v1703 = vmul.f32 %v1701, %v1649
        %v1704 = vadd.f32 %v1622, %v1702
        %v1705 = vadd.f32 %v1623, %v1703
        %s1706 = sld [smem:[#allocation9 + $0x99]]
        %v1707 = vstv %s1706
        %v1708 = vmul.f32 %v1707, %v1650
        %v1709 = vmul.f32 %v1707, %v1651
        %v1710 = vadd.f32 %v1704, %v1708
        %v1711 = vadd.f32 %v1705, %v1709
        %s1712 = sld [smem:[#allocation9 + $0x1a]]
        %v1713 = vstv %s1712
        %v1714 = vmul.f32 %v1713, %v1648
        %v1715 = vmul.f32 %v1713, %v1649
        %v1716 = vadd.f32 %v1634, %v1714
        %v1717 = vadd.f32 %v1635, %v1715
        %s1718 = sld [smem:[#allocation9 + $0x9a]]
        %v1719 = vstv %s1718
        %v1720 = vmul.f32 %v1719, %v1650
        %v1721 = vmul.f32 %v1719, %v1651
        %v1722 = vadd.f32 %v1716, %v1720
        %v1723 = vadd.f32 %v1717, %v1721
        %s1724 = sld [smem:[#allocation9 + $0x1b]]
        %v1725 = vstv %s1724
        %v1726 = vmul.f32 %v1725, %v1648
        %v1727 = vmul.f32 %v1725, %v1649
        %v1728 = vadd.f32 %v1646, %v1726
        %v1729 = vadd.f32 %v1647, %v1727
        %s1730 = sld [smem:[#allocation9 + $0x9b]]
        %v1731 = vstv %s1730
        %v1732 = vmul.f32 %v1731, %v1650
        %v1733 = vmul.f32 %v1731, %v1651
        %v1734 = vadd.f32 %v1728, %v1732
        %v1735 = vadd.f32 %v1729, %v1733
        %v1736 = vld [vmem:[#allocation2 + $0x4] sm:$0xff]
        %v1737 = vld [vmem:[#allocation2 + $0xc] sm:$0xff]
        %v1738 = vld [vmem:[#allocation3 + $0x4] sm:$0xff]
        %v1739 = vld [vmem:[#allocation3 + $0xc] sm:$0xff]
        %s1740 = sld [smem:[#allocation9 + $0x1c]]
        %v1741 = vstv %s1740
        %v1742 = vmul.f32 %v1741, %v1736
        %v1743 = vmul.f32 %v1741, %v1737
        %v1744 = vadd.f32 %v1662, %v1742
        %v1745 = vadd.f32 %v1663, %v1743
        %s1746 = sld [smem:[#allocation9 + $0x9c]]
        %v1747 = vstv %s1746
        %v1748 = vmul.f32 %v1747, %v1738
        %v1749 = vmul.f32 %v1747, %v1739
        %v1750 = vadd.f32 %v1744, %v1748
        %v1751 = vadd.f32 %v1745, %v1749
        %s1752 = sld [smem:[#allocation9 + $0x1d]]
        %v1753 = vstv %s1752
        %v1754 = vmul.f32 %v1753, %v1736
        %v1755 = vmul.f32 %v1753, %v1737
        %v1756 = vadd.f32 %v1674, %v1754
        %v1757 = vadd.f32 %v1675, %v1755
        %s1758 = sld [smem:[#allocation9 + $0x9d]]
        %v1759 = vstv %s1758
        %v1760 = vmul.f32 %v1759, %v1738
        %v1761 = vmul.f32 %v1759, %v1739
        %v1762 = vadd.f32 %v1756, %v1760
        %v1763 = vadd.f32 %v1757, %v1761
        %s1764 = sld [smem:[#allocation9 + $0x1e]]
        %v1765 = vstv %s1764
        %v1766 = vmul.f32 %v1765, %v1736
        %v1767 = vmul.f32 %v1765, %v1737
        %v1768 = vadd.f32 %v1686, %v1766
        %v1769 = vadd.f32 %v1687, %v1767
        %s1770 = sld [smem:[#allocation9 + $0x9e]]
        %v1771 = vstv %s1770
        %v1772 = vmul.f32 %v1771, %v1738
        %v1773 = vmul.f32 %v1771, %v1739
        %v1774 = vadd.f32 %v1768, %v1772
        %v1775 = vadd.f32 %v1769, %v1773
        %s1776 = sld [smem:[#allocation9 + $0x1f]]
        %v1777 = vstv %s1776
        %v1778 = vmul.f32 %v1777, %v1736
        %v1779 = vmul.f32 %v1777, %v1737
        %v1780 = vadd.f32 %v1698, %v1778
        %v1781 = vadd.f32 %v1699, %v1779
        %s1782 = sld [smem:[#allocation9 + $0x9f]]
        %v1783 = vstv %s1782
        %v1784 = vmul.f32 %v1783, %v1738
        %v1785 = vmul.f32 %v1783, %v1739
        %v1786 = vadd.f32 %v1780, %v1784
        %v1787 = vadd.f32 %v1781, %v1785
        %s1788 = sld [smem:[#allocation9 + $0x20]]
        %v1789 = vstv %s1788
        %v1790 = vmul.f32 %v1789, %v1736
        %v1791 = vmul.f32 %v1789, %v1737
        %v1792 = vadd.f32 %v1710, %v1790
        %v1793 = vadd.f32 %v1711, %v1791
        %s1794 = sld [smem:[#allocation9 + $0xa0]]
        %v1795 = vstv %s1794
        %v1796 = vmul.f32 %v1795, %v1738
        %v1797 = vmul.f32 %v1795, %v1739
        %v1798 = vadd.f32 %v1792, %v1796
        %v1799 = vadd.f32 %v1793, %v1797
        %s1800 = sld [smem:[#allocation9 + $0x21]]
        %v1801 = vstv %s1800
        %v1802 = vmul.f32 %v1801, %v1736
        %v1803 = vmul.f32 %v1801, %v1737
        %v1804 = vadd.f32 %v1722, %v1802
        %v1805 = vadd.f32 %v1723, %v1803
        %s1806 = sld [smem:[#allocation9 + $0xa1]]
        %v1807 = vstv %s1806
        %v1808 = vmul.f32 %v1807, %v1738
        %v1809 = vmul.f32 %v1807, %v1739
        %v1810 = vadd.f32 %v1804, %v1808
        %v1811 = vadd.f32 %v1805, %v1809
        %s1812 = sld [smem:[#allocation9 + $0x22]]
        %v1813 = vstv %s1812
        %v1814 = vmul.f32 %v1813, %v1736
        %v1815 = vmul.f32 %v1813, %v1737
        %v1816 = vadd.f32 %v1734, %v1814
        %v1817 = vadd.f32 %v1735, %v1815
        %s1818 = sld [smem:[#allocation9 + $0xa2]]
        %v1819 = vstv %s1818
        %v1820 = vmul.f32 %v1819, %v1738
        %v1821 = vmul.f32 %v1819, %v1739
        %v1822 = vadd.f32 %v1816, %v1820
        %v1823 = vadd.f32 %v1817, %v1821
        %v1824 = vld [vmem:[#allocation2 + $0x5] sm:$0xff]
        %v1825 = vld [vmem:[#allocation2 + $0xd] sm:$0xff]
        %v1826 = vld [vmem:[#allocation3 + $0x5] sm:$0xff]
        %v1827 = vld [vmem:[#allocation3 + $0xd] sm:$0xff]
        %s1828 = sld [smem:[#allocation9 + $0x23]]
        %v1829 = vstv %s1828
        %v1830 = vmul.f32 %v1829, %v1824
        %v1831 = vmul.f32 %v1829, %v1825
        %v1832 = vadd.f32 %v1750, %v1830
        %v1833 = vadd.f32 %v1751, %v1831
        %s1834 = sld [smem:[#allocation9 + $0xa3]]
        %v1835 = vstv %s1834
        %v1836 = vmul.f32 %v1835, %v1826
        %v1837 = vmul.f32 %v1835, %v1827
        %v1838 = vadd.f32 %v1832, %v1836
        %v1839 = vadd.f32 %v1833, %v1837
        %s1840 = sld [smem:[#allocation9 + $0x24]]
        %v1841 = vstv %s1840
        %v1842 = vmul.f32 %v1841, %v1824
        %v1843 = vmul.f32 %v1841, %v1825
        %v1844 = vadd.f32 %v1762, %v1842
        %v1845 = vadd.f32 %v1763, %v1843
        %s1846 = sld [smem:[#allocation9 + $0xa4]]
        %v1847 = vstv %s1846
        %v1848 = vmul.f32 %v1847, %v1826
        %v1849 = vmul.f32 %v1847, %v1827
        %v1850 = vadd.f32 %v1844, %v1848
        %v1851 = vadd.f32 %v1845, %v1849
        %s1852 = sld [smem:[#allocation9 + $0x25]]
        %v1853 = vstv %s1852
        %v1854 = vmul.f32 %v1853, %v1824
        %v1855 = vmul.f32 %v1853, %v1825
        %v1856 = vadd.f32 %v1774, %v1854
        %v1857 = vadd.f32 %v1775, %v1855
        %s1858 = sld [smem:[#allocation9 + $0xa5]]
        %v1859 = vstv %s1858
        %v1860 = vmul.f32 %v1859, %v1826
        %v1861 = vmul.f32 %v1859, %v1827
        %v1862 = vadd.f32 %v1856, %v1860
        %v1863 = vadd.f32 %v1857, %v1861
        %s1864 = sld [smem:[#allocation9 + $0x26]]
        %v1865 = vstv %s1864
        %v1866 = vmul.f32 %v1865, %v1824
        %v1867 = vmul.f32 %v1865, %v1825
        %v1868 = vadd.f32 %v1786, %v1866
        %v1869 = vadd.f32 %v1787, %v1867
        %s1870 = sld [smem:[#allocation9 + $0xa6]]
        %v1871 = vstv %s1870
        %v1872 = vmul.f32 %v1871, %v1826
        %v1873 = vmul.f32 %v1871, %v1827
        %v1874 = vadd.f32 %v1868, %v1872
        %v1875 = vadd.f32 %v1869, %v1873
        %s1876 = sld [smem:[#allocation9 + $0x27]]
        %v1877 = vstv %s1876
        %v1878 = vmul.f32 %v1877, %v1824
        %v1879 = vmul.f32 %v1877, %v1825
        %v1880 = vadd.f32 %v1798, %v1878
        %v1881 = vadd.f32 %v1799, %v1879
        %s1882 = sld [smem:[#allocation9 + $0xa7]]
        %v1883 = vstv %s1882
        %v1884 = vmul.f32 %v1883, %v1826
        %v1885 = vmul.f32 %v1883, %v1827
        %v1886 = vadd.f32 %v1880, %v1884
        %v1887 = vadd.f32 %v1881, %v1885
        %s1888 = sld [smem:[#allocation9 + $0x28]]
        %v1889 = vstv %s1888
        %v1890 = vmul.f32 %v1889, %v1824
        %v1891 = vmul.f32 %v1889, %v1825
        %v1892 = vadd.f32 %v1810, %v1890
        %v1893 = vadd.f32 %v1811, %v1891
        %s1894 = sld [smem:[#allocation9 + $0xa8]]
        %v1895 = vstv %s1894
        %v1896 = vmul.f32 %v1895, %v1826
        %v1897 = vmul.f32 %v1895, %v1827
        %v1898 = vadd.f32 %v1892, %v1896
        %v1899 = vadd.f32 %v1893, %v1897
        %s1900 = sld [smem:[#allocation9 + $0x29]]
        %v1901 = vstv %s1900
        %v1902 = vmul.f32 %v1901, %v1824
        %v1903 = vmul.f32 %v1901, %v1825
        %v1904 = vadd.f32 %v1822, %v1902
        %v1905 = vadd.f32 %v1823, %v1903
        %s1906 = sld [smem:[#allocation9 + $0xa9]]
        %v1907 = vstv %s1906
        %v1908 = vmul.f32 %v1907, %v1826
        %v1909 = vmul.f32 %v1907, %v1827
        %v1910 = vadd.f32 %v1904, %v1908
        %v1911 = vadd.f32 %v1905, %v1909
        %v1912 = vld [vmem:[#allocation2 + $0x6] sm:$0xff]
        %v1913 = vld [vmem:[#allocation2 + $0xe] sm:$0xff]
        %v1914 = vld [vmem:[#allocation3 + $0x6] sm:$0xff]
        %v1915 = vld [vmem:[#allocation3 + $0xe] sm:$0xff]
        %s1916 = sld [smem:[#allocation9 + $0x2a]]
        %v1917 = vstv %s1916
        %v1918 = vmul.f32 %v1917, %v1912
        %v1919 = vmul.f32 %v1917, %v1913
        %v1920 = vadd.f32 %v1838, %v1918
        %v1921 = vadd.f32 %v1839, %v1919
        %s1922 = sld [smem:[#allocation9 + $0xaa]]
        %v1923 = vstv %s1922
        %v1924 = vmul.f32 %v1923, %v1914
        %v1925 = vmul.f32 %v1923, %v1915
        %v1926 = vadd.f32 %v1920, %v1924
        %v1927 = vadd.f32 %v1921, %v1925
        %s1928 = sld [smem:[#allocation9 + $0x2b]]
        %v1929 = vstv %s1928
        %v1930 = vmul.f32 %v1929, %v1912
        %v1931 = vmul.f32 %v1929, %v1913
        %v1932 = vadd.f32 %v1850, %v1930
        %v1933 = vadd.f32 %v1851, %v1931
        %s1934 = sld [smem:[#allocation9 + $0xab]]
        %v1935 = vstv %s1934
        %v1936 = vmul.f32 %v1935, %v1914
        %v1937 = vmul.f32 %v1935, %v1915
        %v1938 = vadd.f32 %v1932, %v1936
        %v1939 = vadd.f32 %v1933, %v1937
        %s1940 = sld [smem:[#allocation9 + $0x2c]]
        %v1941 = vstv %s1940
        %v1942 = vmul.f32 %v1941, %v1912
        %v1943 = vmul.f32 %v1941, %v1913
        %v1944 = vadd.f32 %v1862, %v1942
        %v1945 = vadd.f32 %v1863, %v1943
        %s1946 = sld [smem:[#allocation9 + $0xac]]
        %v1947 = vstv %s1946
        %v1948 = vmul.f32 %v1947, %v1914
        %v1949 = vmul.f32 %v1947, %v1915
        %v1950 = vadd.f32 %v1944, %v1948
        %v1951 = vadd.f32 %v1945, %v1949
        %s1952 = sld [smem:[#allocation9 + $0x2d]]
        %v1953 = vstv %s1952
        %v1954 = vmul.f32 %v1953, %v1912
        %v1955 = vmul.f32 %v1953, %v1913
        %v1956 = vadd.f32 %v1874, %v1954
        %v1957 = vadd.f32 %v1875, %v1955
        %s1958 = sld [smem:[#allocation9 + $0xad]]
        %v1959 = vstv %s1958
        %v1960 = vmul.f32 %v1959, %v1914
        %v1961 = vmul.f32 %v1959, %v1915
        %v1962 = vadd.f32 %v1956, %v1960
        %v1963 = vadd.f32 %v1957, %v1961
        %s1964 = sld [smem:[#allocation9 + $0x2e]]
        %v1965 = vstv %s1964
        %v1966 = vmul.f32 %v1965, %v1912
        %v1967 = vmul.f32 %v1965, %v1913
        %v1968 = vadd.f32 %v1886, %v1966
        %v1969 = vadd.f32 %v1887, %v1967
        %s1970 = sld [smem:[#allocation9 + $0xae]]
        %v1971 = vstv %s1970
        %v1972 = vmul.f32 %v1971, %v1914
        %v1973 = vmul.f32 %v1971, %v1915
        %v1974 = vadd.f32 %v1968, %v1972
        %v1975 = vadd.f32 %v1969, %v1973
        %s1976 = sld [smem:[#allocation9 + $0x2f]]
        %v1977 = vstv %s1976
        %v1978 = vmul.f32 %v1977, %v1912
        %v1979 = vmul.f32 %v1977, %v1913
        %v1980 = vadd.f32 %v1898, %v1978
        %v1981 = vadd.f32 %v1899, %v1979
        %s1982 = sld [smem:[#allocation9 + $0xaf]]
        %v1983 = vstv %s1982
        %v1984 = vmul.f32 %v1983, %v1914
        %v1985 = vmul.f32 %v1983, %v1915
        %v1986 = vadd.f32 %v1980, %v1984
        %v1987 = vadd.f32 %v1981, %v1985
        %s1988 = sld [smem:[#allocation9 + $0x30]]
        %v1989 = vstv %s1988
        %v1990 = vmul.f32 %v1989, %v1912
        %v1991 = vmul.f32 %v1989, %v1913
        %v1992 = vadd.f32 %v1910, %v1990
        %v1993 = vadd.f32 %v1911, %v1991
        %s1994 = sld [smem:[#allocation9 + $0xb0]]
        %v1995 = vstv %s1994
        %v1996 = vmul.f32 %v1995, %v1914
        %v1997 = vmul.f32 %v1995, %v1915
        %v1998 = vadd.f32 %v1992, %v1996
        %v1999 = vadd.f32 %v1993, %v1997
        %2000 = vst [vmem:[#allocation4] sm:$0xff] %v1926
        %2001 = vst [vmem:[#allocation4 + $0x8] sm:$0xff] %v1927
        %v2002 = vld [vmem:[#allocation4] sm:$0xff]
        %v2003 = vld [vmem:[#allocation4 + $0x8] sm:$0xff]
        %v2004 = vadd.f32 %v2002, 0.0
        %v2005 = vadd.f32 %v2003, 0.0
        %2006 = vst [vmem:[#allocation4] sm:$0xff] %v1938
        %2007 = vst [vmem:[#allocation4 + $0x8] sm:$0xff] %v1939
        %v2008 = vld [vmem:[#allocation4] sm:$0xff]
        %v2009 = vld [vmem:[#allocation4 + $0x8] sm:$0xff]
        %2012 = vrot.lane.b32.xlu0 %v2008, 127
        %v2013 = vpop.permute.xlu0 %2012
        %2014 = vrot.lane.b32.xlu0 %v2009, 127
        %v2015 = vpop.permute.xlu0 %2014
        %v2018 = vadd.f32 %v2004, %v2013
        %v2019 = vadd.f32 %v2005, %v2015
        %2020 = vst [vmem:[#allocation4] sm:$0xff] %v1950
        %2021 = vst [vmem:[#allocation4 + $0x8] sm:$0xff] %v1951
        %v2022 = vld [vmem:[#allocation4] sm:$0xff]
        %v2023 = vld [vmem:[#allocation4 + $0x8] sm:$0xff]
        %2026 = vrot.lane.b32.xlu0 %v2022, 126
        %v2027 = vpop.permute.xlu0 %2026
        %2028 = vrot.lane.b32.xlu0 %v2023, 126
        %v2029 = vpop.permute.xlu0 %2028
        %v2032 = vadd.f32 %v2018, %v2027
        %v2033 = vadd.f32 %v2019, %v2029
        %2034 = vst [vmem:[#allocation4] sm:$0xff] %v1962
        %2035 = vst [vmem:[#allocation4 + $0x8] sm:$0xff] %v1963
        %v2036 = vld [vmem:[#allocation4] sm:$0xff]
        %v2037 = vld [vmem:[#allocation4 + $0x8] sm:$0xff]
        %2040 = vrot.lane.b32.xlu0 %v2036, 125
        %v2041 = vpop.permute.xlu0 %2040
        %2042 = vrot.lane.b32.xlu0 %v2037, 125
        %v2043 = vpop.permute.xlu0 %2042
        %v2046 = vadd.f32 %v2032, %v2041
        %v2047 = vadd.f32 %v2033, %v2043
        %2048 = vst [vmem:[#allocation4] sm:$0xff] %v1974
        %2049 = vst [vmem:[#allocation4 + $0x8] sm:$0xff] %v1975
        %v2050 = vld [vmem:[#allocation4] sm:$0xff]
        %v2051 = vld [vmem:[#allocation4 + $0x8] sm:$0xff]
        %2054 = vrot.lane.b32.xlu0 %v2050, 124
        %v2055 = vpop.permute.xlu0 %2054
        %2056 = vrot.lane.b32.xlu0 %v2051, 124
        %v2057 = vpop.permute.xlu0 %2056
        %v2060 = vadd.f32 %v2046, %v2055
        %v2061 = vadd.f32 %v2047, %v2057
        %2062 = vst [vmem:[#allocation4] sm:$0xff] %v1986
        %2063 = vst [vmem:[#allocation4 + $0x8] sm:$0xff] %v1987
        %v2064 = vld [vmem:[#allocation4] sm:$0xff]
        %v2065 = vld [vmem:[#allocation4 + $0x8] sm:$0xff]
        %2068 = vrot.lane.b32.xlu0 %v2064, 123
        %v2069 = vpop.permute.xlu0 %2068
        %2070 = vrot.lane.b32.xlu0 %v2065, 123
        %v2071 = vpop.permute.xlu0 %2070
        %v2074 = vadd.f32 %v2060, %v2069
        %v2075 = vadd.f32 %v2061, %v2071
        %2076 = vst [vmem:[#allocation4] sm:$0xff] %v1998
        %2077 = vst [vmem:[#allocation4 + $0x8] sm:$0xff] %v1999
        %v2078 = vld [vmem:[#allocation4] sm:$0xff]
        %v2079 = vld [vmem:[#allocation4 + $0x8] sm:$0xff]
        %2082 = vrot.lane.b32.xlu0 %v2078, 122
        %v2083 = vpop.permute.xlu0 %2082
        %2084 = vrot.lane.b32.xlu0 %v2079, 122
        %v2085 = vpop.permute.xlu0 %2084
        %v2088 = vadd.f32 %v2074, %v2083
        %v2089 = vadd.f32 %v2075, %v2085
        %v2090 = vxor.u32 %v2088, 2147483648
        %v2091 = vxor.u32 %v2089, 2147483648
        %v2092 = vmul.f32 %v2090, 1.442695
        %v2093 = vpow.pop %v2092
        %v2094 = vmul.f32 %v2091, 1.442695
        %v2095 = vpow.pop %v2094
        %v2096 = vadd.f32 %v2093, 1.0
        %v2097 = vadd.f32 %v2095, 1.0
        %v2098 = vrcp.pop %v2096
        %v2099 = vmul.f32 1.0, %v2098
        %v2100 = vrcp.pop %v2097
        %v2101 = vmul.f32 1.0, %v2100
        %v2102 = vlaneseq
        %v2103 = vshrl.u32 %v2102, 7
        %v2104 = vsub.s32 0, %v2103
        %v2105 = vrot.slane %v2099, %v2104
        %2107 = vbcast.lane.b32.xlu0 %v2105, 256
        %v2108 = vpop.permute.xlu0 %2107
        %s2110 = sor.u32 256, 8
        %2111 = vbcast.lane.b32.xlu0 %v2105, %s2110
        %v2112 = vpop.permute.xlu0 %2111
        %v2113 = vlaneseq
        %v2114 = vshrl.u32 %v2113, 7
        %v2115 = vsub.s32 1, %v2114
        %v2116 = vrot.slane %v2099, %v2115
        %2118 = vbcast.lane.b32.xlu0 %v2116, 256
        %v2119 = vpop.permute.xlu0 %2118
        %s2121 = sor.u32 256, 8
        %2122 = vbcast.lane.b32.xlu0 %v2116, %s2121
        %v2123 = vpop.permute.xlu0 %2122
        %v2124 = vlaneseq
        %v2125 = vshrl.u32 %v2124, 7
        %v2126 = vsub.s32 2, %v2125
        %v2127 = vrot.slane %v2099, %v2126
        %2129 = vbcast.lane.b32.xlu0 %v2127, 256
        %v2130 = vpop.permute.xlu0 %2129
        %s2132 = sor.u32 256, 8
        %2133 = vbcast.lane.b32.xlu0 %v2127, %s2132
        %v2134 = vpop.permute.xlu0 %2133
        %v2135 = vlaneseq
        %v2136 = vshrl.u32 %v2135, 7
        %v2137 = vsub.s32 3, %v2136
        %v2138 = vrot.slane %v2099, %v2137
        %2140 = vbcast.lane.b32.xlu0 %v2138, 256
        %v2141 = vpop.permute.xlu0 %2140
        %s2143 = sor.u32 256, 8
        %2144 = vbcast.lane.b32.xlu0 %v2138, %s2143
        %v2145 = vpop.permute.xlu0 %2144
        %v2146 = vlaneseq
        %v2147 = vshrl.u32 %v2146, 7
        %v2148 = vsub.s32 4, %v2147
        %v2149 = vrot.slane %v2099, %v2148
        %2151 = vbcast.lane.b32.xlu0 %v2149, 256
        %v2152 = vpop.permute.xlu0 %2151
        %s2154 = sor.u32 256, 8
        %2155 = vbcast.lane.b32.xlu0 %v2149, %s2154
        %v2156 = vpop.permute.xlu0 %2155
        %v2157 = vlaneseq
        %v2158 = vshrl.u32 %v2157, 7
        %v2159 = vsub.s32 5, %v2158
        %v2160 = vrot.slane %v2099, %v2159
        %2162 = vbcast.lane.b32.xlu0 %v2160, 256
        %v2163 = vpop.permute.xlu0 %2162
        %s2165 = sor.u32 256, 8
        %2166 = vbcast.lane.b32.xlu0 %v2160, %s2165
        %v2167 = vpop.permute.xlu0 %2166
        %v2168 = vlaneseq
        %v2169 = vshrl.u32 %v2168, 7
        %v2170 = vsub.s32 6, %v2169
        %v2171 = vrot.slane %v2099, %v2170
        %2173 = vbcast.lane.b32.xlu0 %v2171, 256
        %v2174 = vpop.permute.xlu0 %2173
        %s2176 = sor.u32 256, 8
        %2177 = vbcast.lane.b32.xlu0 %v2171, %s2176
        %v2178 = vpop.permute.xlu0 %2177
        %v2179 = vlaneseq
        %v2180 = vshrl.u32 %v2179, 7
        %v2181 = vsub.s32 7, %v2180
        %v2182 = vrot.slane %v2099, %v2181
        %2184 = vbcast.lane.b32.xlu0 %v2182, 256
        %v2185 = vpop.permute.xlu0 %2184
        %s2187 = sor.u32 256, 8
        %2188 = vbcast.lane.b32.xlu0 %v2182, %s2187
        %v2189 = vpop.permute.xlu0 %2188
        %v2190 = vlaneseq
        %v2191 = vshrl.u32 %v2190, 7
        %v2192 = vsub.s32 0, %v2191
        %v2193 = vrot.slane %v2101, %v2192
        %2195 = vbcast.lane.b32.xlu0 %v2193, 256
        %v2196 = vpop.permute.xlu0 %2195
        %s2198 = sor.u32 256, 8
        %2199 = vbcast.lane.b32.xlu0 %v2193, %s2198
        %v2200 = vpop.permute.xlu0 %2199
        %v2201 = vlaneseq
        %v2202 = vshrl.u32 %v2201, 7
        %v2203 = vsub.s32 1, %v2202
        %v2204 = vrot.slane %v2101, %v2203
        %2206 = vbcast.lane.b32.xlu0 %v2204, 256
        %v2207 = vpop.permute.xlu0 %2206
        %s2209 = sor.u32 256, 8
        %2210 = vbcast.lane.b32.xlu0 %v2204, %s2209
        %v2211 = vpop.permute.xlu0 %2210
        %v2212 = vlaneseq
        %v2213 = vshrl.u32 %v2212, 7
        %v2214 = vsub.s32 2, %v2213
        %v2215 = vrot.slane %v2101, %v2214
        %2217 = vbcast.lane.b32.xlu0 %v2215, 256
        %v2218 = vpop.permute.xlu0 %2217
        %s2220 = sor.u32 256, 8
        %2221 = vbcast.lane.b32.xlu0 %v2215, %s2220
        %v2222 = vpop.permute.xlu0 %2221
        %v2223 = vlaneseq
        %v2224 = vshrl.u32 %v2223, 7
        %v2225 = vsub.s32 3, %v2224
        %v2226 = vrot.slane %v2101, %v2225
        %2228 = vbcast.lane.b32.xlu0 %v2226, 256
        %v2229 = vpop.permute.xlu0 %2228
        %s2231 = sor.u32 256, 8
        %2232 = vbcast.lane.b32.xlu0 %v2226, %s2231
        %v2233 = vpop.permute.xlu0 %2232
        %v2234 = vlaneseq
        %v2235 = vshrl.u32 %v2234, 7
        %v2236 = vsub.s32 4, %v2235
        %v2237 = vrot.slane %v2101, %v2236
        %2239 = vbcast.lane.b32.xlu0 %v2237, 256
        %v2240 = vpop.permute.xlu0 %2239
        %s2242 = sor.u32 256, 8
        %2243 = vbcast.lane.b32.xlu0 %v2237, %s2242
        %v2244 = vpop.permute.xlu0 %2243
        %v2245 = vlaneseq
        %v2246 = vshrl.u32 %v2245, 7
        %v2247 = vsub.s32 5, %v2246
        %v2248 = vrot.slane %v2101, %v2247
        %2250 = vbcast.lane.b32.xlu0 %v2248, 256
        %v2251 = vpop.permute.xlu0 %2250
        %s2253 = sor.u32 256, 8
        %2254 = vbcast.lane.b32.xlu0 %v2248, %s2253
        %v2255 = vpop.permute.xlu0 %2254
        %v2256 = vlaneseq
        %v2257 = vshrl.u32 %v2256, 7
        %v2258 = vsub.s32 6, %v2257
        %v2259 = vrot.slane %v2101, %v2258
        %2261 = vbcast.lane.b32.xlu0 %v2259, 256
        %v2262 = vpop.permute.xlu0 %2261
        %s2264 = sor.u32 256, 8
        %2265 = vbcast.lane.b32.xlu0 %v2259, %s2264
        %v2266 = vpop.permute.xlu0 %2265
        %v2267 = vlaneseq
        %v2268 = vshrl.u32 %v2267, 7
        %v2269 = vsub.s32 7, %v2268
        %v2270 = vrot.slane %v2101, %v2269
        %2272 = vbcast.lane.b32.xlu0 %v2270, 256
        %v2273 = vpop.permute.xlu0 %2272
        %s2275 = sor.u32 256, 8
        %2276 = vbcast.lane.b32.xlu0 %v2270, %s2275
        %v2277 = vpop.permute.xlu0 %2276
        %v2278 = vmul.f32 %v721, %v2108
        %v2279 = vmul.f32 %v722, %v2112
        %v2280 = vmul.f32 %v723, %v2119
        %v2281 = vmul.f32 %v724, %v2123
        %v2282 = vmul.f32 %v725, %v2130
        %v2283 = vmul.f32 %v726, %v2134
        %v2284 = vmul.f32 %v727, %v2141
        %v2285 = vmul.f32 %v728, %v2145
        %v2286 = vmul.f32 %v729, %v2152
        %v2287 = vmul.f32 %v730, %v2156
        %v2288 = vmul.f32 %v731, %v2163
        %v2289 = vmul.f32 %v732, %v2167
        %v2290 = vmul.f32 %v733, %v2174
        %v2291 = vmul.f32 %v734, %v2178
        %v2292 = vmul.f32 %v735, %v2185
        %v2293 = vmul.f32 %v736, %v2189
        %v2294 = vmul.f32 %v737, %v2196
        %v2295 = vmul.f32 %v738, %v2200
        %v2296 = vmul.f32 %v739, %v2207
        %v2297 = vmul.f32 %v740, %v2211
        %v2298 = vmul.f32 %v741, %v2218
        %v2299 = vmul.f32 %v742, %v2222
        %v2300 = vmul.f32 %v743, %v2229
        %v2301 = vmul.f32 %v744, %v2233
        %v2302 = vmul.f32 %v745, %v2240
        %v2303 = vmul.f32 %v746, %v2244
        %v2304 = vmul.f32 %v747, %v2251
        %v2305 = vmul.f32 %v748, %v2255
        %v2306 = vmul.f32 %v749, %v2262
        %v2307 = vmul.f32 %v750, %v2266
        %v2308 = vmul.f32 %v751, %v2273
        %v2309 = vmul.f32 %v752, %v2277
        %v2310 = vadd.f32 %v2278, %v230
        %v2311 = vadd.f32 %v2279, %v231
        %v2312 = vadd.f32 %v2280, %v232
        %v2313 = vadd.f32 %v2281, %v233
        %v2314 = vadd.f32 %v2282, %v234
        %v2315 = vadd.f32 %v2283, %v235
        %v2316 = vadd.f32 %v2284, %v236
        %v2317 = vadd.f32 %v2285, %v237
        %v2318 = vadd.f32 %v2286, %v238
        %v2319 = vadd.f32 %v2287, %v239
        %v2320 = vadd.f32 %v2288, %v240
        %v2321 = vadd.f32 %v2289, %v241
        %v2322 = vadd.f32 %v2290, %v242
        %v2323 = vadd.f32 %v2291, %v243
        %v2324 = vadd.f32 %v2292, %v244
        %v2325 = vadd.f32 %v2293, %v245
        %v2326 = vadd.f32 %v2294, %v246
        %v2327 = vadd.f32 %v2295, %v247
        %v2328 = vadd.f32 %v2296, %v248
        %v2329 = vadd.f32 %v2297, %v249
        %v2330 = vadd.f32 %v2298, %v250
        %v2331 = vadd.f32 %v2299, %v251
        %v2332 = vadd.f32 %v2300, %v252
        %v2333 = vadd.f32 %v2301, %v253
        %v2334 = vadd.f32 %v2302, %v254
        %v2335 = vadd.f32 %v2303, %v255
        %v2336 = vadd.f32 %v2304, %v256
        %v2337 = vadd.f32 %v2305, %v257
        %v2338 = vadd.f32 %v2306, %v258
        %v2339 = vadd.f32 %v2307, %v259
        %v2340 = vadd.f32 %v2308, %v260
        %v2341 = vadd.f32 %v2309, %v261
        %2342 = vst.msk [vmem:[%s229] sm:$0xff] %vm262, %v2310
        %2343 = vst.msk [vmem:[%s229 + $0x8] sm:$0xff] %vm262, %v2311
        %2344 = vst.msk [vmem:[%s229 + $0x10] sm:$0xff] %vm262, %v2312
        %2345 = vst.msk [vmem:[%s229 + $0x18] sm:$0xff] %vm262, %v2313
        %2346 = vst.msk [vmem:[%s229 + $0x20] sm:$0xff] %vm262, %v2314
        %2347 = vst.msk [vmem:[%s229 + $0x28] sm:$0xff] %vm262, %v2315
        %2348 = vst.msk [vmem:[%s229 + $0x30] sm:$0xff] %vm262, %v2316
        %2349 = vst.msk [vmem:[%s229 + $0x38] sm:$0xff] %vm262, %v2317
        %2350 = vst.msk [vmem:[%s229 + $0x40] sm:$0xff] %vm262, %v2318
        %2351 = vst.msk [vmem:[%s229 + $0x48] sm:$0xff] %vm262, %v2319
        %2352 = vst.msk [vmem:[%s229 + $0x50] sm:$0xff] %vm262, %v2320
        %2353 = vst.msk [vmem:[%s229 + $0x58] sm:$0xff] %vm262, %v2321
        %2354 = vst.msk [vmem:[%s229 + $0x60] sm:$0xff] %vm262, %v2322
        %2355 = vst.msk [vmem:[%s229 + $0x68] sm:$0xff] %vm262, %v2323
        %2356 = vst.msk [vmem:[%s229 + $0x70] sm:$0xff] %vm262, %v2324
        %2357 = vst.msk [vmem:[%s229 + $0x78] sm:$0xff] %vm262, %v2325
        %2358 = vst.msk [vmem:[%s229 + $0x80] sm:$0xff] %vm262, %v2326
        %2359 = vst.msk [vmem:[%s229 + $0x88] sm:$0xff] %vm262, %v2327
        %2360 = vst.msk [vmem:[%s229 + $0x90] sm:$0xff] %vm262, %v2328
        %2361 = vst.msk [vmem:[%s229 + $0x98] sm:$0xff] %vm262, %v2329
        %2362 = vst.msk [vmem:[%s229 + $0xa0] sm:$0xff] %vm262, %v2330
        %2363 = vst.msk [vmem:[%s229 + $0xa8] sm:$0xff] %vm262, %v2331
        %2364 = vst.msk [vmem:[%s229 + $0xb0] sm:$0xff] %vm262, %v2332
        %2365 = vst.msk [vmem:[%s229 + $0xb8] sm:$0xff] %vm262, %v2333
        %2366 = vst.msk [vmem:[%s229 + $0xc0] sm:$0xff] %vm262, %v2334
        %2367 = vst.msk [vmem:[%s229 + $0xc8] sm:$0xff] %vm262, %v2335
        %2368 = vst.msk [vmem:[%s229 + $0xd0] sm:$0xff] %vm262, %v2336
        %2369 = vst.msk [vmem:[%s229 + $0xd8] sm:$0xff] %vm262, %v2337
        %2370 = vst.msk [vmem:[%s229 + $0xe0] sm:$0xff] %vm262, %v2338
        %2371 = vst.msk [vmem:[%s229 + $0xe8] sm:$0xff] %vm262, %v2339
        %2372 = vst.msk [vmem:[%s229 + $0xf0] sm:$0xff] %vm262, %v2340
        %2373 = vst.msk [vmem:[%s229 + $0xf8] sm:$0xff] %vm262, %v2341
        %s2374 = sand.u32 %s119, 1
        %s2375 = scalar_lea.sflag [#allocation7], %s2374
        %s2376 = sand.u32 %s119, 1
        %s2377 = smul.addr %s2376, 256
        %s2378 = scalar_lea.vmem [#allocation10], %s2377
        // Predicated region
        $region45: #{cmba_block.1} parent=35 // pred_check
          %p2379 = pneg %p129
        $region46: #{cmba_block.1} parent=35 // pred_check_branch
          %2381 = sbr.rel (%p2379) target = $region48
        $region47: #{cmba_block.1} parent=35 // pred_region
          %s2383 = ssub.s32 4096, 4096
          %2384 = vsyncadd %s2375, %s2383
          %s2385 = smul.addr %s22, 32
          %s2386 = smul.addr %s2385, 128
          %s2387 = scalar_lea.hbm %s4, %s2386
          %s2388 = sshll.u32 %s2378, 4
          %s2389 = int_to_ptr.vmem [resolvable:$true] %s2388
          %2394 = dma.vmem_to_hbm [thread:$0]  %s2389, 4096, %s2387, %s2375, 128, 128, 8
        $region48: #{cmba_block.1} parent=35 // pred_fallthru
          _
      $region36: #{cmba_block.1} parent=5 // pred_fallthru
        _
      %p2395 = scmp.le.s32.totalorder 2, %s17
      // Predicated region
      $region49: #{cmba_block.1} parent=5 // pred_check
        %p2396 = pneg %p2395
      $region50: #{cmba_block.1} parent=5 // pred_check_branch
        %2398 = sbr.rel (%p2396) target = $region52
      $region51: #{cmba_block.1} parent=5 // pred_region
        %s2399 = ssub.s32 %s17, 2
        // Predicated region
        $region53: #{cmba_block.1} parent=51 // pred_check
          %p2400 = pneg %p135
        $region54: #{cmba_block.1} parent=51 // pred_check_branch
          %2402 = sbr.rel (%p2400) target = $region56
        $region55: #{cmba_block.1} parent=51 // pred_region
          %s2403 = sand.u32 %s120, 1
          %s2404 = scalar_lea.sflag [#allocation7], %s2403
          %s2405 = sand.u32 %s120, 1
          %s2406 = smul.addr %s2405, 256
          %s2407 = scalar_lea.vmem [#allocation10], %s2406
          %2408 = dma.done %s2404, 4096
        $region56: #{cmba_block.1} parent=51 // pred_fallthru
          _
      $region52: #{cmba_block.1} parent=5 // pred_fallthru
        _
    $region6: #{cmba_block.1} parent=1 // loop_footer
      %s21 = sadd.s32 1, %s17
    $region7: #{cmba_block.1} parent=1 // loop_footer_branch
      %16 = sbr.rel target = $region3
    $region8: #{cmba_block.1} parent=1 // loop_exit
      _
    %2409 = vsyncpa [#allocation6], 1
    %s2410 = scalar_lea.sflag [#allocation6], 1
    %2411 = vsyncpa %s2410, 1
    %2412 = vsyncpa [#allocation7], 1
    %s2413 = scalar_lea.sflag [#allocation7], 1
    %2414 = vsyncpa %s2413, 1
    %2415 = vsyncpa [#allocation8], 1
    %s2416 = scalar_lea.sflag [#allocation8], 1
    %2417 = vsyncpa %s2416, 1

</llo_original>
